<compile_context>
chip_gen: v6e
topology: v6e:2x2x1
jax: 0.10.0
libtpu: 0.0.40
codegen_flags: <defaults>
</compile_context>

<pallas_src>
import functools

import jax
import jax.numpy as jnp
from jax.experimental import pallas as pl
from jax.experimental.pallas import tpu as pltpu

EPS = 1e-5


def _reflect_pad1_hw(x, H, W):
    """(H, W, C) -> (H+2, W+2, C), 1-pixel reflection pad (ReflectionPad2d(1))."""
    x = jnp.concatenate([x[1:2], x, x[H - 2:H - 1]], axis=0)            # rows
    x = jnp.concatenate([x[:, 1:2], x, x[:, W - 2:W - 1]], axis=1)      # cols (+corners)
    return x


def _conv3x3_in(x_hwc, w_ref, b_ref, H, W, C, relu):
    """reflect-pad -> 3x3 conv (one fat im2col MXU matmul) -> InstanceNorm [-> ReLU].

    x_hwc : (H, W, C) f32 value resident in VMEM.
    w_ref : (9*C, C) bf16 weights, rows ordered tap-major / in-channel-minor.
    b_ref : (1, C)   f32 bias.
    Returns (H*W, C) f32.
    """
    P = H * W
    xp = _reflect_pad1_hw(x_hwc, H, W)                                  # (H+2, W+2, C)

    # im2col: 9 shifted taps concatenated along channels -> (P, 9C).
    # W % 8 == 0 makes the (H, W, C) -> (H*W, C) reshape a layout no-op.
    cols = []
    for dy in range(3):
        for dx in range(3):
            cols.append(xp[dy:dy + H, dx:dx + W, :].reshape(P, C))
    col = jnp.concatenate(cols, axis=-1).astype(jnp.bfloat16)           # (P, 9C) bf16

    # Single MXU contraction with K = 9C, f32 accumulation.
    acc = jnp.dot(col, w_ref[...], preferred_element_type=jnp.float32)  # (P, C) f32
    acc = acc + b_ref[...]

    # InstanceNorm2d (affine=False, biased variance, eps=1e-5), per channel over
    # the H*W spatial positions.  Single-pass fused stats in f32.
    inv_p = 1.0 / P
    mean = jnp.sum(acc, axis=0, keepdims=True) * inv_p                  # (1, C)
    mean_sq = jnp.sum(acc * acc, axis=0, keepdims=True) * inv_p         # (1, C)
    var = jnp.maximum(mean_sq - mean * mean, 0.0)                       # clamp >= 0
    y = (acc - mean) * jax.lax.rsqrt(var + EPS)
    if relu:
        y = jnp.maximum(y, 0.0)
    return y                                                            # (P, C) f32


def _resnet_block_kernel(x_ref, w1_ref, b1_ref, w2_ref, b2_ref, o_ref, *, H, W, C):
    # One batch sample per grid step; both stages fused, h1 stays in VMEM.
    x = x_ref[0]                                                        # (H, W, C) f32
    h1 = _conv3x3_in(x, w1_ref, b1_ref, H, W, C, relu=True)             # (P, C)
    h2 = _conv3x3_in(h1.reshape(H, W, C), w2_ref, b2_ref, H, W, C, relu=False)
    out = x.reshape(H * W, C) + h2                                      # residual add
    o_ref[0] = out.reshape(H, W, C).astype(o_ref.dtype)


def _torch_weight_to_im2col(w_oihw):
    """(Cout, Cin, 3, 3) -> (9*Cin, Cout) bf16, row index = (dy*3+dx)*Cin + i."""
    co, ci = w_oihw.shape[0], w_oihw.shape[1]
    return jnp.transpose(w_oihw, (2, 3, 1, 0)).reshape(9 * ci, co).astype(jnp.bfloat16)


def resnet_block(x_nchw, w1, b1, w2, b2):
    """Forward pass of ResnetBlock. x_nchw: (N, C, H, W) float32 -> (N, C, H, W)."""
    N, C, H, W = x_nchw.shape
    x = jnp.transpose(x_nchw, (0, 2, 3, 1)).astype(jnp.float32)         # NHWC

    w1_t = _torch_weight_to_im2col(w1)
    w2_t = _torch_weight_to_im2col(w2)
    b1_r = b1.reshape(1, C).astype(jnp.float32)
    b2_r = b2.reshape(1, C).astype(jnp.float32)

    sample = pl.BlockSpec((1, H, W, C), lambda n: (n, 0, 0, 0))
    wspec = pl.BlockSpec((9 * C, C), lambda n: (0, 0))
    bspec = pl.BlockSpec((1, C), lambda n: (0, 0))

    out = pl.pallas_call(
        functools.partial(_resnet_block_kernel, H=H, W=W, C=C),
        out_shape=jax.ShapeDtypeStruct((N, H, W, C), jnp.float32),
        grid=(N,),
        in_specs=[sample, wspec, bspec, wspec, bspec],
        out_specs=sample,
        compiler_params=pltpu.CompilerParams(
            dimension_semantics=("parallel",),
            # Raise the scoped-VMEM limit above the 16/32 MiB defaults so
            # whole-sample blocks (and their double buffers) fit at real sizes;
            # stays comfortably under every chip's physical VMEM.
            vmem_limit_bytes=48 * 1024 * 1024,
        ),
    )(x, w1_t, b1_r, w2_t, b2_r)

    return jnp.transpose(out, (0, 3, 1, 2))                             # back to NCHW


# ----------------------- plain-JAX reference (for checking) -----------------
def _ref_forward(x_nchw, w1, b1, w2, b2):
    def conv_in(x, w, b, relu):
        xp = jnp.pad(x, ((0, 0), (0, 0), (1, 1), (1, 1)), mode="reflect")
        y = jax.lax.conv_general_dilated(
            xp, w, window_strides=(1, 1), padding="VALID",
            dimension_numbers=("NCHW", "OIHW", "NCHW"))
        y = y + b[None, :, None, None]
        mean = jnp.mean(y, axis=(2, 3), keepdims=True)
        var = jnp.mean((y - mean) ** 2, axis=(2, 3), keepdims=True)
        y = (y - mean) * jax.lax.rsqrt(var + EPS)
        return jnp.maximum(y, 0.0) if relu else y

    h = conv_in(x_nchw, w1, b1, relu=True)
    return x_nchw + conv_in(h, w2, b2, relu=False)


if __name__ == "__main__":
    N, C, H, W = 2, 4, 16, 16
    key = jax.random.PRNGKey(0)
    kx, kw1, kb1, kw2, kb2 = jax.random.split(key, 5)

    x = jax.random.normal(kx, (N, C, H, W), jnp.float32)
    # deterministic synthetic parameters (Conv2d(dim, dim, 3, bias=True) x2)
    w1 = jax.random.normal(kw1, (C, C, 3, 3), jnp.float32) * 0.1
    b1 = jax.random.normal(kb1, (C,), jnp.float32) * 0.1
    w2 = jax.random.normal(kw2, (C, C, 3, 3), jnp.float32) * 0.1
    b2 = jax.random.normal(kb2, (C,), jnp.float32) * 0.1

    out = jax.block_until_ready(resnet_block(x, w1, b1, w2, b2))
    ref = jax.block_until_ready(_ref_forward(x, w1, b1, w2, b2))

    assert out.shape == (N, C, H, W)
    # Tolerance sized for bf16 MXU operands (accumulation / IN stats in f32).
    assert jnp.allclose(out, ref, atol=2e-2, rtol=2e-2), "mismatch vs reference"
    print("KERNEL_OK")
</pallas_src>

<mosaic_0001>
module attributes {stable_mosaic.version = 11 : i64} {
  func.func @_resnet_block_kernel(%arg0: i32, %arg1: memref<1x16x16x4xf32, #tpu.memory_space<vmem>>, %arg2: memref<36x4xbf16, #tpu.memory_space<vmem>>, %arg3: memref<1x4xf32, #tpu.memory_space<vmem>>, %arg4: memref<36x4xbf16, #tpu.memory_space<vmem>>, %arg5: memref<1x4xf32, #tpu.memory_space<vmem>>, %arg6: memref<1x16x16x4xf32, #tpu.memory_space<vmem>>) attributes {dimension_semantics = [#tpu.dimension_semantics<parallel>], iteration_bounds = array<i64: 2>, scalar_prefetch = 0 : i64, scratch_operands = 0 : i64, tpu.core_type = #tpu.core_type<tc>, window_params = [{transform_indices = @transform_0, window_bounds = array<i64: 1, 16, 16, 4>}, {pipeline_mode = #tpu.pipeline_mode<synchronous>, transform_indices = @transform_1, window_bounds = array<i64: 36, 4>}, {pipeline_mode = #tpu.pipeline_mode<synchronous>, transform_indices = @transform_2, window_bounds = array<i64: 1, 4>}, {pipeline_mode = #tpu.pipeline_mode<synchronous>, transform_indices = @transform_3, window_bounds = array<i64: 36, 4>}, {pipeline_mode = #tpu.pipeline_mode<synchronous>, transform_indices = @transform_4, window_bounds = array<i64: 1, 4>}, {transform_indices = @transform_5, window_bounds = array<i64: 1, 16, 16, 4>}]} {
    %c0 = arith.constant 0 : index
    %c0_0 = arith.constant 0 : index
    %c0_1 = arith.constant 0 : index
    %c0_2 = arith.constant 0 : index
    %0 = vector.load %arg1[%c0, %c0_0, %c0_1, %c0_2] : memref<1x16x16x4xf32, #tpu.memory_space<vmem>>, vector<1x16x16x4xf32>
    %1 = vector.shape_cast %0 : vector<1x16x16x4xf32> to vector<16x16x4xf32>
    %2 = vector.extract_strided_slice %1 {offsets = [1, 0, 0], sizes = [1, 16, 4], strides = [1, 1, 1]} : vector<16x16x4xf32> to vector<1x16x4xf32>
    %3 = vector.extract_strided_slice %1 {offsets = [14, 0, 0], sizes = [1, 16, 4], strides = [1, 1, 1]} : vector<16x16x4xf32> to vector<1x16x4xf32>
    %4 = tpu.concatenate %2, %1, %3 in 0 : vector<1x16x4xf32>, vector<16x16x4xf32>, vector<1x16x4xf32> -> vector<18x16x4xf32>
    %5 = vector.extract_strided_slice %4 {offsets = [0, 1, 0], sizes = [18, 1, 4], strides = [1, 1, 1]} : vector<18x16x4xf32> to vector<18x1x4xf32>
    %6 = vector.extract_strided_slice %4 {offsets = [0, 14, 0], sizes = [18, 1, 4], strides = [1, 1, 1]} : vector<18x16x4xf32> to vector<18x1x4xf32>
    %7 = tpu.concatenate %5, %4, %6 in 1 : vector<18x1x4xf32>, vector<18x16x4xf32>, vector<18x1x4xf32> -> vector<18x18x4xf32>
    %8 = vector.extract_strided_slice %7 {offsets = [0, 0, 0], sizes = [16, 16, 4], strides = [1, 1, 1]} : vector<18x18x4xf32> to vector<16x16x4xf32>
    %9 = vector.shape_cast %8 : vector<16x16x4xf32> to vector<256x4xf32>
    %10 = vector.extract_strided_slice %7 {offsets = [0, 1, 0], sizes = [16, 16, 4], strides = [1, 1, 1]} : vector<18x18x4xf32> to vector<16x16x4xf32>
    %11 = vector.shape_cast %10 : vector<16x16x4xf32> to vector<256x4xf32>
    %12 = vector.extract_strided_slice %7 {offsets = [0, 2, 0], sizes = [16, 16, 4], strides = [1, 1, 1]} : vector<18x18x4xf32> to vector<16x16x4xf32>
    %13 = vector.shape_cast %12 : vector<16x16x4xf32> to vector<256x4xf32>
    %14 = vector.extract_strided_slice %7 {offsets = [1, 0, 0], sizes = [16, 16, 4], strides = [1, 1, 1]} : vector<18x18x4xf32> to vector<16x16x4xf32>
    %15 = vector.shape_cast %14 : vector<16x16x4xf32> to vector<256x4xf32>
    %16 = vector.extract_strided_slice %7 {offsets = [1, 1, 0], sizes = [16, 16, 4], strides = [1, 1, 1]} : vector<18x18x4xf32> to vector<16x16x4xf32>
    %17 = vector.shape_cast %16 : vector<16x16x4xf32> to vector<256x4xf32>
    %18 = vector.extract_strided_slice %7 {offsets = [1, 2, 0], sizes = [16, 16, 4], strides = [1, 1, 1]} : vector<18x18x4xf32> to vector<16x16x4xf32>
    %19 = vector.shape_cast %18 : vector<16x16x4xf32> to vector<256x4xf32>
    %20 = vector.extract_strided_slice %7 {offsets = [2, 0, 0], sizes = [16, 16, 4], strides = [1, 1, 1]} : vector<18x18x4xf32> to vector<16x16x4xf32>
    %21 = vector.shape_cast %20 : vector<16x16x4xf32> to vector<256x4xf32>
    %22 = vector.extract_strided_slice %7 {offsets = [2, 1, 0], sizes = [16, 16, 4], strides = [1, 1, 1]} : vector<18x18x4xf32> to vector<16x16x4xf32>
    %23 = vector.shape_cast %22 : vector<16x16x4xf32> to vector<256x4xf32>
    %24 = vector.extract_strided_slice %7 {offsets = [2, 2, 0], sizes = [16, 16, 4], strides = [1, 1, 1]} : vector<18x18x4xf32> to vector<16x16x4xf32>
    %25 = vector.shape_cast %24 : vector<16x16x4xf32> to vector<256x4xf32>
    %26 = tpu.concatenate %9, %11, %13, %15, %17, %19, %21, %23, %25 in 1 : vector<256x4xf32>, vector<256x4xf32>, vector<256x4xf32>, vector<256x4xf32>, vector<256x4xf32>, vector<256x4xf32>, vector<256x4xf32>, vector<256x4xf32>, vector<256x4xf32> -> vector<256x36xf32>
    %27 = arith.truncf %26 : vector<256x36xf32> to vector<256x36xbf16>
    %c0_3 = arith.constant 0 : index
    %c0_4 = arith.constant 0 : index
    %28 = vector.load %arg2[%c0_3, %c0_4] : memref<36x4xbf16, #tpu.memory_space<vmem>>, vector<36x4xbf16>
    %cst = arith.constant dense<0.000000e+00> : vector<256x4xf32>
    %29 = tpu.matmul %27, %28, %cst {dimension_numbers = #tpu.dot_dimension_numbers<[1], [0], [0], [1], [0, 0, 1, 1], [], []>} : vector<256x36xbf16>, vector<36x4xbf16>, vector<256x4xf32> -> vector<256x4xf32>
    %c0_5 = arith.constant 0 : index
    %c0_6 = arith.constant 0 : index
    %30 = vector.load %arg3[%c0_5, %c0_6] : memref<1x4xf32, #tpu.memory_space<vmem>>, vector<1x4xf32>
    %31 = vector.broadcast %30 : vector<1x4xf32> to vector<256x4xf32>
    %32 = arith.addf %29, %31 : vector<256x4xf32>
    %cst_7 = arith.constant dense<0.000000e+00> : vector<4xf32>
    %33 = vector.multi_reduction <add>, %32, %cst_7 [0] : vector<256x4xf32> to vector<4xf32>
    %34 = vector.shape_cast %33 : vector<4xf32> to vector<1x4xf32>
    %cst_8 = arith.constant 3.906250e-03 : f32
    %35 = vector.broadcast %cst_8 : f32 to vector<1x4xf32>
    %36 = arith.mulf %34, %35 : vector<1x4xf32>
    %37 = arith.mulf %32, %32 : vector<256x4xf32>
    %cst_9 = arith.constant dense<0.000000e+00> : vector<4xf32>
    %38 = vector.multi_reduction <add>, %37, %cst_9 [0] : vector<256x4xf32> to vector<4xf32>
    %39 = vector.shape_cast %38 : vector<4xf32> to vector<1x4xf32>
    %cst_10 = arith.constant 3.906250e-03 : f32
    %40 = vector.broadcast %cst_10 : f32 to vector<1x4xf32>
    %41 = arith.mulf %39, %40 : vector<1x4xf32>
    %42 = arith.mulf %36, %36 : vector<1x4xf32>
    %43 = arith.subf %41, %42 : vector<1x4xf32>
    %cst_11 = arith.constant 0.000000e+00 : f32
    %44 = vector.broadcast %cst_11 : f32 to vector<1x4xf32>
    %45 = arith.maximumf %43, %44 : vector<1x4xf32>
    %46 = vector.broadcast %36 : vector<1x4xf32> to vector<256x4xf32>
    %47 = arith.subf %32, %46 : vector<256x4xf32>
    %cst_12 = arith.constant 9.99999974E-6 : f32
    %48 = vector.broadcast %cst_12 : f32 to vector<1x4xf32>
    %49 = arith.addf %45, %48 : vector<1x4xf32>
    %50 = math.rsqrt %49 : vector<1x4xf32>
    %51 = vector.broadcast %50 : vector<1x4xf32> to vector<256x4xf32>
    %52 = arith.mulf %47, %51 : vector<256x4xf32>
    %cst_13 = arith.constant 0.000000e+00 : f32
    %53 = vector.broadcast %cst_13 : f32 to vector<256x4xf32>
    %54 = arith.maximumf %52, %53 : vector<256x4xf32>
    %55 = vector.shape_cast %54 : vector<256x4xf32> to vector<16x16x4xf32>
    %56 = vector.extract_strided_slice %55 {offsets = [1, 0, 0], sizes = [1, 16, 4], strides = [1, 1, 1]} : vector<16x16x4xf32> to vector<1x16x4xf32>
    %57 = vector.extract_strided_slice %55 {offsets = [14, 0, 0], sizes = [1, 16, 4], strides = [1, 1, 1]} : vector<16x16x4xf32> to vector<1x16x4xf32>
    %58 = tpu.concatenate %56, %55, %57 in 0 : vector<1x16x4xf32>, vector<16x16x4xf32>, vector<1x16x4xf32> -> vector<18x16x4xf32>
    %59 = vector.extract_strided_slice %58 {offsets = [0, 1, 0], sizes = [18, 1, 4], strides = [1, 1, 1]} : vector<18x16x4xf32> to vector<18x1x4xf32>
    %60 = vector.extract_strided_slice %58 {offsets = [0, 14, 0], sizes = [18, 1, 4], strides = [1, 1, 1]} : vector<18x16x4xf32> to vector<18x1x4xf32>
    %61 = tpu.concatenate %59, %58, %60 in 1 : vector<18x1x4xf32>, vector<18x16x4xf32>, vector<18x1x4xf32> -> vector<18x18x4xf32>
    %62 = vector.extract_strided_slice %61 {offsets = [0, 0, 0], sizes = [16, 16, 4], strides = [1, 1, 1]} : vector<18x18x4xf32> to vector<16x16x4xf32>
    %63 = vector.shape_cast %62 : vector<16x16x4xf32> to vector<256x4xf32>
    %64 = vector.extract_strided_slice %61 {offsets = [0, 1, 0], sizes = [16, 16, 4], strides = [1, 1, 1]} : vector<18x18x4xf32> to vector<16x16x4xf32>
    %65 = vector.shape_cast %64 : vector<16x16x4xf32> to vector<256x4xf32>
    %66 = vector.extract_strided_slice %61 {offsets = [0, 2, 0], sizes = [16, 16, 4], strides = [1, 1, 1]} : vector<18x18x4xf32> to vector<16x16x4xf32>
    %67 = vector.shape_cast %66 : vector<16x16x4xf32> to vector<256x4xf32>
    %68 = vector.extract_strided_slice %61 {offsets = [1, 0, 0], sizes = [16, 16, 4], strides = [1, 1, 1]} : vector<18x18x4xf32> to vector<16x16x4xf32>
    %69 = vector.shape_cast %68 : vector<16x16x4xf32> to vector<256x4xf32>
    %70 = vector.extract_strided_slice %61 {offsets = [1, 1, 0], sizes = [16, 16, 4], strides = [1, 1, 1]} : vector<18x18x4xf32> to vector<16x16x4xf32>
    %71 = vector.shape_cast %70 : vector<16x16x4xf32> to vector<256x4xf32>
    %72 = vector.extract_strided_slice %61 {offsets = [1, 2, 0], sizes = [16, 16, 4], strides = [1, 1, 1]} : vector<18x18x4xf32> to vector<16x16x4xf32>
    %73 = vector.shape_cast %72 : vector<16x16x4xf32> to vector<256x4xf32>
    %74 = vector.extract_strided_slice %61 {offsets = [2, 0, 0], sizes = [16, 16, 4], strides = [1, 1, 1]} : vector<18x18x4xf32> to vector<16x16x4xf32>
    %75 = vector.shape_cast %74 : vector<16x16x4xf32> to vector<256x4xf32>
    %76 = vector.extract_strided_slice %61 {offsets = [2, 1, 0], sizes = [16, 16, 4], strides = [1, 1, 1]} : vector<18x18x4xf32> to vector<16x16x4xf32>
    %77 = vector.shape_cast %76 : vector<16x16x4xf32> to vector<256x4xf32>
    %78 = vector.extract_strided_slice %61 {offsets = [2, 2, 0], sizes = [16, 16, 4], strides = [1, 1, 1]} : vector<18x18x4xf32> to vector<16x16x4xf32>
    %79 = vector.shape_cast %78 : vector<16x16x4xf32> to vector<256x4xf32>
    %80 = tpu.concatenate %63, %65, %67, %69, %71, %73, %75, %77, %79 in 1 : vector<256x4xf32>, vector<256x4xf32>, vector<256x4xf32>, vector<256x4xf32>, vector<256x4xf32>, vector<256x4xf32>, vector<256x4xf32>, vector<256x4xf32>, vector<256x4xf32> -> vector<256x36xf32>
    %81 = arith.truncf %80 : vector<256x36xf32> to vector<256x36xbf16>
    %c0_14 = arith.constant 0 : index
    %c0_15 = arith.constant 0 : index
    %82 = vector.load %arg4[%c0_14, %c0_15] : memref<36x4xbf16, #tpu.memory_space<vmem>>, vector<36x4xbf16>
    %cst_16 = arith.constant dense<0.000000e+00> : vector<256x4xf32>
    %83 = tpu.matmul %81, %82, %cst_16 {dimension_numbers = #tpu.dot_dimension_numbers<[1], [0], [0], [1], [0, 0, 1, 1], [], []>} : vector<256x36xbf16>, vector<36x4xbf16>, vector<256x4xf32> -> vector<256x4xf32>
    %c0_17 = arith.constant 0 : index
    %c0_18 = arith.constant 0 : index
    %84 = vector.load %arg5[%c0_17, %c0_18] : memref<1x4xf32, #tpu.memory_space<vmem>>, vector<1x4xf32>
    %85 = vector.broadcast %84 : vector<1x4xf32> to vector<256x4xf32>
    %86 = arith.addf %83, %85 : vector<256x4xf32>
    %cst_19 = arith.constant dense<0.000000e+00> : vector<4xf32>
    %87 = vector.multi_reduction <add>, %86, %cst_19 [0] : vector<256x4xf32> to vector<4xf32>
    %88 = vector.shape_cast %87 : vector<4xf32> to vector<1x4xf32>
    %cst_20 = arith.constant 3.906250e-03 : f32
    %89 = vector.broadcast %cst_20 : f32 to vector<1x4xf32>
    %90 = arith.mulf %88, %89 : vector<1x4xf32>
    %91 = arith.mulf %86, %86 : vector<256x4xf32>
    %cst_21 = arith.constant dense<0.000000e+00> : vector<4xf32>
    %92 = vector.multi_reduction <add>, %91, %cst_21 [0] : vector<256x4xf32> to vector<4xf32>
    %93 = vector.shape_cast %92 : vector<4xf32> to vector<1x4xf32>
    %cst_22 = arith.constant 3.906250e-03 : f32
    %94 = vector.broadcast %cst_22 : f32 to vector<1x4xf32>
    %95 = arith.mulf %93, %94 : vector<1x4xf32>
    %96 = arith.mulf %90, %90 : vector<1x4xf32>
    %97 = arith.subf %95, %96 : vector<1x4xf32>
    %cst_23 = arith.constant 0.000000e+00 : f32
    %98 = vector.broadcast %cst_23 : f32 to vector<1x4xf32>
    %99 = arith.maximumf %97, %98 : vector<1x4xf32>
    %100 = vector.broadcast %90 : vector<1x4xf32> to vector<256x4xf32>
    %101 = arith.subf %86, %100 : vector<256x4xf32>
    %cst_24 = arith.constant 9.99999974E-6 : f32
    %102 = vector.broadcast %cst_24 : f32 to vector<1x4xf32>
    %103 = arith.addf %99, %102 : vector<1x4xf32>
    %104 = math.rsqrt %103 : vector<1x4xf32>
    %105 = vector.broadcast %104 : vector<1x4xf32> to vector<256x4xf32>
    %106 = arith.mulf %101, %105 : vector<256x4xf32>
    %107 = vector.shape_cast %1 : vector<16x16x4xf32> to vector<256x4xf32>
    %108 = arith.addf %107, %106 : vector<256x4xf32>
    %109 = vector.shape_cast %108 : vector<256x4xf32> to vector<16x16x4xf32>
    %c0_25 = arith.constant 0 : index
    %c0_26 = arith.constant 0 : index
    %c0_27 = arith.constant 0 : index
    %c0_28 = arith.constant 0 : index
    %110 = vector.load %arg6[%c0_25, %c0_26, %c0_27, %c0_28] : memref<1x16x16x4xf32, #tpu.memory_space<vmem>>, vector<1x16x16x4xf32>
    %111 = vector.shape_cast %110 : vector<1x16x16x4xf32> to vector<16x16x4xf32>
    %112 = vector.shape_cast %109 : vector<16x16x4xf32> to vector<1x16x16x4xf32>
    tpu.vector_store %arg6[%c0_25, %c0_26, %c0_27, %c0_28], %112 {strides = array<i32>} : memref<1x16x16x4xf32, #tpu.memory_space<vmem>>, vector<1x16x16x4xf32>,
    return
  }
  func.func @transform_0(%arg0: i32) -> (i32, i32, i32, i32) {
    %c0_i32 = arith.constant 0 : i32
    %c0_i32_0 = arith.constant 0 : i32
    %c0_i32_1 = arith.constant 0 : i32
    %c0_i32_2 = arith.constant 0 : i32
    return %arg0, %c0_i32, %c0_i32_0, %c0_i32_1 : i32, i32, i32, i32
  }
  func.func @transform_1(%arg0: i32) -> (i32, i32) {
    %c0_i32 = arith.constant 0 : i32
    %c0_i32_0 = arith.constant 0 : i32
    %c0_i32_1 = arith.constant 0 : i32
    return %c0_i32, %c0_i32_0 : i32, i32
  }
  func.func @transform_2(%arg0: i32) -> (i32, i32) {
    %c0_i32 = arith.constant 0 : i32
    %c0_i32_0 = arith.constant 0 : i32
    %c0_i32_1 = arith.constant 0 : i32
    return %c0_i32, %c0_i32_0 : i32, i32
  }
  func.func @transform_3(%arg0: i32) -> (i32, i32) {
    %c0_i32 = arith.constant 0 : i32
    %c0_i32_0 = arith.constant 0 : i32
    %c0_i32_1 = arith.constant 0 : i32
    return %c0_i32, %c0_i32_0 : i32, i32
  }
  func.func @transform_4(%arg0: i32) -> (i32, i32) {
    %c0_i32 = arith.constant 0 : i32
    %c0_i32_0 = arith.constant 0 : i32
    %c0_i32_1 = arith.constant 0 : i32
    return %c0_i32, %c0_i32_0 : i32, i32
  }
  func.func @transform_5(%arg0: i32) -> (i32, i32, i32, i32) {
    %c0_i32 = arith.constant 0 : i32
    %c0_i32_0 = arith.constant 0 : i32
    %c0_i32_1 = arith.constant 0 : i32
    %c0_i32_2 = arith.constant 0 : i32
    return %arg0, %c0_i32, %c0_i32_0, %c0_i32_1 : i32, i32, i32, i32
  }
}

</mosaic_0001>

<llo_original>
// kernel: tpu_custom_call.1
$region0: #{tpu_custom_call.1}
  #allocation0 [shape = 'u32[]', space=smem, size = 0x4, offset = 0x4, fixed_abs, tag = 'smem constant byte address 0x4 - core index']
  #allocation1 [shape = 'u32[144,128]{1,0:T(1,128)}', space=vmem, size = 0x12000, scoped, tag = 'internal scratch']
  %s0 = inlined_call_operand.vmem [shape: f32[2,16,16,4], index: 0, kind: input, shape index: {}]
  %s1 = inlined_call_operand.vmem [shape: bf16[36,4], index: 1, kind: input, shape index: {}]
  %s2 = inlined_call_operand.vmem [shape: f32[1,4], index: 2, kind: input, shape index: {}]
  %s3 = inlined_call_operand.vmem [shape: bf16[36,4], index: 3, kind: input, shape index: {}]
  %s4 = inlined_call_operand.vmem [shape: f32[1,4], index: 4, kind: input, shape index: {}]
  %s5 = inlined_call_operand.vmem [shape: f32[2,16,16,4], index: 5, kind: output, shape index: {}]
  %s6 = sld [smem:[#allocation0]]
  $region53: #{tpu_custom_call.1} parent=0
    _
  %s8 = ssub.s32 1, %s6
  %s9 = scalar_select 0, %s8, %s6
  loop: start=0, step=1, limit=4
  $region2: #{tpu_custom_call.1} parent=0 // loop_pre_header
    _
  $region3: #{tpu_custom_call.1} parent=0 // loop_header
    %s11 = sphi 0, %s15
    %p12 = scmp.ge.s32.totalorder %s11, 4
    %s21 = sphi 0, %s23
    %s24 = sphi 0, %s21
    %s25 = sphi 0, %s24
    %s41 = sphi 0, %s25
    %s45 = sphi 0, %s45
    %s47 = sphi 0, %s45
    %s48 = sphi 0, %s47
    %s62 = sphi 0, %s48
    %s66 = sphi 0, %s66
    %s68 = sphi 0, %s66
    %s69 = sphi 0, %s68
    %s83 = sphi 0, %s69
    %s87 = sphi 0, %s87
    %s89 = sphi 0, %s87
    %s90 = sphi 0, %s89
    %s104 = sphi 0, %s90
    %s108 = sphi 0, %s108
    %s110 = sphi 0, %s108
    %s111 = sphi 0, %s110
    %s125 = sphi 0, %s111
    %s131 = sphi 0, %s133
    %s134 = sphi 0, %s131
    %s135 = sphi 0, %s134
    %s151 = sphi 0, %s135
  $region4: #{tpu_custom_call.1} parent=0 // loop_header_branch
    %14 = sbr.rel (%p12) target = $region8
  $region5: #{tpu_custom_call.1} parent=0 // loop_body
    %s16 = ssub.s32 %s11, 1
    %s17 = ssub.s32 %s11, 2
    %s18 = sadd.s32 %s11, 1
    %s19 = ssub.s32 %s11, %s18
    %p20 = scmp.eq.s32.totalorder %s19, 0
    %s22 = sadd.s32 %s21, 1
    %s23 = scalar_select %p20, %s21, %s22
    %p26 = pneg %p20
    %p27 = scmp.eq.s32.totalorder %s11, 1
    %p28 = por %p26, %p27
    %p29 = scmp.ne.s32.totalorder %s21, %s24
    %p30 = scmp.eq.s32.totalorder %s11, 0
    %p31 = por %p29, %p30
    %p32 = scmp.ne.s32.totalorder %s21, %s24
    %p33 = scmp.eq.s32.totalorder %s16, 1
    %p34 = por %p32, %p33
    %p35 = scmp.ne.s32.totalorder %s24, %s25
    %p36 = scmp.eq.s32.totalorder %s16, 0
    %p37 = por %p35, %p36
    %p38 = scmp.ne.s32.totalorder %s24, %s25
    %p39 = scmp.eq.s32.totalorder %s17, 1
    %p40 = por %p38, %p39
    %p42 = scmp.ne.s32.totalorder %s25, %s41
    %p43 = scmp.eq.s32.totalorder %s17, 0
    %p44 = por %p42, %p43
    %s46 = sadd.s32 %s45, 1
    %p49 = scmp.eq.s32.totalorder %s11, 1
    %p50 = scmp.ne.s32.totalorder %s45, %s47
    %p51 = scmp.eq.s32.totalorder %s11, 0
    %p52 = por %p50, %p51
    %p53 = scmp.ne.s32.totalorder %s45, %s47
    %p54 = scmp.eq.s32.totalorder %s16, 1
    %p55 = por %p53, %p54
    %p56 = scmp.ne.s32.totalorder %s47, %s48
    %p57 = scmp.eq.s32.totalorder %s16, 0
    %p58 = por %p56, %p57
    %p59 = scmp.ne.s32.totalorder %s47, %s48
    %p60 = scmp.eq.s32.totalorder %s17, 1
    %p61 = por %p59, %p60
    %p63 = scmp.ne.s32.totalorder %s48, %s62
    %p64 = scmp.eq.s32.totalorder %s17, 0
    %p65 = por %p63, %p64
    %s67 = sadd.s32 %s66, 1
    %p70 = scmp.eq.s32.totalorder %s11, 1
    %p71 = scmp.ne.s32.totalorder %s66, %s68
    %p72 = scmp.eq.s32.totalorder %s11, 0
    %p73 = por %p71, %p72
    %p74 = scmp.ne.s32.totalorder %s66, %s68
    %p75 = scmp.eq.s32.totalorder %s16, 1
    %p76 = por %p74, %p75
    %p77 = scmp.ne.s32.totalorder %s68, %s69
    %p78 = scmp.eq.s32.totalorder %s16, 0
    %p79 = por %p77, %p78
    %p80 = scmp.ne.s32.totalorder %s68, %s69
    %p81 = scmp.eq.s32.totalorder %s17, 1
    %p82 = por %p80, %p81
    %p84 = scmp.ne.s32.totalorder %s69, %s83
    %p85 = scmp.eq.s32.totalorder %s17, 0
    %p86 = por %p84, %p85
    %s88 = sadd.s32 %s87, 1
    %p91 = scmp.eq.s32.totalorder %s11, 1
    %p92 = scmp.ne.s32.totalorder %s87, %s89
    %p93 = scmp.eq.s32.totalorder %s11, 0
    %p94 = por %p92, %p93
    %p95 = scmp.ne.s32.totalorder %s87, %s89
    %p96 = scmp.eq.s32.totalorder %s16, 1
    %p97 = por %p95, %p96
    %p98 = scmp.ne.s32.totalorder %s89, %s90
    %p99 = scmp.eq.s32.totalorder %s16, 0
    %p100 = por %p98, %p99
    %p101 = scmp.ne.s32.totalorder %s89, %s90
    %p102 = scmp.eq.s32.totalorder %s17, 1
    %p103 = por %p101, %p102
    %p105 = scmp.ne.s32.totalorder %s90, %s104
    %p106 = scmp.eq.s32.totalorder %s17, 0
    %p107 = por %p105, %p106
    %s109 = sadd.s32 %s108, 1
    %p112 = scmp.eq.s32.totalorder %s11, 1
    %p113 = scmp.ne.s32.totalorder %s108, %s110
    %p114 = scmp.eq.s32.totalorder %s11, 0
    %p115 = por %p113, %p114
    %p116 = scmp.ne.s32.totalorder %s108, %s110
    %p117 = scmp.eq.s32.totalorder %s16, 1
    %p118 = por %p116, %p117
    %p119 = scmp.ne.s32.totalorder %s110, %s111
    %p120 = scmp.eq.s32.totalorder %s16, 0
    %p121 = por %p119, %p120
    %p122 = scmp.ne.s32.totalorder %s110, %s111
    %p123 = scmp.eq.s32.totalorder %s17, 1
    %p124 = por %p122, %p123
    %p126 = scmp.ne.s32.totalorder %s111, %s125
    %p127 = scmp.eq.s32.totalorder %s17, 0
    %p128 = por %p126, %p127
    %s129 = ssub.s32 %s11, %s18
    %p130 = scmp.eq.s32.totalorder %s129, 0
    %s132 = sadd.s32 %s131, 1
    %s133 = scalar_select %p130, %s131, %s132
    %p136 = pneg %p130
    %p137 = scmp.eq.s32.totalorder %s11, 1
    %p138 = por %p136, %p137
    %p139 = scmp.ne.s32.totalorder %s131, %s134
    %p140 = scmp.eq.s32.totalorder %s11, 0
    %p141 = por %p139, %p140
    %p142 = scmp.ne.s32.totalorder %s131, %s134
    %p143 = scmp.eq.s32.totalorder %s16, 1
    %p144 = por %p142, %p143
    %p145 = scmp.ne.s32.totalorder %s134, %s135
    %p146 = scmp.eq.s32.totalorder %s16, 0
    %p147 = por %p145, %p146
    %p148 = scmp.ne.s32.totalorder %s134, %s135
    %p149 = scmp.eq.s32.totalorder %s17, 1
    %p150 = por %p148, %p149
    %p152 = scmp.ne.s32.totalorder %s135, %s151
    %p153 = scmp.eq.s32.totalorder %s17, 0
    %p154 = por %p152, %p153
    %p155 = scmp.le.s32.totalorder 1, %s11
    %p156 = scmp.lt.s32.totalorder %s11, 3
    %p157 = pnand %p155, %p156
    %p158 = pneg %p157
    // Predicated region
    $region9: #{tpu_custom_call.1} parent=5 // pred_check
      _
    $region10: #{tpu_custom_call.1} parent=5 // pred_check_branch
      %160 = sbr.rel (%p157) target = $region12
    $region11: #{tpu_custom_call.1} parent=5 // pred_region
      %s161 = ssub.s32 %s11, 1
      // Predicated region
      $region13: #{tpu_custom_call.1} parent=11 // pred_check
        %p162 = pneg %p58
      $region14: #{tpu_custom_call.1} parent=11 // pred_check_branch
        %164 = sbr.rel (%p162) target = $region16
      $region15: #{tpu_custom_call.1} parent=11 // pred_region
        _
      $region16: #{tpu_custom_call.1} parent=11 // pred_fallthru
        _
      // Predicated region
      $region17: #{tpu_custom_call.1} parent=11 // pred_check
        %p165 = pneg %p79
      $region18: #{tpu_custom_call.1} parent=11 // pred_check_branch
        %167 = sbr.rel (%p165) target = $region20
      $region19: #{tpu_custom_call.1} parent=11 // pred_region
        _
      $region20: #{tpu_custom_call.1} parent=11 // pred_fallthru
        _
      // Predicated region
      $region21: #{tpu_custom_call.1} parent=11 // pred_check
        %p168 = pneg %p100
      $region22: #{tpu_custom_call.1} parent=11 // pred_check_branch
        %170 = sbr.rel (%p168) target = $region24
      $region23: #{tpu_custom_call.1} parent=11 // pred_region
        _
      $region24: #{tpu_custom_call.1} parent=11 // pred_fallthru
        _
      // Predicated region
      $region25: #{tpu_custom_call.1} parent=11 // pred_check
        %p171 = pneg %p121
      $region26: #{tpu_custom_call.1} parent=11 // pred_check_branch
        %173 = sbr.rel (%p171) target = $region28
      $region27: #{tpu_custom_call.1} parent=11 // pred_region
        _
      $region28: #{tpu_custom_call.1} parent=11 // pred_fallthru
        _
    $region12: #{tpu_custom_call.1} parent=5 // pred_fallthru
      _
    %p174 = scmp.lt.s32.totalorder %s11, 2
    // Predicated region
    $region29: #{tpu_custom_call.1} parent=5 // pred_check
      %p175 = pneg %p174
    $region30: #{tpu_custom_call.1} parent=5 // pred_check_branch
      %177 = sbr.rel (%p175) target = $region32
    $region31: #{tpu_custom_call.1} parent=5 // pred_region
      // Predicated region
      $region33: #{tpu_custom_call.1} parent=31 // pred_check
        %p178 = pneg %p31
      $region34: #{tpu_custom_call.1} parent=31 // pred_check_branch
        %180 = sbr.rel (%p178) target = $region36
      $region35: #{tpu_custom_call.1} parent=31 // pred_region
        %p181 = scmp.lt.s32.totalorder %s11, 1
        %s182 = scalar_select %p181, %s11, 1
        %s183 = smul.addr %s182, 32
        %s184 = smul.addr %s183, 8
        %s185 = scalar_lea.vmem %s0, %s184
      $region36: #{tpu_custom_call.1} parent=31 // pred_fallthru
        _
    $region32: #{tpu_custom_call.1} parent=5 // pred_fallthru
      _
    %p186 = scmp.le.s32.totalorder 1, %s11
    %p187 = scmp.lt.s32.totalorder %s11, 3
    %p188 = pnand %p186, %p187
    %p189 = pneg %p188
    // Predicated region
    $region37: #{tpu_custom_call.1} parent=5 // pred_check
      _
    $region38: #{tpu_custom_call.1} parent=5 // pred_check_branch
      %191 = sbr.rel (%p188) target = $region40
    $region39: #{tpu_custom_call.1} parent=5 // pred_region
      %s192 = ssub.s32 %s11, 1
      %p193 = scmp.lt.s32.totalorder %s16, 1
      %s194 = scalar_select %p193, %s16, 1
      %s195 = smul.addr %s194, 32
      %s196 = smul.addr %s195, 8
      %s197 = scalar_lea.vmem %s0, %s196
      %p198 = pneg %p37
      %p199 = pneg %p34
      %p200 = pneg %p58
      %p201 = pneg %p55
      %p202 = pneg %p79
      %p203 = pneg %p76
      %p204 = pneg %p100
      %p205 = pneg %p97
      %p206 = pneg %p121
      %p207 = pneg %p118
      %p208 = pneg %p147
      %p209 = pneg %p144
      %p210 = scmp.lt.s32.totalorder %s16, 1
      %s211 = scalar_select %p210, %s16, 1
      %s212 = smul.addr %s211, 32
      %s213 = smul.addr %s212, 8
      %s214 = scalar_lea.vmem %s5, %s213
      %p215 = scmp.lt.s32.totalorder %s16, 1
      %s216 = scalar_select %p215, %s16, 1
      %s217 = smul.addr %s216, 32
      %s218 = smul.addr %s217, 8
      %s219 = scalar_lea.vmem %s0, %s218
      %p220 = scmp.lt.s32.totalorder %s16, 1
      %s221 = scalar_select %p220, %s16, 1
      %s222 = smul.addr %s221, 32
      %s223 = smul.addr %s222, 8
      %s224 = scalar_lea.vmem %s5, %s223
      %v226 = vld [vmem:[%s219] sm:$0xff]
      %v227 = vld [vmem:[%s219 + $0x8] sm:$0xff]
      %v228 = vld [vmem:[%s219 + $0x10] sm:$0xff]
      %v229 = vld [vmem:[%s219 + $0x18] sm:$0xff]
      %v230 = vld [vmem:[%s219 + $0x20] sm:$0xff]
      %v231 = vld [vmem:[%s219 + $0x28] sm:$0xff]
      %v232 = vld [vmem:[%s219 + $0x30] sm:$0xff]
      %v233 = vld [vmem:[%s219 + $0x38] sm:$0xff]
      %v234 = vld [vmem:[%s219 + $0x40] sm:$0xff]
      %v235 = vld [vmem:[%s219 + $0x48] sm:$0xff]
      %v236 = vld [vmem:[%s219 + $0x50] sm:$0xff]
      %v237 = vld [vmem:[%s219 + $0x58] sm:$0xff]
      %v238 = vld [vmem:[%s219 + $0x60] sm:$0xff]
      %v239 = vld [vmem:[%s219 + $0x68] sm:$0xff]
      %v240 = vld [vmem:[%s219 + $0x70] sm:$0xff]
      %v241 = vld [vmem:[%s219 + $0x78] sm:$0xff]
      %v242 = vld [vmem:[%s219 + $0x80] sm:$0xff]
      %v243 = vld [vmem:[%s219 + $0x88] sm:$0xff]
      %v244 = vld [vmem:[%s219 + $0x90] sm:$0xff]
      %v245 = vld [vmem:[%s219 + $0x98] sm:$0xff]
      %v246 = vld [vmem:[%s219 + $0xa0] sm:$0xff]
      %v247 = vld [vmem:[%s219 + $0xa8] sm:$0xff]
      %v248 = vld [vmem:[%s219 + $0xb0] sm:$0xff]
      %v249 = vld [vmem:[%s219 + $0xb8] sm:$0xff]
      %v250 = vld [vmem:[%s219 + $0xc0] sm:$0xff]
      %v251 = vld [vmem:[%s219 + $0xc8] sm:$0xff]
      %v252 = vld [vmem:[%s219 + $0xd0] sm:$0xff]
      %v253 = vld [vmem:[%s219 + $0xd8] sm:$0xff]
      %v254 = vld [vmem:[%s219 + $0xe0] sm:$0xff]
      %v255 = vld [vmem:[%s219 + $0xe8] sm:$0xff]
      %v256 = vld [vmem:[%s219 + $0xf0] sm:$0xff]
      %v257 = vld [vmem:[%s219 + $0xf8] sm:$0xff]
      %v274 = vrot.slane %v228, 1
      %v275 = vrot.slane %v226, 1
      %v276 = vrot.slane %v230, 1
      %v277 = vrot.slane %v232, 1
      %v278 = vrot.slane %v234, 1
      %v279 = vrot.slane %v236, 1
      %v280 = vrot.slane %v238, 1
      %v281 = vrot.slane %v240, 1
      %v282 = vrot.slane %v242, 1
      %v283 = vrot.slane %v244, 1
      %v284 = vrot.slane %v246, 1
      %v285 = vrot.slane %v248, 1
      %v286 = vrot.slane %v250, 1
      %v287 = vrot.slane %v252, 1
      %v288 = vrot.slane %v254, 1
      %v289 = vrot.slane %v256, 1
      %vm322 = vcmask 1040384
      %v323 = vrot.slane %v228, 7
      %v324 = vrot.slane %v229, 7
      %v325 = vsel %vm322, %v323, %v324
      %v326 = vrot.slane %v226, 7
      %v327 = vrot.slane %v227, 7
      %v328 = vsel %vm322, %v326, %v327
      %v329 = vrot.slane %v230, 7
      %v330 = vrot.slane %v231, 7
      %v331 = vsel %vm322, %v329, %v330
      %v332 = vrot.slane %v232, 7
      %v333 = vrot.slane %v233, 7
      %v334 = vsel %vm322, %v332, %v333
      %v335 = vrot.slane %v234, 7
      %v336 = vrot.slane %v235, 7
      %v337 = vsel %vm322, %v335, %v336
      %v338 = vrot.slane %v236, 7
      %v339 = vrot.slane %v237, 7
      %v340 = vsel %vm322, %v338, %v339
      %v341 = vrot.slane %v238, 7
      %v342 = vrot.slane %v239, 7
      %v343 = vsel %vm322, %v341, %v342
      %v344 = vrot.slane %v240, 7
      %v345 = vrot.slane %v241, 7
      %v346 = vsel %vm322, %v344, %v345
      %v347 = vrot.slane %v242, 7
      %v348 = vrot.slane %v243, 7
      %v349 = vsel %vm322, %v347, %v348
      %v350 = vrot.slane %v244, 7
      %v351 = vrot.slane %v245, 7
      %v352 = vsel %vm322, %v350, %v351
      %v353 = vrot.slane %v246, 7
      %v354 = vrot.slane %v247, 7
      %v355 = vsel %vm322, %v353, %v354
      %v356 = vrot.slane %v248, 7
      %v357 = vrot.slane %v249, 7
      %v358 = vsel %vm322, %v356, %v357
      %v359 = vrot.slane %v250, 7
      %v360 = vrot.slane %v251, 7
      %v361 = vsel %vm322, %v359, %v360
      %v362 = vrot.slane %v252, 7
      %v363 = vrot.slane %v253, 7
      %v364 = vsel %vm322, %v362, %v363
      %v365 = vrot.slane %v254, 7
      %v366 = vrot.slane %v255, 7
      %v367 = vsel %vm322, %v365, %v366
      %v368 = vrot.slane %v256, 7
      %v369 = vrot.slane %v257, 7
      %v370 = vsel %vm322, %v368, %v369
      %v418 = vrot.slane %v229, 5
      %v419 = vrot.slane %v227, 5
      %v420 = vrot.slane %v231, 5
      %v421 = vrot.slane %v233, 5
      %v422 = vrot.slane %v235, 5
      %v423 = vrot.slane %v237, 5
      %v424 = vrot.slane %v239, 5
      %v425 = vrot.slane %v241, 5
      %v426 = vrot.slane %v243, 5
      %v427 = vrot.slane %v245, 5
      %v428 = vrot.slane %v247, 5
      %v429 = vrot.slane %v249, 5
      %v430 = vrot.slane %v251, 5
      %v431 = vrot.slane %v253, 5
      %v432 = vrot.slane %v255, 5
      %v433 = vrot.slane %v257, 5
      %v450 = vsel %vm322, %v274, %v323
      %v451 = vsel %vm322, %v275, %v326
      %v452 = vsel %vm322, %v276, %v329
      %v453 = vsel %vm322, %v277, %v332
      %v454 = vsel %vm322, %v278, %v335
      %v455 = vsel %vm322, %v279, %v338
      %v456 = vsel %vm322, %v280, %v341
      %v457 = vsel %vm322, %v281, %v344
      %v458 = vsel %vm322, %v282, %v347
      %v459 = vsel %vm322, %v283, %v350
      %v460 = vsel %vm322, %v284, %v353
      %v461 = vsel %vm322, %v285, %v356
      %v462 = vsel %vm322, %v286, %v359
      %v463 = vsel %vm322, %v287, %v362
      %v464 = vsel %vm322, %v288, %v365
      %v465 = vsel %vm322, %v289, %v368
      %v466 = vsel %vm322, %v324, %v418
      %v467 = vsel %vm322, %v327, %v419
      %v468 = vsel %vm322, %v330, %v420
      %v469 = vsel %vm322, %v333, %v421
      %v470 = vsel %vm322, %v336, %v422
      %v471 = vsel %vm322, %v339, %v423
      %v472 = vsel %vm322, %v342, %v424
      %v473 = vsel %vm322, %v345, %v425
      %v474 = vsel %vm322, %v348, %v426
      %v475 = vsel %vm322, %v351, %v427
      %v476 = vsel %vm322, %v354, %v428
      %v477 = vsel %vm322, %v357, %v429
      %v478 = vsel %vm322, %v360, %v430
      %v479 = vsel %vm322, %v363, %v431
      %v480 = vsel %vm322, %v366, %v432
      %v481 = vsel %vm322, %v369, %v433
      %vm512 = vcmask 1046528
      %v513 = vrot.slane %v450, 1
      %v514 = vrot.slane %v325, 1
      %v515 = vsel %vm512, %v513, %v514
      %v516 = vrot.slane %v466, 1
      %v517 = vsel %vm512, %v514, %v516
      %v518 = vrot.slane %v451, 1
      %v519 = vrot.slane %v328, 1
      %v520 = vsel %vm512, %v518, %v519
      %v521 = vrot.slane %v467, 1
      %v522 = vsel %vm512, %v519, %v521
      %v523 = vrot.slane %v452, 1
      %v524 = vrot.slane %v331, 1
      %v525 = vsel %vm512, %v523, %v524
      %v526 = vrot.slane %v468, 1
      %v527 = vsel %vm512, %v524, %v526
      %v528 = vrot.slane %v453, 1
      %v529 = vrot.slane %v334, 1
      %v530 = vsel %vm512, %v528, %v529
      %v531 = vrot.slane %v469, 1
      %v532 = vsel %vm512, %v529, %v531
      %v533 = vrot.slane %v454, 1
      %v534 = vrot.slane %v337, 1
      %v535 = vsel %vm512, %v533, %v534
      %v536 = vrot.slane %v470, 1
      %v537 = vsel %vm512, %v534, %v536
      %v538 = vrot.slane %v455, 1
      %v539 = vrot.slane %v340, 1
      %v540 = vsel %vm512, %v538, %v539
      %v541 = vrot.slane %v471, 1
      %v542 = vsel %vm512, %v539, %v541
      %v543 = vrot.slane %v456, 1
      %v544 = vrot.slane %v343, 1
      %v545 = vsel %vm512, %v543, %v544
      %v546 = vrot.slane %v472, 1
      %v547 = vsel %vm512, %v544, %v546
      %v548 = vrot.slane %v457, 1
      %v549 = vrot.slane %v346, 1
      %v550 = vsel %vm512, %v548, %v549
      %v551 = vrot.slane %v473, 1
      %v552 = vsel %vm512, %v549, %v551
      %v553 = vrot.slane %v458, 1
      %v554 = vrot.slane %v349, 1
      %v555 = vsel %vm512, %v553, %v554
      %v556 = vrot.slane %v474, 1
      %v557 = vsel %vm512, %v554, %v556
      %v558 = vrot.slane %v459, 1
      %v559 = vrot.slane %v352, 1
      %v560 = vsel %vm512, %v558, %v559
      %v561 = vrot.slane %v475, 1
      %v562 = vsel %vm512, %v559, %v561
      %v563 = vrot.slane %v460, 1
      %v564 = vrot.slane %v355, 1
      %v565 = vsel %vm512, %v563, %v564
      %v566 = vrot.slane %v476, 1
      %v567 = vsel %vm512, %v564, %v566
      %v568 = vrot.slane %v461, 1
      %v569 = vrot.slane %v358, 1
      %v570 = vsel %vm512, %v568, %v569
      %v571 = vrot.slane %v477, 1
      %v572 = vsel %vm512, %v569, %v571
      %v573 = vrot.slane %v462, 1
      %v574 = vrot.slane %v361, 1
      %v575 = vsel %vm512, %v573, %v574
      %v576 = vrot.slane %v478, 1
      %v577 = vsel %vm512, %v574, %v576
      %v578 = vrot.slane %v463, 1
      %v579 = vrot.slane %v364, 1
      %v580 = vsel %vm512, %v578, %v579
      %v581 = vrot.slane %v479, 1
      %v582 = vsel %vm512, %v579, %v581
      %v583 = vrot.slane %v464, 1
      %v584 = vrot.slane %v367, 1
      %v585 = vsel %vm512, %v583, %v584
      %v586 = vrot.slane %v480, 1
      %v587 = vsel %vm512, %v584, %v586
      %vm588 = vcmask 1045504
      %v589 = vrot.slane %v450, 2
      %v590 = vrot.slane %v325, 2
      %v591 = vsel %vm588, %v589, %v590
      %v592 = vrot.slane %v466, 2
      %v593 = vsel %vm588, %v590, %v592
      %v594 = vrot.slane %v451, 2
      %v595 = vrot.slane %v328, 2
      %v596 = vsel %vm588, %v594, %v595
      %v597 = vrot.slane %v467, 2
      %v598 = vsel %vm588, %v595, %v597
      %v599 = vrot.slane %v452, 2
      %v600 = vrot.slane %v331, 2
      %v601 = vsel %vm588, %v599, %v600
      %v602 = vrot.slane %v468, 2
      %v603 = vsel %vm588, %v600, %v602
      %v604 = vrot.slane %v453, 2
      %v605 = vrot.slane %v334, 2
      %v606 = vsel %vm588, %v604, %v605
      %v607 = vrot.slane %v469, 2
      %v608 = vsel %vm588, %v605, %v607
      %v609 = vrot.slane %v454, 2
      %v610 = vrot.slane %v337, 2
      %v611 = vsel %vm588, %v609, %v610
      %v612 = vrot.slane %v470, 2
      %v613 = vsel %vm588, %v610, %v612
      %v614 = vrot.slane %v455, 2
      %v615 = vrot.slane %v340, 2
      %v616 = vsel %vm588, %v614, %v615
      %v617 = vrot.slane %v471, 2
      %v618 = vsel %vm588, %v615, %v617
      %v619 = vrot.slane %v456, 2
      %v620 = vrot.slane %v343, 2
      %v621 = vsel %vm588, %v619, %v620
      %v622 = vrot.slane %v472, 2
      %v623 = vsel %vm588, %v620, %v622
      %v624 = vrot.slane %v457, 2
      %v625 = vrot.slane %v346, 2
      %v626 = vsel %vm588, %v624, %v625
      %v627 = vrot.slane %v473, 2
      %v628 = vsel %vm588, %v625, %v627
      %v629 = vrot.slane %v458, 2
      %v630 = vrot.slane %v349, 2
      %v631 = vsel %vm588, %v629, %v630
      %v632 = vrot.slane %v474, 2
      %v633 = vsel %vm588, %v630, %v632
      %v634 = vrot.slane %v459, 2
      %v635 = vrot.slane %v352, 2
      %v636 = vsel %vm588, %v634, %v635
      %v637 = vrot.slane %v475, 2
      %v638 = vsel %vm588, %v635, %v637
      %v639 = vrot.slane %v460, 2
      %v640 = vrot.slane %v355, 2
      %v641 = vsel %vm588, %v639, %v640
      %v642 = vrot.slane %v476, 2
      %v643 = vsel %vm588, %v640, %v642
      %v644 = vrot.slane %v461, 2
      %v645 = vrot.slane %v358, 2
      %v646 = vsel %vm588, %v644, %v645
      %v647 = vrot.slane %v477, 2
      %v648 = vsel %vm588, %v645, %v647
      %v649 = vrot.slane %v462, 2
      %v650 = vrot.slane %v361, 2
      %v651 = vsel %vm588, %v649, %v650
      %v652 = vrot.slane %v478, 2
      %v653 = vsel %vm588, %v650, %v652
      %v654 = vrot.slane %v463, 2
      %v655 = vrot.slane %v364, 2
      %v656 = vsel %vm588, %v654, %v655
      %v657 = vrot.slane %v479, 2
      %v658 = vsel %vm588, %v655, %v657
      %v659 = vrot.slane %v464, 2
      %v660 = vrot.slane %v367, 2
      %v661 = vsel %vm588, %v659, %v660
      %v662 = vrot.slane %v480, 2
      %v663 = vsel %vm588, %v660, %v662
      %v666 = vrot.slane %v465, 1
      %v667 = vrot.slane %v370, 1
      %v668 = vsel %vm512, %v666, %v667
      %v669 = vrot.slane %v481, 1
      %v670 = vsel %vm512, %v667, %v669
      %v671 = vrot.slane %v465, 2
      %v672 = vrot.slane %v370, 2
      %v673 = vsel %vm588, %v671, %v672
      %v674 = vrot.slane %v481, 2
      %v675 = vsel %vm588, %v672, %v674
      %676 = vrot.lane.b32.xlu0 %v515, 4
      %v677 = vpop.permute.xlu0 %676
      %678 = vrot.lane.b32.xlu0 %v517, 4
      %v679 = vpop.permute.xlu0 %678
      %680 = vrot.lane.b32.xlu0 %v520, 4
      %v681 = vpop.permute.xlu0 %680
      %682 = vrot.lane.b32.xlu0 %v522, 4
      %v683 = vpop.permute.xlu0 %682
      %684 = vrot.lane.b32.xlu0 %v525, 4
      %v685 = vpop.permute.xlu0 %684
      %686 = vrot.lane.b32.xlu0 %v527, 4
      %v687 = vpop.permute.xlu0 %686
      %688 = vrot.lane.b32.xlu0 %v530, 4
      %v689 = vpop.permute.xlu0 %688
      %690 = vrot.lane.b32.xlu0 %v532, 4
      %v691 = vpop.permute.xlu0 %690
      %692 = vrot.lane.b32.xlu0 %v535, 4
      %v693 = vpop.permute.xlu0 %692
      %694 = vrot.lane.b32.xlu0 %v537, 4
      %v695 = vpop.permute.xlu0 %694
      %696 = vrot.lane.b32.xlu0 %v540, 4
      %v697 = vpop.permute.xlu0 %696
      %698 = vrot.lane.b32.xlu0 %v542, 4
      %v699 = vpop.permute.xlu0 %698
      %700 = vrot.lane.b32.xlu0 %v545, 4
      %v701 = vpop.permute.xlu0 %700
      %702 = vrot.lane.b32.xlu0 %v547, 4
      %v703 = vpop.permute.xlu0 %702
      %704 = vrot.lane.b32.xlu0 %v550, 4
      %v705 = vpop.permute.xlu0 %704
      %706 = vrot.lane.b32.xlu0 %v552, 4
      %v707 = vpop.permute.xlu0 %706
      %708 = vrot.lane.b32.xlu0 %v555, 4
      %v709 = vpop.permute.xlu0 %708
      %710 = vrot.lane.b32.xlu0 %v557, 4
      %v711 = vpop.permute.xlu0 %710
      %712 = vrot.lane.b32.xlu0 %v560, 4
      %v713 = vpop.permute.xlu0 %712
      %714 = vrot.lane.b32.xlu0 %v562, 4
      %v715 = vpop.permute.xlu0 %714
      %716 = vrot.lane.b32.xlu0 %v565, 4
      %v717 = vpop.permute.xlu0 %716
      %718 = vrot.lane.b32.xlu0 %v567, 4
      %v719 = vpop.permute.xlu0 %718
      %720 = vrot.lane.b32.xlu0 %v570, 4
      %v721 = vpop.permute.xlu0 %720
      %722 = vrot.lane.b32.xlu0 %v572, 4
      %v723 = vpop.permute.xlu0 %722
      %724 = vrot.lane.b32.xlu0 %v575, 4
      %v725 = vpop.permute.xlu0 %724
      %726 = vrot.lane.b32.xlu0 %v577, 4
      %v727 = vpop.permute.xlu0 %726
      %728 = vrot.lane.b32.xlu0 %v580, 4
      %v729 = vpop.permute.xlu0 %728
      %730 = vrot.lane.b32.xlu0 %v582, 4
      %v731 = vpop.permute.xlu0 %730
      %732 = vrot.lane.b32.xlu0 %v585, 4
      %v733 = vpop.permute.xlu0 %732
      %734 = vrot.lane.b32.xlu0 %v587, 4
      %v735 = vpop.permute.xlu0 %734
      %766 = vrot.lane.b32.xlu0 %v591, 8
      %v767 = vpop.permute.xlu0 %766
      %768 = vrot.lane.b32.xlu0 %v593, 8
      %v769 = vpop.permute.xlu0 %768
      %770 = vrot.lane.b32.xlu0 %v596, 8
      %v771 = vpop.permute.xlu0 %770
      %772 = vrot.lane.b32.xlu0 %v598, 8
      %v773 = vpop.permute.xlu0 %772
      %774 = vrot.lane.b32.xlu0 %v601, 8
      %v775 = vpop.permute.xlu0 %774
      %776 = vrot.lane.b32.xlu0 %v603, 8
      %v777 = vpop.permute.xlu0 %776
      %778 = vrot.lane.b32.xlu0 %v606, 8
      %v779 = vpop.permute.xlu0 %778
      %780 = vrot.lane.b32.xlu0 %v608, 8
      %v781 = vpop.permute.xlu0 %780
      %782 = vrot.lane.b32.xlu0 %v611, 8
      %v783 = vpop.permute.xlu0 %782
      %784 = vrot.lane.b32.xlu0 %v613, 8
      %v785 = vpop.permute.xlu0 %784
      %786 = vrot.lane.b32.xlu0 %v616, 8
      %v787 = vpop.permute.xlu0 %786
      %788 = vrot.lane.b32.xlu0 %v618, 8
      %v789 = vpop.permute.xlu0 %788
      %790 = vrot.lane.b32.xlu0 %v621, 8
      %v791 = vpop.permute.xlu0 %790
      %792 = vrot.lane.b32.xlu0 %v623, 8
      %v793 = vpop.permute.xlu0 %792
      %794 = vrot.lane.b32.xlu0 %v626, 8
      %v795 = vpop.permute.xlu0 %794
      %796 = vrot.lane.b32.xlu0 %v628, 8
      %v797 = vpop.permute.xlu0 %796
      %798 = vrot.lane.b32.xlu0 %v631, 8
      %v799 = vpop.permute.xlu0 %798
      %800 = vrot.lane.b32.xlu0 %v633, 8
      %v801 = vpop.permute.xlu0 %800
      %802 = vrot.lane.b32.xlu0 %v636, 8
      %v803 = vpop.permute.xlu0 %802
      %804 = vrot.lane.b32.xlu0 %v638, 8
      %v805 = vpop.permute.xlu0 %804
      %806 = vrot.lane.b32.xlu0 %v641, 8
      %v807 = vpop.permute.xlu0 %806
      %808 = vrot.lane.b32.xlu0 %v643, 8
      %v809 = vpop.permute.xlu0 %808
      %810 = vrot.lane.b32.xlu0 %v646, 8
      %v811 = vpop.permute.xlu0 %810
      %812 = vrot.lane.b32.xlu0 %v648, 8
      %v813 = vpop.permute.xlu0 %812
      %814 = vrot.lane.b32.xlu0 %v651, 8
      %v815 = vpop.permute.xlu0 %814
      %816 = vrot.lane.b32.xlu0 %v653, 8
      %v817 = vpop.permute.xlu0 %816
      %818 = vrot.lane.b32.xlu0 %v656, 8
      %v819 = vpop.permute.xlu0 %818
      %820 = vrot.lane.b32.xlu0 %v658, 8
      %v821 = vpop.permute.xlu0 %820
      %822 = vrot.lane.b32.xlu0 %v661, 8
      %v823 = vpop.permute.xlu0 %822
      %824 = vrot.lane.b32.xlu0 %v663, 8
      %v825 = vpop.permute.xlu0 %824
      %856 = vrot.lane.b32.xlu0 %v451, 12
      %v857 = vpop.permute.xlu0 %856
      %858 = vrot.lane.b32.xlu0 %v328, 12
      %v859 = vpop.permute.xlu0 %858
      %860 = vrot.lane.b32.xlu0 %v450, 12
      %v861 = vpop.permute.xlu0 %860
      %862 = vrot.lane.b32.xlu0 %v325, 12
      %v863 = vpop.permute.xlu0 %862
      %864 = vrot.lane.b32.xlu0 %v452, 12
      %v865 = vpop.permute.xlu0 %864
      %866 = vrot.lane.b32.xlu0 %v331, 12
      %v867 = vpop.permute.xlu0 %866
      %868 = vrot.lane.b32.xlu0 %v453, 12
      %v869 = vpop.permute.xlu0 %868
      %870 = vrot.lane.b32.xlu0 %v334, 12
      %v871 = vpop.permute.xlu0 %870
      %872 = vrot.lane.b32.xlu0 %v454, 12
      %v873 = vpop.permute.xlu0 %872
      %874 = vrot.lane.b32.xlu0 %v337, 12
      %v875 = vpop.permute.xlu0 %874
      %876 = vrot.lane.b32.xlu0 %v455, 12
      %v877 = vpop.permute.xlu0 %876
      %878 = vrot.lane.b32.xlu0 %v340, 12
      %v879 = vpop.permute.xlu0 %878
      %880 = vrot.lane.b32.xlu0 %v456, 12
      %v881 = vpop.permute.xlu0 %880
      %882 = vrot.lane.b32.xlu0 %v343, 12
      %v883 = vpop.permute.xlu0 %882
      %884 = vrot.lane.b32.xlu0 %v457, 12
      %v885 = vpop.permute.xlu0 %884
      %886 = vrot.lane.b32.xlu0 %v346, 12
      %v887 = vpop.permute.xlu0 %886
      %888 = vrot.lane.b32.xlu0 %v458, 12
      %v889 = vpop.permute.xlu0 %888
      %890 = vrot.lane.b32.xlu0 %v349, 12
      %v891 = vpop.permute.xlu0 %890
      %892 = vrot.lane.b32.xlu0 %v459, 12
      %v893 = vpop.permute.xlu0 %892
      %894 = vrot.lane.b32.xlu0 %v352, 12
      %v895 = vpop.permute.xlu0 %894
      %896 = vrot.lane.b32.xlu0 %v460, 12
      %v897 = vpop.permute.xlu0 %896
      %898 = vrot.lane.b32.xlu0 %v355, 12
      %v899 = vpop.permute.xlu0 %898
      %900 = vrot.lane.b32.xlu0 %v461, 12
      %v901 = vpop.permute.xlu0 %900
      %902 = vrot.lane.b32.xlu0 %v358, 12
      %v903 = vpop.permute.xlu0 %902
      %904 = vrot.lane.b32.xlu0 %v462, 12
      %v905 = vpop.permute.xlu0 %904
      %906 = vrot.lane.b32.xlu0 %v361, 12
      %v907 = vpop.permute.xlu0 %906
      %908 = vrot.lane.b32.xlu0 %v463, 12
      %v909 = vpop.permute.xlu0 %908
      %910 = vrot.lane.b32.xlu0 %v364, 12
      %v911 = vpop.permute.xlu0 %910
      %912 = vrot.lane.b32.xlu0 %v464, 12
      %v913 = vpop.permute.xlu0 %912
      %914 = vrot.lane.b32.xlu0 %v367, 12
      %v915 = vpop.permute.xlu0 %914
      %916 = vrot.lane.b32.xlu0 %v465, 12
      %v917 = vpop.permute.xlu0 %916
      %918 = vrot.lane.b32.xlu0 %v370, 12
      %v919 = vpop.permute.xlu0 %918
      %952 = vrot.lane.b32.xlu0 %v520, 16
      %v953 = vpop.permute.xlu0 %952
      %954 = vrot.lane.b32.xlu0 %v522, 16
      %v955 = vpop.permute.xlu0 %954
      %956 = vrot.lane.b32.xlu0 %v515, 16
      %v957 = vpop.permute.xlu0 %956
      %958 = vrot.lane.b32.xlu0 %v517, 16
      %v959 = vpop.permute.xlu0 %958
      %960 = vrot.lane.b32.xlu0 %v525, 16
      %v961 = vpop.permute.xlu0 %960
      %962 = vrot.lane.b32.xlu0 %v527, 16
      %v963 = vpop.permute.xlu0 %962
      %964 = vrot.lane.b32.xlu0 %v530, 16
      %v965 = vpop.permute.xlu0 %964
      %966 = vrot.lane.b32.xlu0 %v532, 16
      %v967 = vpop.permute.xlu0 %966
      %968 = vrot.lane.b32.xlu0 %v535, 16
      %v969 = vpop.permute.xlu0 %968
      %970 = vrot.lane.b32.xlu0 %v537, 16
      %v971 = vpop.permute.xlu0 %970
      %972 = vrot.lane.b32.xlu0 %v540, 16
      %v973 = vpop.permute.xlu0 %972
      %974 = vrot.lane.b32.xlu0 %v542, 16
      %v975 = vpop.permute.xlu0 %974
      %976 = vrot.lane.b32.xlu0 %v545, 16
      %v977 = vpop.permute.xlu0 %976
      %978 = vrot.lane.b32.xlu0 %v547, 16
      %v979 = vpop.permute.xlu0 %978
      %980 = vrot.lane.b32.xlu0 %v550, 16
      %v981 = vpop.permute.xlu0 %980
      %982 = vrot.lane.b32.xlu0 %v552, 16
      %v983 = vpop.permute.xlu0 %982
      %984 = vrot.lane.b32.xlu0 %v555, 16
      %v985 = vpop.permute.xlu0 %984
      %986 = vrot.lane.b32.xlu0 %v557, 16
      %v987 = vpop.permute.xlu0 %986
      %988 = vrot.lane.b32.xlu0 %v560, 16
      %v989 = vpop.permute.xlu0 %988
      %990 = vrot.lane.b32.xlu0 %v562, 16
      %v991 = vpop.permute.xlu0 %990
      %992 = vrot.lane.b32.xlu0 %v565, 16
      %v993 = vpop.permute.xlu0 %992
      %994 = vrot.lane.b32.xlu0 %v567, 16
      %v995 = vpop.permute.xlu0 %994
      %996 = vrot.lane.b32.xlu0 %v570, 16
      %v997 = vpop.permute.xlu0 %996
      %998 = vrot.lane.b32.xlu0 %v572, 16
      %v999 = vpop.permute.xlu0 %998
      %1000 = vrot.lane.b32.xlu0 %v575, 16
      %v1001 = vpop.permute.xlu0 %1000
      %1002 = vrot.lane.b32.xlu0 %v577, 16
      %v1003 = vpop.permute.xlu0 %1002
      %1004 = vrot.lane.b32.xlu0 %v580, 16
      %v1005 = vpop.permute.xlu0 %1004
      %1006 = vrot.lane.b32.xlu0 %v582, 16
      %v1007 = vpop.permute.xlu0 %1006
      %1008 = vrot.lane.b32.xlu0 %v585, 16
      %v1009 = vpop.permute.xlu0 %1008
      %1010 = vrot.lane.b32.xlu0 %v587, 16
      %v1011 = vpop.permute.xlu0 %1010
      %1012 = vrot.lane.b32.xlu0 %v668, 16
      %v1013 = vpop.permute.xlu0 %1012
      %1014 = vrot.lane.b32.xlu0 %v670, 16
      %v1015 = vpop.permute.xlu0 %1014
      %1048 = vrot.lane.b32.xlu0 %v596, 20
      %v1049 = vpop.permute.xlu0 %1048
      %1050 = vrot.lane.b32.xlu0 %v598, 20
      %v1051 = vpop.permute.xlu0 %1050
      %1052 = vrot.lane.b32.xlu0 %v591, 20
      %v1053 = vpop.permute.xlu0 %1052
      %1054 = vrot.lane.b32.xlu0 %v593, 20
      %v1055 = vpop.permute.xlu0 %1054
      %1056 = vrot.lane.b32.xlu0 %v601, 20
      %v1057 = vpop.permute.xlu0 %1056
      %1058 = vrot.lane.b32.xlu0 %v603, 20
      %v1059 = vpop.permute.xlu0 %1058
      %1060 = vrot.lane.b32.xlu0 %v606, 20
      %v1061 = vpop.permute.xlu0 %1060
      %1062 = vrot.lane.b32.xlu0 %v608, 20
      %v1063 = vpop.permute.xlu0 %1062
      %1064 = vrot.lane.b32.xlu0 %v611, 20
      %v1065 = vpop.permute.xlu0 %1064
      %1066 = vrot.lane.b32.xlu0 %v613, 20
      %v1067 = vpop.permute.xlu0 %1066
      %1068 = vrot.lane.b32.xlu0 %v616, 20
      %v1069 = vpop.permute.xlu0 %1068
      %1070 = vrot.lane.b32.xlu0 %v618, 20
      %v1071 = vpop.permute.xlu0 %1070
      %1072 = vrot.lane.b32.xlu0 %v621, 20
      %v1073 = vpop.permute.xlu0 %1072
      %1074 = vrot.lane.b32.xlu0 %v623, 20
      %v1075 = vpop.permute.xlu0 %1074
      %1076 = vrot.lane.b32.xlu0 %v626, 20
      %v1077 = vpop.permute.xlu0 %1076
      %1078 = vrot.lane.b32.xlu0 %v628, 20
      %v1079 = vpop.permute.xlu0 %1078
      %1080 = vrot.lane.b32.xlu0 %v631, 20
      %v1081 = vpop.permute.xlu0 %1080
      %1082 = vrot.lane.b32.xlu0 %v633, 20
      %v1083 = vpop.permute.xlu0 %1082
      %1084 = vrot.lane.b32.xlu0 %v636, 20
      %v1085 = vpop.permute.xlu0 %1084
      %1086 = vrot.lane.b32.xlu0 %v638, 20
      %v1087 = vpop.permute.xlu0 %1086
      %1088 = vrot.lane.b32.xlu0 %v641, 20
      %v1089 = vpop.permute.xlu0 %1088
      %1090 = vrot.lane.b32.xlu0 %v643, 20
      %v1091 = vpop.permute.xlu0 %1090
      %1092 = vrot.lane.b32.xlu0 %v646, 20
      %v1093 = vpop.permute.xlu0 %1092
      %1094 = vrot.lane.b32.xlu0 %v648, 20
      %v1095 = vpop.permute.xlu0 %1094
      %1096 = vrot.lane.b32.xlu0 %v651, 20
      %v1097 = vpop.permute.xlu0 %1096
      %1098 = vrot.lane.b32.xlu0 %v653, 20
      %v1099 = vpop.permute.xlu0 %1098
      %1100 = vrot.lane.b32.xlu0 %v656, 20
      %v1101 = vpop.permute.xlu0 %1100
      %1102 = vrot.lane.b32.xlu0 %v658, 20
      %v1103 = vpop.permute.xlu0 %1102
      %1104 = vrot.lane.b32.xlu0 %v661, 20
      %v1105 = vpop.permute.xlu0 %1104
      %1106 = vrot.lane.b32.xlu0 %v663, 20
      %v1107 = vpop.permute.xlu0 %1106
      %1108 = vrot.lane.b32.xlu0 %v673, 20
      %v1109 = vpop.permute.xlu0 %1108
      %1110 = vrot.lane.b32.xlu0 %v675, 20
      %v1111 = vpop.permute.xlu0 %1110
      %1144 = vrot.lane.b32.xlu0 %v450, 24
      %v1145 = vpop.permute.xlu0 %1144
      %1146 = vrot.lane.b32.xlu0 %v325, 24
      %v1147 = vpop.permute.xlu0 %1146
      %1148 = vrot.lane.b32.xlu0 %v452, 24
      %v1149 = vpop.permute.xlu0 %1148
      %1150 = vrot.lane.b32.xlu0 %v331, 24
      %v1151 = vpop.permute.xlu0 %1150
      %1152 = vrot.lane.b32.xlu0 %v453, 24
      %v1153 = vpop.permute.xlu0 %1152
      %1154 = vrot.lane.b32.xlu0 %v334, 24
      %v1155 = vpop.permute.xlu0 %1154
      %1156 = vrot.lane.b32.xlu0 %v454, 24
      %v1157 = vpop.permute.xlu0 %1156
      %1158 = vrot.lane.b32.xlu0 %v337, 24
      %v1159 = vpop.permute.xlu0 %1158
      %1160 = vrot.lane.b32.xlu0 %v455, 24
      %v1161 = vpop.permute.xlu0 %1160
      %1162 = vrot.lane.b32.xlu0 %v340, 24
      %v1163 = vpop.permute.xlu0 %1162
      %1164 = vrot.lane.b32.xlu0 %v456, 24
      %v1165 = vpop.permute.xlu0 %1164
      %1166 = vrot.lane.b32.xlu0 %v343, 24
      %v1167 = vpop.permute.xlu0 %1166
      %1168 = vrot.lane.b32.xlu0 %v457, 24
      %v1169 = vpop.permute.xlu0 %1168
      %1170 = vrot.lane.b32.xlu0 %v346, 24
      %v1171 = vpop.permute.xlu0 %1170
      %1172 = vrot.lane.b32.xlu0 %v458, 24
      %v1173 = vpop.permute.xlu0 %1172
      %1174 = vrot.lane.b32.xlu0 %v349, 24
      %v1175 = vpop.permute.xlu0 %1174
      %1176 = vrot.lane.b32.xlu0 %v459, 24
      %v1177 = vpop.permute.xlu0 %1176
      %1178 = vrot.lane.b32.xlu0 %v352, 24
      %v1179 = vpop.permute.xlu0 %1178
      %1180 = vrot.lane.b32.xlu0 %v460, 24
      %v1181 = vpop.permute.xlu0 %1180
      %1182 = vrot.lane.b32.xlu0 %v355, 24
      %v1183 = vpop.permute.xlu0 %1182
      %1184 = vrot.lane.b32.xlu0 %v461, 24
      %v1185 = vpop.permute.xlu0 %1184
      %1186 = vrot.lane.b32.xlu0 %v358, 24
      %v1187 = vpop.permute.xlu0 %1186
      %1188 = vrot.lane.b32.xlu0 %v462, 24
      %v1189 = vpop.permute.xlu0 %1188
      %1190 = vrot.lane.b32.xlu0 %v361, 24
      %v1191 = vpop.permute.xlu0 %1190
      %1192 = vrot.lane.b32.xlu0 %v463, 24
      %v1193 = vpop.permute.xlu0 %1192
      %1194 = vrot.lane.b32.xlu0 %v364, 24
      %v1195 = vpop.permute.xlu0 %1194
      %1196 = vrot.lane.b32.xlu0 %v464, 24
      %v1197 = vpop.permute.xlu0 %1196
      %1198 = vrot.lane.b32.xlu0 %v367, 24
      %v1199 = vpop.permute.xlu0 %1198
      %1200 = vrot.lane.b32.xlu0 %v465, 24
      %v1201 = vpop.permute.xlu0 %1200
      %1202 = vrot.lane.b32.xlu0 %v370, 24
      %v1203 = vpop.permute.xlu0 %1202
      %1234 = vrot.lane.b32.xlu0 %v515, 28
      %v1235 = vpop.permute.xlu0 %1234
      %1236 = vrot.lane.b32.xlu0 %v517, 28
      %v1237 = vpop.permute.xlu0 %1236
      %1238 = vrot.lane.b32.xlu0 %v525, 28
      %v1239 = vpop.permute.xlu0 %1238
      %1240 = vrot.lane.b32.xlu0 %v527, 28
      %v1241 = vpop.permute.xlu0 %1240
      %1242 = vrot.lane.b32.xlu0 %v530, 28
      %v1243 = vpop.permute.xlu0 %1242
      %1244 = vrot.lane.b32.xlu0 %v532, 28
      %v1245 = vpop.permute.xlu0 %1244
      %1246 = vrot.lane.b32.xlu0 %v535, 28
      %v1247 = vpop.permute.xlu0 %1246
      %1248 = vrot.lane.b32.xlu0 %v537, 28
      %v1249 = vpop.permute.xlu0 %1248
      %1250 = vrot.lane.b32.xlu0 %v540, 28
      %v1251 = vpop.permute.xlu0 %1250
      %1252 = vrot.lane.b32.xlu0 %v542, 28
      %v1253 = vpop.permute.xlu0 %1252
      %1254 = vrot.lane.b32.xlu0 %v545, 28
      %v1255 = vpop.permute.xlu0 %1254
      %1256 = vrot.lane.b32.xlu0 %v547, 28
      %v1257 = vpop.permute.xlu0 %1256
      %1258 = vrot.lane.b32.xlu0 %v550, 28
      %v1259 = vpop.permute.xlu0 %1258
      %1260 = vrot.lane.b32.xlu0 %v552, 28
      %v1261 = vpop.permute.xlu0 %1260
      %1262 = vrot.lane.b32.xlu0 %v555, 28
      %v1263 = vpop.permute.xlu0 %1262
      %1264 = vrot.lane.b32.xlu0 %v557, 28
      %v1265 = vpop.permute.xlu0 %1264
      %1266 = vrot.lane.b32.xlu0 %v560, 28
      %v1267 = vpop.permute.xlu0 %1266
      %1268 = vrot.lane.b32.xlu0 %v562, 28
      %v1269 = vpop.permute.xlu0 %1268
      %1270 = vrot.lane.b32.xlu0 %v565, 28
      %v1271 = vpop.permute.xlu0 %1270
      %1272 = vrot.lane.b32.xlu0 %v567, 28
      %v1273 = vpop.permute.xlu0 %1272
      %1274 = vrot.lane.b32.xlu0 %v570, 28
      %v1275 = vpop.permute.xlu0 %1274
      %1276 = vrot.lane.b32.xlu0 %v572, 28
      %v1277 = vpop.permute.xlu0 %1276
      %1278 = vrot.lane.b32.xlu0 %v575, 28
      %v1279 = vpop.permute.xlu0 %1278
      %1280 = vrot.lane.b32.xlu0 %v577, 28
      %v1281 = vpop.permute.xlu0 %1280
      %1282 = vrot.lane.b32.xlu0 %v580, 28
      %v1283 = vpop.permute.xlu0 %1282
      %1284 = vrot.lane.b32.xlu0 %v582, 28
      %v1285 = vpop.permute.xlu0 %1284
      %1286 = vrot.lane.b32.xlu0 %v585, 28
      %v1287 = vpop.permute.xlu0 %1286
      %1288 = vrot.lane.b32.xlu0 %v587, 28
      %v1289 = vpop.permute.xlu0 %1288
      %1290 = vrot.lane.b32.xlu0 %v668, 28
      %v1291 = vpop.permute.xlu0 %1290
      %1292 = vrot.lane.b32.xlu0 %v670, 28
      %v1293 = vpop.permute.xlu0 %1292
      %1324 = vrot.lane.b32.xlu0 %v591, 32
      %v1325 = vpop.permute.xlu0 %1324
      %1326 = vrot.lane.b32.xlu0 %v593, 32
      %v1327 = vpop.permute.xlu0 %1326
      %1328 = vrot.lane.b32.xlu0 %v601, 32
      %v1329 = vpop.permute.xlu0 %1328
      %1330 = vrot.lane.b32.xlu0 %v603, 32
      %v1331 = vpop.permute.xlu0 %1330
      %1332 = vrot.lane.b32.xlu0 %v606, 32
      %v1333 = vpop.permute.xlu0 %1332
      %1334 = vrot.lane.b32.xlu0 %v608, 32
      %v1335 = vpop.permute.xlu0 %1334
      %1336 = vrot.lane.b32.xlu0 %v611, 32
      %v1337 = vpop.permute.xlu0 %1336
      %1338 = vrot.lane.b32.xlu0 %v613, 32
      %v1339 = vpop.permute.xlu0 %1338
      %1340 = vrot.lane.b32.xlu0 %v616, 32
      %v1341 = vpop.permute.xlu0 %1340
      %1342 = vrot.lane.b32.xlu0 %v618, 32
      %v1343 = vpop.permute.xlu0 %1342
      %1344 = vrot.lane.b32.xlu0 %v621, 32
      %v1345 = vpop.permute.xlu0 %1344
      %1346 = vrot.lane.b32.xlu0 %v623, 32
      %v1347 = vpop.permute.xlu0 %1346
      %1348 = vrot.lane.b32.xlu0 %v626, 32
      %v1349 = vpop.permute.xlu0 %1348
      %1350 = vrot.lane.b32.xlu0 %v628, 32
      %v1351 = vpop.permute.xlu0 %1350
      %1352 = vrot.lane.b32.xlu0 %v631, 32
      %v1353 = vpop.permute.xlu0 %1352
      %1354 = vrot.lane.b32.xlu0 %v633, 32
      %v1355 = vpop.permute.xlu0 %1354
      %1356 = vrot.lane.b32.xlu0 %v636, 32
      %v1357 = vpop.permute.xlu0 %1356
      %1358 = vrot.lane.b32.xlu0 %v638, 32
      %v1359 = vpop.permute.xlu0 %1358
      %1360 = vrot.lane.b32.xlu0 %v641, 32
      %v1361 = vpop.permute.xlu0 %1360
      %1362 = vrot.lane.b32.xlu0 %v643, 32
      %v1363 = vpop.permute.xlu0 %1362
      %1364 = vrot.lane.b32.xlu0 %v646, 32
      %v1365 = vpop.permute.xlu0 %1364
      %1366 = vrot.lane.b32.xlu0 %v648, 32
      %v1367 = vpop.permute.xlu0 %1366
      %1368 = vrot.lane.b32.xlu0 %v651, 32
      %v1369 = vpop.permute.xlu0 %1368
      %1370 = vrot.lane.b32.xlu0 %v653, 32
      %v1371 = vpop.permute.xlu0 %1370
      %1372 = vrot.lane.b32.xlu0 %v656, 32
      %v1373 = vpop.permute.xlu0 %1372
      %1374 = vrot.lane.b32.xlu0 %v658, 32
      %v1375 = vpop.permute.xlu0 %1374
      %1376 = vrot.lane.b32.xlu0 %v661, 32
      %v1377 = vpop.permute.xlu0 %1376
      %1378 = vrot.lane.b32.xlu0 %v663, 32
      %v1379 = vpop.permute.xlu0 %1378
      %1380 = vrot.lane.b32.xlu0 %v673, 32
      %v1381 = vpop.permute.xlu0 %1380
      %1382 = vrot.lane.b32.xlu0 %v675, 32
      %v1383 = vpop.permute.xlu0 %1382
      %vm1414 = vcmask 31744
      %v1415 = vsel %vm1414, %v450, %v677
      %v1416 = vsel %vm1414, %v325, %v679
      %v1417 = vsel %vm1414, %v451, %v681
      %v1418 = vsel %vm1414, %v328, %v683
      %v1419 = vsel %vm1414, %v452, %v685
      %v1420 = vsel %vm1414, %v331, %v687
      %v1421 = vsel %vm1414, %v453, %v689
      %v1422 = vsel %vm1414, %v334, %v691
      %v1423 = vsel %vm1414, %v454, %v693
      %v1424 = vsel %vm1414, %v337, %v695
      %v1425 = vsel %vm1414, %v455, %v697
      %v1426 = vsel %vm1414, %v340, %v699
      %v1427 = vsel %vm1414, %v456, %v701
      %v1428 = vsel %vm1414, %v343, %v703
      %v1429 = vsel %vm1414, %v457, %v705
      %v1430 = vsel %vm1414, %v346, %v707
      %v1431 = vsel %vm1414, %v458, %v709
      %v1432 = vsel %vm1414, %v349, %v711
      %v1433 = vsel %vm1414, %v459, %v713
      %v1434 = vsel %vm1414, %v352, %v715
      %v1435 = vsel %vm1414, %v460, %v717
      %v1436 = vsel %vm1414, %v355, %v719
      %v1437 = vsel %vm1414, %v461, %v721
      %v1438 = vsel %vm1414, %v358, %v723
      %v1439 = vsel %vm1414, %v462, %v725
      %v1440 = vsel %vm1414, %v361, %v727
      %v1441 = vsel %vm1414, %v463, %v729
      %v1442 = vsel %vm1414, %v364, %v731
      %v1443 = vsel %vm1414, %v464, %v733
      %v1444 = vsel %vm1414, %v367, %v735
      %vm1445 = vcmask 64512
      %v1446 = vsel %vm1445, %v1415, %v767
      %v1447 = vsel %vm1445, %v1416, %v769
      %v1448 = vsel %vm1445, %v1417, %v771
      %v1449 = vsel %vm1445, %v1418, %v773
      %v1450 = vsel %vm1445, %v1419, %v775
      %v1451 = vsel %vm1445, %v1420, %v777
      %v1452 = vsel %vm1445, %v1421, %v779
      %v1453 = vsel %vm1445, %v1422, %v781
      %v1454 = vsel %vm1445, %v1423, %v783
      %v1455 = vsel %vm1445, %v1424, %v785
      %v1456 = vsel %vm1445, %v1425, %v787
      %v1457 = vsel %vm1445, %v1426, %v789
      %v1458 = vsel %vm1445, %v1427, %v791
      %v1459 = vsel %vm1445, %v1428, %v793
      %v1460 = vsel %vm1445, %v1429, %v795
      %v1461 = vsel %vm1445, %v1430, %v797
      %v1462 = vsel %vm1445, %v1431, %v799
      %v1463 = vsel %vm1445, %v1432, %v801
      %v1464 = vsel %vm1445, %v1433, %v803
      %v1465 = vsel %vm1445, %v1434, %v805
      %v1466 = vsel %vm1445, %v1435, %v807
      %v1467 = vsel %vm1445, %v1436, %v809
      %v1468 = vsel %vm1445, %v1437, %v811
      %v1469 = vsel %vm1445, %v1438, %v813
      %v1470 = vsel %vm1445, %v1439, %v815
      %v1471 = vsel %vm1445, %v1440, %v817
      %v1472 = vsel %vm1445, %v1441, %v819
      %v1473 = vsel %vm1445, %v1442, %v821
      %v1474 = vsel %vm1445, %v1443, %v823
      %v1475 = vsel %vm1445, %v1444, %v825
      %vm1476 = vcmask 97280
      %v1477 = vsel %vm1476, %v1446, %v857
      %v1478 = vsel %vm1476, %v1447, %v859
      %v1479 = vsel %vm1476, %v1448, %v861
      %v1480 = vsel %vm1476, %v1449, %v863
      %v1481 = vsel %vm1476, %v1446, %v865
      %v1482 = vsel %vm1476, %v1447, %v867
      %v1483 = vsel %vm1476, %v1450, %v869
      %v1484 = vsel %vm1476, %v1451, %v871
      %v1485 = vsel %vm1476, %v1452, %v873
      %v1486 = vsel %vm1476, %v1453, %v875
      %v1487 = vsel %vm1476, %v1454, %v877
      %v1488 = vsel %vm1476, %v1455, %v879
      %v1489 = vsel %vm1476, %v1456, %v881
      %v1490 = vsel %vm1476, %v1457, %v883
      %v1491 = vsel %vm1476, %v1458, %v885
      %v1492 = vsel %vm1476, %v1459, %v887
      %v1493 = vsel %vm1476, %v1460, %v889
      %v1494 = vsel %vm1476, %v1461, %v891
      %v1495 = vsel %vm1476, %v1462, %v893
      %v1496 = vsel %vm1476, %v1463, %v895
      %v1497 = vsel %vm1476, %v1464, %v897
      %v1498 = vsel %vm1476, %v1465, %v899
      %v1499 = vsel %vm1476, %v1466, %v901
      %v1500 = vsel %vm1476, %v1467, %v903
      %v1501 = vsel %vm1476, %v1468, %v905
      %v1502 = vsel %vm1476, %v1469, %v907
      %v1503 = vsel %vm1476, %v1470, %v909
      %v1504 = vsel %vm1476, %v1471, %v911
      %v1505 = vsel %vm1476, %v1472, %v913
      %v1506 = vsel %vm1476, %v1473, %v915
      %v1507 = vsel %vm1476, %v1474, %v917
      %v1508 = vsel %vm1476, %v1475, %v919
      %vm1509 = vcmask 130048
      %v1510 = vsel %vm1509, %v1477, %v953
      %v1511 = vsel %vm1509, %v1478, %v955
      %v1512 = vsel %vm1509, %v1479, %v957
      %v1513 = vsel %vm1509, %v1480, %v959
      %v1514 = vsel %vm1509, %v1481, %v961
      %v1515 = vsel %vm1509, %v1482, %v963
      %v1516 = vsel %vm1509, %v1483, %v965
      %v1517 = vsel %vm1509, %v1484, %v967
      %v1518 = vsel %vm1509, %v1485, %v969
      %v1519 = vsel %vm1509, %v1486, %v971
      %v1520 = vsel %vm1509, %v1487, %v973
      %v1521 = vsel %vm1509, %v1488, %v975
      %v1522 = vsel %vm1509, %v1489, %v977
      %v1523 = vsel %vm1509, %v1490, %v979
      %v1524 = vsel %vm1509, %v1491, %v981
      %v1525 = vsel %vm1509, %v1492, %v983
      %v1526 = vsel %vm1509, %v1493, %v985
      %v1527 = vsel %vm1509, %v1494, %v987
      %v1528 = vsel %vm1509, %v1495, %v989
      %v1529 = vsel %vm1509, %v1496, %v991
      %v1530 = vsel %vm1509, %v1497, %v993
      %v1531 = vsel %vm1509, %v1498, %v995
      %v1532 = vsel %vm1509, %v1499, %v997
      %v1533 = vsel %vm1509, %v1500, %v999
      %v1534 = vsel %vm1509, %v1501, %v1001
      %v1535 = vsel %vm1509, %v1502, %v1003
      %v1536 = vsel %vm1509, %v1503, %v1005
      %v1537 = vsel %vm1509, %v1504, %v1007
      %v1538 = vsel %vm1509, %v1505, %v1009
      %v1539 = vsel %vm1509, %v1506, %v1011
      %v1540 = vsel %vm1509, %v1507, %v1013
      %v1541 = vsel %vm1509, %v1508, %v1015
      %vm1542 = vcmask 162816
      %v1543 = vsel %vm1542, %v1510, %v1049
      %v1544 = vsel %vm1542, %v1511, %v1051
      %v1545 = vsel %vm1542, %v1512, %v1053
      %v1546 = vsel %vm1542, %v1513, %v1055
      %v1547 = vsel %vm1542, %v1514, %v1057
      %v1548 = vsel %vm1542, %v1515, %v1059
      %v1549 = vsel %vm1542, %v1516, %v1061
      %v1550 = vsel %vm1542, %v1517, %v1063
      %v1551 = vsel %vm1542, %v1518, %v1065
      %v1552 = vsel %vm1542, %v1519, %v1067
      %v1553 = vsel %vm1542, %v1520, %v1069
      %v1554 = vsel %vm1542, %v1521, %v1071
      %v1555 = vsel %vm1542, %v1522, %v1073
      %v1556 = vsel %vm1542, %v1523, %v1075
      %v1557 = vsel %vm1542, %v1524, %v1077
      %v1558 = vsel %vm1542, %v1525, %v1079
      %v1559 = vsel %vm1542, %v1526, %v1081
      %v1560 = vsel %vm1542, %v1527, %v1083
      %v1561 = vsel %vm1542, %v1528, %v1085
      %v1562 = vsel %vm1542, %v1529, %v1087
      %v1563 = vsel %vm1542, %v1530, %v1089
      %v1564 = vsel %vm1542, %v1531, %v1091
      %v1565 = vsel %vm1542, %v1532, %v1093
      %v1566 = vsel %vm1542, %v1533, %v1095
      %v1567 = vsel %vm1542, %v1534, %v1097
      %v1568 = vsel %vm1542, %v1535, %v1099
      %v1569 = vsel %vm1542, %v1536, %v1101
      %v1570 = vsel %vm1542, %v1537, %v1103
      %v1571 = vsel %vm1542, %v1538, %v1105
      %v1572 = vsel %vm1542, %v1539, %v1107
      %v1573 = vsel %vm1542, %v1540, %v1109
      %v1574 = vsel %vm1542, %v1541, %v1111
      %vm1575 = vcmask 195584
      %v1576 = vsel %vm1575, %v1543, %v1145
      %v1577 = vsel %vm1575, %v1544, %v1147
      %v1578 = vsel %vm1575, %v1545, %v1149
      %v1579 = vsel %vm1575, %v1546, %v1151
      %v1580 = vsel %vm1575, %v1547, %v1153
      %v1581 = vsel %vm1575, %v1548, %v1155
      %v1582 = vsel %vm1575, %v1549, %v1157
      %v1583 = vsel %vm1575, %v1550, %v1159
      %v1584 = vsel %vm1575, %v1551, %v1161
      %v1585 = vsel %vm1575, %v1552, %v1163
      %v1586 = vsel %vm1575, %v1553, %v1165
      %v1587 = vsel %vm1575, %v1554, %v1167
      %v1588 = vsel %vm1575, %v1555, %v1169
      %v1589 = vsel %vm1575, %v1556, %v1171
      %v1590 = vsel %vm1575, %v1557, %v1173
      %v1591 = vsel %vm1575, %v1558, %v1175
      %v1592 = vsel %vm1575, %v1559, %v1177
      %v1593 = vsel %vm1575, %v1560, %v1179
      %v1594 = vsel %vm1575, %v1561, %v1181
      %v1595 = vsel %vm1575, %v1562, %v1183
      %v1596 = vsel %vm1575, %v1563, %v1185
      %v1597 = vsel %vm1575, %v1564, %v1187
      %v1598 = vsel %vm1575, %v1565, %v1189
      %v1599 = vsel %vm1575, %v1566, %v1191
      %v1600 = vsel %vm1575, %v1567, %v1193
      %v1601 = vsel %vm1575, %v1568, %v1195
      %v1602 = vsel %vm1575, %v1569, %v1197
      %v1603 = vsel %vm1575, %v1570, %v1199
      %v1604 = vsel %vm1575, %v1571, %v1201
      %v1605 = vsel %vm1575, %v1572, %v1203
      %v1606 = vsel %vm1575, %v1573, %v1197
      %v1607 = vsel %vm1575, %v1574, %v1199
      %vm1608 = vcmask 228352
      %v1609 = vsel %vm1608, %v1576, %v1235
      %v1610 = vsel %vm1608, %v1577, %v1237
      %v1611 = vsel %vm1608, %v1578, %v1239
      %v1612 = vsel %vm1608, %v1579, %v1241
      %v1613 = vsel %vm1608, %v1580, %v1243
      %v1614 = vsel %vm1608, %v1581, %v1245
      %v1615 = vsel %vm1608, %v1582, %v1247
      %v1616 = vsel %vm1608, %v1583, %v1249
      %v1617 = vsel %vm1608, %v1584, %v1251
      %v1618 = vsel %vm1608, %v1585, %v1253
      %v1619 = vsel %vm1608, %v1586, %v1255
      %v1620 = vsel %vm1608, %v1587, %v1257
      %v1621 = vsel %vm1608, %v1588, %v1259
      %v1622 = vsel %vm1608, %v1589, %v1261
      %v1623 = vsel %vm1608, %v1590, %v1263
      %v1624 = vsel %vm1608, %v1591, %v1265
      %v1625 = vsel %vm1608, %v1592, %v1267
      %v1626 = vsel %vm1608, %v1593, %v1269
      %v1627 = vsel %vm1608, %v1594, %v1271
      %v1628 = vsel %vm1608, %v1595, %v1273
      %v1629 = vsel %vm1608, %v1596, %v1275
      %v1630 = vsel %vm1608, %v1597, %v1277
      %v1631 = vsel %vm1608, %v1598, %v1279
      %v1632 = vsel %vm1608, %v1599, %v1281
      %v1633 = vsel %vm1608, %v1600, %v1283
      %v1634 = vsel %vm1608, %v1601, %v1285
      %v1635 = vsel %vm1608, %v1602, %v1287
      %v1636 = vsel %vm1608, %v1603, %v1289
      %v1637 = vsel %vm1608, %v1604, %v1291
      %v1638 = vsel %vm1608, %v1605, %v1293
      %v1639 = vsel %vm1608, %v1606, %v1287
      %v1640 = vsel %vm1608, %v1607, %v1289
      %vm1641 = vcmask 261120
      %v1642 = vsel %vm1641, %v1609, %v1325
      %v1643 = vsel %vm1641, %v1610, %v1327
      %v1644 = vsel %vm1641, %v1611, %v1329
      %v1645 = vsel %vm1641, %v1612, %v1331
      %v1646 = vsel %vm1641, %v1613, %v1333
      %v1647 = vsel %vm1641, %v1614, %v1335
      %v1648 = vsel %vm1641, %v1615, %v1337
      %v1649 = vsel %vm1641, %v1616, %v1339
      %v1650 = vsel %vm1641, %v1617, %v1341
      %v1651 = vsel %vm1641, %v1618, %v1343
      %v1652 = vsel %vm1641, %v1619, %v1345
      %v1653 = vsel %vm1641, %v1620, %v1347
      %v1654 = vsel %vm1641, %v1621, %v1349
      %v1655 = vsel %vm1641, %v1622, %v1351
      %v1656 = vsel %vm1641, %v1623, %v1353
      %v1657 = vsel %vm1641, %v1624, %v1355
      %v1658 = vsel %vm1641, %v1625, %v1357
      %v1659 = vsel %vm1641, %v1626, %v1359
      %v1660 = vsel %vm1641, %v1627, %v1361
      %v1661 = vsel %vm1641, %v1628, %v1363
      %v1662 = vsel %vm1641, %v1629, %v1365
      %v1663 = vsel %vm1641, %v1630, %v1367
      %v1664 = vsel %vm1641, %v1631, %v1369
      %v1665 = vsel %vm1641, %v1632, %v1371
      %v1666 = vsel %vm1641, %v1633, %v1373
      %v1667 = vsel %vm1641, %v1634, %v1375
      %v1668 = vsel %vm1641, %v1635, %v1377
      %v1669 = vsel %vm1641, %v1636, %v1379
      %v1670 = vsel %vm1641, %v1637, %v1381
      %v1671 = vsel %vm1641, %v1638, %v1383
      %v1672 = vsel %vm1641, %v1639, %v1377
      %v1673 = vsel %vm1641, %v1640, %v1379
      %v1674 = vpack.c.bf16 %v1643, %v1642
      %v1675 = vpack.c.bf16 %v1645, %v1644
      %v1676 = vpack.c.bf16 %v1647, %v1646
      %v1677 = vpack.c.bf16 %v1649, %v1648
      %v1678 = vpack.c.bf16 %v1651, %v1650
      %v1679 = vpack.c.bf16 %v1653, %v1652
      %v1680 = vpack.c.bf16 %v1655, %v1654
      %v1681 = vpack.c.bf16 %v1657, %v1656
      %v1682 = vpack.c.bf16 %v1659, %v1658
      %v1683 = vpack.c.bf16 %v1661, %v1660
      %v1684 = vpack.c.bf16 %v1663, %v1662
      %v1685 = vpack.c.bf16 %v1665, %v1664
      %v1686 = vpack.c.bf16 %v1667, %v1666
      %v1687 = vpack.c.bf16 %v1669, %v1668
      %v1688 = vpack.c.bf16 %v1671, %v1670
      %v1689 = vpack.c.bf16 %v1673, %v1672
      %v1690 = vld [vmem:[%s1] sm:$0xf]
      %v1691 = vld [vmem:[%s1 + $0x4] sm:$0xf]
      %v1692 = vld [vmem:[%s1 + $0x8] sm:$0xf]
      %v1693 = vld [vmem:[%s1 + $0xc] sm:$0xf]
      %v1694 = vld [vmem:[%s1 + $0x10] sm:$0x3]
      %v1695 = vld [vmem:[%s2] sm:$0x1]
      %v1697 = vlaneseq
      %v1698 = vshrl.u32 %v1697, 7
      %v1699 = vsub.s32 0, %v1698
      %v1700 = vrot.slane %v1695, %v1699
      %v1707 = vunpack.c.l.b16 %v1690
      %v1708 = vunpack.c.l.b16 %v1691
      %v1709 = vunpack.c.l.b16 %v1692
      %v1710 = vunpack.c.l.b16 %v1693
      %v1711 = vunpack.c.l.b16 %v1694
      %v1712 = vpack.c.b16 %v1708, %v1707
      %v1713 = vpack.c.b16 %v1710, %v1709
      %v1714 = vpack.c.b16 %v1711, %v1711
      %vm1717 = vcmask 293888
      %v1719 = vsel %vm1717, %v1674, 0
      %v1722 = vsel %vm1717, %v1675, 0
      %v1725 = vsel %vm1717, %v1676, 0
      %v1728 = vsel %vm1717, %v1677, 0
      %v1731 = vsel %vm1717, %v1678, 0
      %v1734 = vsel %vm1717, %v1679, 0
      %v1737 = vsel %vm1717, %v1680, 0
      %v1740 = vsel %vm1717, %v1681, 0
      %v1743 = vsel %vm1717, %v1682, 0
      %v1746 = vsel %vm1717, %v1683, 0
      %v1749 = vsel %vm1717, %v1684, 0
      %v1752 = vsel %vm1717, %v1685, 0
      %v1755 = vsel %vm1717, %v1686, 0
      %v1758 = vsel %vm1717, %v1687, 0
      %v1761 = vsel %vm1717, %v1688, 0
      %v1764 = vsel %vm1717, %v1689, 0
      %vm1766 = vcmask 1041408
      %v1768 = vsel %vm1766, %v1714, 0
      %1770 = vmatprep.subr.bf16.mxu0 0
      %1771 = vmatpush1.bf16.msra.mxu0 0
      %1772 = vmatprep.subr.bf16.mxu0 0
      %1773 = vmatpush1.bf16.msra.mxu0 0
      %1774 = vmatprep.subr.bf16.mxu0 0
      %1775 = vmatpush1.bf16.msra.mxu0 0
      %1776 = vmatprep.subr.bf16.mxu0 0
      %1777 = vmatpush1.bf16.msra.mxu0 0
      %1778 = vmatprep.subr.bf16.mxu0 0
      %1779 = vmatpush1.bf16.msra.mxu0 0
      %1780 = vmatprep.subr.bf16.mxu0 0
      %1781 = vmatpush1.bf16.msra.mxu0 %v1768
      %1782 = vmatprep.subr.bf16.mxu0 0
      %1783 = vmatpush1.bf16.msra.mxu0 %v1713
      %1784 = vmatprep.subr.bf16.mxu0 0
      %1785 = vmatpush1.bf16.msra.mxu0 %v1712
      %1786 = vmatprep.subr.bf16.mxu0 0
      %1787 = vmatpush2.bf16.msra.mxu0 0
      %1788 = vmatprep.subr.bf16.mxu0 0
      %1789 = vmatpush2.bf16.msra.mxu0 0
      %1790 = vmatprep.subr.bf16.mxu0 0
      %1791 = vmatpush2.bf16.msra.mxu0 0
      %1792 = vmatprep.subr.bf16.mxu0 0
      %1793 = vmatpush2.bf16.msra.mxu0 0
      %1794 = vmatprep.subr.bf16.mxu0 0
      %1795 = vmatpush2.bf16.msra.mxu0 0
      %1796 = vmatprep.subr.bf16.mxu0 0
      %1797 = vmatpush2.bf16.msra.mxu0 0
      %1798 = vmatprep.subr.bf16.mxu0 0
      %1799 = vmatpush2.bf16.msra.mxu0 0
      %1800 = vmatprep.subr.bf16.mxu0 0
      %1801 = vmatpush2.bf16.msra.mxu0 0
      %1802 = vmatprep.mubr.bf16.mxu0 0
      %1803 = vmatmul.mubr.bf16.gmra.mxu0 %v1719
      %v1804 = vpop.f32.mrf.mxu0
      %v1805 = vadd.f32 %v1700, %v1804
      %v1806 = vpop.f32.mrf.mxu0
      %v1807 = vpop.f32.mrf.mxu0
      %v1808 = vadd.f32 %v1700, %v1807
      %v1809 = vpop.f32.mrf.mxu0
      %1810 = vmatprep.mubr.bf16.mxu0 0
      %1811 = vmatmul.mubr.bf16.gmra.mxu0 %v1722
      %v1812 = vpop.f32.mrf.mxu0
      %v1813 = vadd.f32 %v1700, %v1812
      %v1814 = vpop.f32.mrf.mxu0
      %v1815 = vpop.f32.mrf.mxu0
      %v1816 = vadd.f32 %v1700, %v1815
      %v1817 = vpop.f32.mrf.mxu0
      %1818 = vmatprep.mubr.bf16.mxu0 0
      %1819 = vmatmul.mubr.bf16.gmra.mxu0 %v1725
      %v1820 = vpop.f32.mrf.mxu0
      %v1821 = vadd.f32 %v1700, %v1820
      %v1822 = vpop.f32.mrf.mxu0
      %v1823 = vpop.f32.mrf.mxu0
      %v1824 = vadd.f32 %v1700, %v1823
      %v1825 = vpop.f32.mrf.mxu0
      %1826 = vmatprep.mubr.bf16.mxu0 0
      %1827 = vmatmul.mubr.bf16.gmra.mxu0 %v1728
      %v1828 = vpop.f32.mrf.mxu0
      %v1829 = vadd.f32 %v1700, %v1828
      %v1830 = vpop.f32.mrf.mxu0
      %v1831 = vpop.f32.mrf.mxu0
      %v1832 = vadd.f32 %v1700, %v1831
      %v1833 = vpop.f32.mrf.mxu0
      %1834 = vmatprep.mubr.bf16.mxu0 0
      %1835 = vmatmul.mubr.bf16.gmra.mxu0 %v1731
      %v1836 = vpop.f32.mrf.mxu0
      %v1837 = vadd.f32 %v1700, %v1836
      %v1838 = vpop.f32.mrf.mxu0
      %v1839 = vpop.f32.mrf.mxu0
      %v1840 = vadd.f32 %v1700, %v1839
      %v1841 = vpop.f32.mrf.mxu0
      %1842 = vmatprep.mubr.bf16.mxu0 0
      %1843 = vmatmul.mubr.bf16.gmra.mxu0 %v1734
      %v1844 = vpop.f32.mrf.mxu0
      %v1845 = vadd.f32 %v1700, %v1844
      %v1846 = vpop.f32.mrf.mxu0
      %v1847 = vpop.f32.mrf.mxu0
      %v1848 = vadd.f32 %v1700, %v1847
      %v1849 = vpop.f32.mrf.mxu0
      %1850 = vmatprep.mubr.bf16.mxu0 0
      %1851 = vmatmul.mubr.bf16.gmra.mxu0 %v1737
      %v1852 = vpop.f32.mrf.mxu0
      %v1853 = vadd.f32 %v1700, %v1852
      %v1854 = vpop.f32.mrf.mxu0
      %v1855 = vpop.f32.mrf.mxu0
      %v1856 = vadd.f32 %v1700, %v1855
      %v1857 = vpop.f32.mrf.mxu0
      %1858 = vmatprep.mubr.bf16.mxu0 0
      %1859 = vmatmul.mubr.bf16.gmra.mxu0 %v1740
      %v1860 = vpop.f32.mrf.mxu0
      %v1861 = vadd.f32 %v1700, %v1860
      %v1862 = vpop.f32.mrf.mxu0
      %v1863 = vpop.f32.mrf.mxu0
      %v1864 = vadd.f32 %v1700, %v1863
      %v1865 = vpop.f32.mrf.mxu0
      %1866 = vmatprep.mubr.bf16.mxu0 0
      %1867 = vmatmul.mubr.bf16.gmra.mxu0 %v1743
      %v1868 = vpop.f32.mrf.mxu0
      %v1869 = vadd.f32 %v1700, %v1868
      %v1870 = vpop.f32.mrf.mxu0
      %v1871 = vpop.f32.mrf.mxu0
      %v1872 = vadd.f32 %v1700, %v1871
      %v1873 = vpop.f32.mrf.mxu0
      %1874 = vmatprep.mubr.bf16.mxu0 0
      %1875 = vmatmul.mubr.bf16.gmra.mxu0 %v1746
      %v1876 = vpop.f32.mrf.mxu0
      %v1877 = vadd.f32 %v1700, %v1876
      %v1878 = vpop.f32.mrf.mxu0
      %v1879 = vpop.f32.mrf.mxu0
      %v1880 = vadd.f32 %v1700, %v1879
      %v1881 = vpop.f32.mrf.mxu0
      %1882 = vmatprep.mubr.bf16.mxu0 0
      %1883 = vmatmul.mubr.bf16.gmra.mxu0 %v1749
      %v1884 = vpop.f32.mrf.mxu0
      %v1885 = vadd.f32 %v1700, %v1884
      %v1886 = vpop.f32.mrf.mxu0
      %v1887 = vpop.f32.mrf.mxu0
      %v1888 = vadd.f32 %v1700, %v1887
      %v1889 = vpop.f32.mrf.mxu0
      %1890 = vmatprep.mubr.bf16.mxu0 0
      %1891 = vmatmul.mubr.bf16.gmra.mxu0 %v1752
      %v1892 = vpop.f32.mrf.mxu0
      %v1893 = vadd.f32 %v1700, %v1892
      %v1894 = vpop.f32.mrf.mxu0
      %v1895 = vpop.f32.mrf.mxu0
      %v1896 = vadd.f32 %v1700, %v1895
      %v1897 = vpop.f32.mrf.mxu0
      %1898 = vmatprep.mubr.bf16.mxu0 0
      %1899 = vmatmul.mubr.bf16.gmra.mxu0 %v1755
      %v1900 = vpop.f32.mrf.mxu0
      %v1901 = vadd.f32 %v1700, %v1900
      %v1902 = vpop.f32.mrf.mxu0
      %v1903 = vpop.f32.mrf.mxu0
      %v1904 = vadd.f32 %v1700, %v1903
      %v1905 = vpop.f32.mrf.mxu0
      %1906 = vmatprep.mubr.bf16.mxu0 0
      %1907 = vmatmul.mubr.bf16.gmra.mxu0 %v1758
      %v1908 = vpop.f32.mrf.mxu0
      %v1909 = vadd.f32 %v1700, %v1908
      %v1910 = vpop.f32.mrf.mxu0
      %v1911 = vpop.f32.mrf.mxu0
      %v1912 = vadd.f32 %v1700, %v1911
      %v1913 = vpop.f32.mrf.mxu0
      %1914 = vmatprep.mubr.bf16.mxu0 0
      %1915 = vmatmul.mubr.bf16.gmra.mxu0 %v1761
      %v1916 = vpop.f32.mrf.mxu0
      %v1917 = vadd.f32 %v1700, %v1916
      %v1918 = vpop.f32.mrf.mxu0
      %v1919 = vpop.f32.mrf.mxu0
      %v1920 = vadd.f32 %v1700, %v1919
      %v1921 = vpop.f32.mrf.mxu0
      %1922 = vmatprep.mubr.bf16.mxu0 0
      %1923 = vmatmul.mubr.bf16.gmra.mxu0 %v1764
      %v1924 = vpop.f32.mrf.mxu0
      %v1925 = vadd.f32 %v1700, %v1924
      %v1926 = vpop.f32.mrf.mxu0
      %v1927 = vpop.f32.mrf.mxu0
      %v1928 = vadd.f32 %v1700, %v1927
      %v1929 = vpop.f32.mrf.mxu0
      %1930 = vdwg.mxu0
      %v1931 = vsel %vm1414, %v1805, 0.0
      %v1932 = vsel %vm1414, %v1808, 0.0
      %v1933 = vadd.f32 %v1931, %v1932
      %v1934 = vsel %vm1414, %v1813, 0.0
      %v1935 = vadd.f32 %v1933, %v1934
      %v1936 = vsel %vm1414, %v1816, 0.0
      %v1937 = vadd.f32 %v1935, %v1936
      %v1938 = vsel %vm1414, %v1821, 0.0
      %v1939 = vadd.f32 %v1937, %v1938
      %v1940 = vsel %vm1414, %v1824, 0.0
      %v1941 = vadd.f32 %v1939, %v1940
      %v1942 = vsel %vm1414, %v1829, 0.0
      %v1943 = vadd.f32 %v1941, %v1942
      %v1944 = vsel %vm1414, %v1832, 0.0
      %v1945 = vadd.f32 %v1943, %v1944
      %v1946 = vsel %vm1414, %v1837, 0.0
      %v1947 = vadd.f32 %v1945, %v1946
      %v1948 = vsel %vm1414, %v1840, 0.0
      %v1949 = vadd.f32 %v1947, %v1948
      %v1950 = vsel %vm1414, %v1845, 0.0
      %v1951 = vadd.f32 %v1949, %v1950
      %v1952 = vsel %vm1414, %v1848, 0.0
      %v1953 = vadd.f32 %v1951, %v1952
      %v1954 = vsel %vm1414, %v1853, 0.0
      %v1955 = vadd.f32 %v1953, %v1954
      %v1956 = vsel %vm1414, %v1856, 0.0
      %v1957 = vadd.f32 %v1955, %v1956
      %v1958 = vsel %vm1414, %v1861, 0.0
      %v1959 = vadd.f32 %v1957, %v1958
      %v1960 = vsel %vm1414, %v1864, 0.0
      %v1961 = vadd.f32 %v1959, %v1960
      %v1962 = vsel %vm1414, %v1869, 0.0
      %v1963 = vadd.f32 %v1961, %v1962
      %v1964 = vsel %vm1414, %v1872, 0.0
      %v1965 = vadd.f32 %v1963, %v1964
      %v1966 = vsel %vm1414, %v1877, 0.0
      %v1967 = vadd.f32 %v1965, %v1966
      %v1968 = vsel %vm1414, %v1880, 0.0
      %v1969 = vadd.f32 %v1967, %v1968
      %v1970 = vsel %vm1414, %v1885, 0.0
      %v1971 = vadd.f32 %v1969, %v1970
      %v1972 = vsel %vm1414, %v1888, 0.0
      %v1973 = vadd.f32 %v1971, %v1972
      %v1974 = vsel %vm1414, %v1893, 0.0
      %v1975 = vadd.f32 %v1973, %v1974
      %v1976 = vsel %vm1414, %v1896, 0.0
      %v1977 = vadd.f32 %v1975, %v1976
      %v1978 = vsel %vm1414, %v1901, 0.0
      %v1979 = vadd.f32 %v1977, %v1978
      %v1980 = vsel %vm1414, %v1904, 0.0
      %v1981 = vadd.f32 %v1979, %v1980
      %v1982 = vsel %vm1414, %v1909, 0.0
      %v1983 = vadd.f32 %v1981, %v1982
      %v1984 = vsel %vm1414, %v1912, 0.0
      %v1985 = vadd.f32 %v1983, %v1984
      %v1986 = vsel %vm1414, %v1917, 0.0
      %v1987 = vadd.f32 %v1985, %v1986
      %v1988 = vsel %vm1414, %v1920, 0.0
      %v1989 = vadd.f32 %v1987, %v1988
      %v1990 = vsel %vm1414, %v1925, 0.0
      %v1991 = vadd.f32 %v1989, %v1990
      %v1992 = vsel %vm1414, %v1928, 0.0
      %v1993 = vadd.f32 %v1991, %v1992
      %v1994 = vrot.slane %v1993, 4
      %v1995 = vadd.f32 %v1993, %v1994
      %v1996 = vrot.slane %v1995, 2
      %v1997 = vadd.f32 %v1995, %v1996
      %v1998 = vrot.slane %v1997, 1
      %v1999 = vadd.f32 %v1997, %v1998
      %v2000 = vmul.f32 %v1999, 0.00390625
      %v2001 = vmul.f32 %v1805, %v1805
      %v2002 = vmul.f32 %v1808, %v1808
      %v2003 = vmul.f32 %v1813, %v1813
      %v2004 = vmul.f32 %v1816, %v1816
      %v2005 = vmul.f32 %v1821, %v1821
      %v2006 = vmul.f32 %v1824, %v1824
      %v2007 = vmul.f32 %v1829, %v1829
      %v2008 = vmul.f32 %v1832, %v1832
      %v2009 = vmul.f32 %v1837, %v1837
      %v2010 = vmul.f32 %v1840, %v1840
      %v2011 = vmul.f32 %v1845, %v1845
      %v2012 = vmul.f32 %v1848, %v1848
      %v2013 = vmul.f32 %v1853, %v1853
      %v2014 = vmul.f32 %v1856, %v1856
      %v2015 = vmul.f32 %v1861, %v1861
      %v2016 = vmul.f32 %v1864, %v1864
      %v2017 = vmul.f32 %v1869, %v1869
      %v2018 = vmul.f32 %v1872, %v1872
      %v2019 = vmul.f32 %v1877, %v1877
      %v2020 = vmul.f32 %v1880, %v1880
      %v2021 = vmul.f32 %v1885, %v1885
      %v2022 = vmul.f32 %v1888, %v1888
      %v2023 = vmul.f32 %v1893, %v1893
      %v2024 = vmul.f32 %v1896, %v1896
      %v2025 = vmul.f32 %v1901, %v1901
      %v2026 = vmul.f32 %v1904, %v1904
      %v2027 = vmul.f32 %v1909, %v1909
      %v2028 = vmul.f32 %v1912, %v1912
      %v2029 = vmul.f32 %v1917, %v1917
      %v2030 = vmul.f32 %v1920, %v1920
      %v2031 = vmul.f32 %v1925, %v1925
      %v2032 = vmul.f32 %v1928, %v1928
      %v2033 = vsel %vm1414, %v2001, 0.0
      %v2034 = vsel %vm1414, %v2002, 0.0
      %v2035 = vadd.f32 %v2033, %v2034
      %v2036 = vsel %vm1414, %v2003, 0.0
      %v2037 = vadd.f32 %v2035, %v2036
      %v2038 = vsel %vm1414, %v2004, 0.0
      %v2039 = vadd.f32 %v2037, %v2038
      %v2040 = vsel %vm1414, %v2005, 0.0
      %v2041 = vadd.f32 %v2039, %v2040
      %v2042 = vsel %vm1414, %v2006, 0.0
      %v2043 = vadd.f32 %v2041, %v2042
      %v2044 = vsel %vm1414, %v2007, 0.0
      %v2045 = vadd.f32 %v2043, %v2044
      %v2046 = vsel %vm1414, %v2008, 0.0
      %v2047 = vadd.f32 %v2045, %v2046
      %v2048 = vsel %vm1414, %v2009, 0.0
      %v2049 = vadd.f32 %v2047, %v2048
      %v2050 = vsel %vm1414, %v2010, 0.0
      %v2051 = vadd.f32 %v2049, %v2050
      %v2052 = vsel %vm1414, %v2011, 0.0
      %v2053 = vadd.f32 %v2051, %v2052
      %v2054 = vsel %vm1414, %v2012, 0.0
      %v2055 = vadd.f32 %v2053, %v2054
      %v2056 = vsel %vm1414, %v2013, 0.0
      %v2057 = vadd.f32 %v2055, %v2056
      %v2058 = vsel %vm1414, %v2014, 0.0
      %v2059 = vadd.f32 %v2057, %v2058
      %v2060 = vsel %vm1414, %v2015, 0.0
      %v2061 = vadd.f32 %v2059, %v2060
      %v2062 = vsel %vm1414, %v2016, 0.0
      %v2063 = vadd.f32 %v2061, %v2062
      %v2064 = vsel %vm1414, %v2017, 0.0
      %v2065 = vadd.f32 %v2063, %v2064
      %v2066 = vsel %vm1414, %v2018, 0.0
      %v2067 = vadd.f32 %v2065, %v2066
      %v2068 = vsel %vm1414, %v2019, 0.0
      %v2069 = vadd.f32 %v2067, %v2068
      %v2070 = vsel %vm1414, %v2020, 0.0
      %v2071 = vadd.f32 %v2069, %v2070
      %v2072 = vsel %vm1414, %v2021, 0.0
      %v2073 = vadd.f32 %v2071, %v2072
      %v2074 = vsel %vm1414, %v2022, 0.0
      %v2075 = vadd.f32 %v2073, %v2074
      %v2076 = vsel %vm1414, %v2023, 0.0
      %v2077 = vadd.f32 %v2075, %v2076
      %v2078 = vsel %vm1414, %v2024, 0.0
      %v2079 = vadd.f32 %v2077, %v2078
      %v2080 = vsel %vm1414, %v2025, 0.0
      %v2081 = vadd.f32 %v2079, %v2080
      %v2082 = vsel %vm1414, %v2026, 0.0
      %v2083 = vadd.f32 %v2081, %v2082
      %v2084 = vsel %vm1414, %v2027, 0.0
      %v2085 = vadd.f32 %v2083, %v2084
      %v2086 = vsel %vm1414, %v2028, 0.0
      %v2087 = vadd.f32 %v2085, %v2086
      %v2088 = vsel %vm1414, %v2029, 0.0
      %v2089 = vadd.f32 %v2087, %v2088
      %v2090 = vsel %vm1414, %v2030, 0.0
      %v2091 = vadd.f32 %v2089, %v2090
      %v2092 = vsel %vm1414, %v2031, 0.0
      %v2093 = vadd.f32 %v2091, %v2092
      %v2094 = vsel %vm1414, %v2032, 0.0
      %v2095 = vadd.f32 %v2093, %v2094
      %v2096 = vrot.slane %v2095, 4
      %v2097 = vadd.f32 %v2095, %v2096
      %v2098 = vrot.slane %v2097, 2
      %v2099 = vadd.f32 %v2097, %v2098
      %v2100 = vrot.slane %v2099, 1
      %v2101 = vadd.f32 %v2099, %v2100
      %v2102 = vmul.f32 %v2101, 0.00390625
      %v2103 = vmul.f32 %v2000, %v2000
      %v2104 = vsub.f32 %v2102, %v2103
      %v2105 = vmax.f32 %v2104, 0.0
      %v2106 = vsub.f32 %v1805, %v2000
      %v2107 = vsub.f32 %v1808, %v2000
      %v2108 = vsub.f32 %v1813, %v2000
      %v2109 = vsub.f32 %v1816, %v2000
      %v2110 = vsub.f32 %v1821, %v2000
      %v2111 = vsub.f32 %v1824, %v2000
      %v2112 = vsub.f32 %v1829, %v2000
      %v2113 = vsub.f32 %v1832, %v2000
      %v2114 = vsub.f32 %v1837, %v2000
      %v2115 = vsub.f32 %v1840, %v2000
      %v2116 = vsub.f32 %v1845, %v2000
      %v2117 = vsub.f32 %v1848, %v2000
      %v2118 = vsub.f32 %v1853, %v2000
      %v2119 = vsub.f32 %v1856, %v2000
      %v2120 = vsub.f32 %v1861, %v2000
      %v2121 = vsub.f32 %v1864, %v2000
      %v2122 = vsub.f32 %v1869, %v2000
      %v2123 = vsub.f32 %v1872, %v2000
      %v2124 = vsub.f32 %v1877, %v2000
      %v2125 = vsub.f32 %v1880, %v2000
      %v2126 = vsub.f32 %v1885, %v2000
      %v2127 = vsub.f32 %v1888, %v2000
      %v2128 = vsub.f32 %v1893, %v2000
      %v2129 = vsub.f32 %v1896, %v2000
      %v2130 = vsub.f32 %v1901, %v2000
      %v2131 = vsub.f32 %v1904, %v2000
      %v2132 = vsub.f32 %v1909, %v2000
      %v2133 = vsub.f32 %v1912, %v2000
      %v2134 = vsub.f32 %v1917, %v2000
      %v2135 = vsub.f32 %v1920, %v2000
      %v2136 = vsub.f32 %v1925, %v2000
      %v2137 = vsub.f32 %v1928, %v2000
      %v2138 = vadd.f32 %v2105, 1e-05
      %v2139 = vrsqrt.pop %v2138
      %v2140 = vmul.f32 %v2106, %v2139
      %v2141 = vmul.f32 %v2107, %v2139
      %v2142 = vmul.f32 %v2108, %v2139
      %v2143 = vmul.f32 %v2109, %v2139
      %v2144 = vmul.f32 %v2110, %v2139
      %v2145 = vmul.f32 %v2111, %v2139
      %v2146 = vmul.f32 %v2112, %v2139
      %v2147 = vmul.f32 %v2113, %v2139
      %v2148 = vmul.f32 %v2114, %v2139
      %v2149 = vmul.f32 %v2115, %v2139
      %v2150 = vmul.f32 %v2116, %v2139
      %v2151 = vmul.f32 %v2117, %v2139
      %v2152 = vmul.f32 %v2118, %v2139
      %v2153 = vmul.f32 %v2119, %v2139
      %v2154 = vmul.f32 %v2120, %v2139
      %v2155 = vmul.f32 %v2121, %v2139
      %v2156 = vmul.f32 %v2122, %v2139
      %v2157 = vmul.f32 %v2123, %v2139
      %v2158 = vmul.f32 %v2124, %v2139
      %v2159 = vmul.f32 %v2125, %v2139
      %v2160 = vmul.f32 %v2126, %v2139
      %v2161 = vmul.f32 %v2127, %v2139
      %v2162 = vmul.f32 %v2128, %v2139
      %v2163 = vmul.f32 %v2129, %v2139
      %v2164 = vmul.f32 %v2130, %v2139
      %v2165 = vmul.f32 %v2131, %v2139
      %v2166 = vmul.f32 %v2132, %v2139
      %v2167 = vmul.f32 %v2133, %v2139
      %v2168 = vmul.f32 %v2134, %v2139
      %v2169 = vmul.f32 %v2135, %v2139
      %v2170 = vmul.f32 %v2136, %v2139
      %v2171 = vmul.f32 %v2137, %v2139
      %v2172 = vmax.f32 %v2140, 0.0
      %v2173 = vmax.f32 %v2141, 0.0
      %v2174 = vmax.f32 %v2142, 0.0
      %v2175 = vmax.f32 %v2143, 0.0
      %v2176 = vmax.f32 %v2144, 0.0
      %v2177 = vmax.f32 %v2145, 0.0
      %v2178 = vmax.f32 %v2146, 0.0
      %v2179 = vmax.f32 %v2147, 0.0
      %v2180 = vmax.f32 %v2148, 0.0
      %v2181 = vmax.f32 %v2149, 0.0
      %v2182 = vmax.f32 %v2150, 0.0
      %v2183 = vmax.f32 %v2151, 0.0
      %v2184 = vmax.f32 %v2152, 0.0
      %v2185 = vmax.f32 %v2153, 0.0
      %v2186 = vmax.f32 %v2154, 0.0
      %v2187 = vmax.f32 %v2155, 0.0
      %v2188 = vmax.f32 %v2156, 0.0
      %v2189 = vmax.f32 %v2157, 0.0
      %v2190 = vmax.f32 %v2158, 0.0
      %v2191 = vmax.f32 %v2159, 0.0
      %v2192 = vmax.f32 %v2160, 0.0
      %v2193 = vmax.f32 %v2161, 0.0
      %v2194 = vmax.f32 %v2162, 0.0
      %v2195 = vmax.f32 %v2163, 0.0
      %v2196 = vmax.f32 %v2164, 0.0
      %v2197 = vmax.f32 %v2165, 0.0
      %v2198 = vmax.f32 %v2166, 0.0
      %v2199 = vmax.f32 %v2167, 0.0
      %v2200 = vmax.f32 %v2168, 0.0
      %v2201 = vmax.f32 %v2169, 0.0
      %v2202 = vmax.f32 %v2170, 0.0
      %v2203 = vmax.f32 %v2171, 0.0
      %v2220 = vrot.slane %v2174, 1
      %v2221 = vrot.slane %v2172, 1
      %v2222 = vrot.slane %v2176, 1
      %v2223 = vrot.slane %v2178, 1
      %v2224 = vrot.slane %v2180, 1
      %v2225 = vrot.slane %v2182, 1
      %v2226 = vrot.slane %v2184, 1
      %v2227 = vrot.slane %v2186, 1
      %v2228 = vrot.slane %v2188, 1
      %v2229 = vrot.slane %v2190, 1
      %v2230 = vrot.slane %v2192, 1
      %v2231 = vrot.slane %v2194, 1
      %v2232 = vrot.slane %v2196, 1
      %v2233 = vrot.slane %v2198, 1
      %v2234 = vrot.slane %v2200, 1
      %v2235 = vrot.slane %v2202, 1
      %v2268 = vrot.slane %v2174, 7
      %v2269 = vrot.slane %v2175, 7
      %v2270 = vsel %vm322, %v2268, %v2269
      %v2271 = vrot.slane %v2172, 7
      %v2272 = vrot.slane %v2173, 7
      %v2273 = vsel %vm322, %v2271, %v2272
      %v2274 = vrot.slane %v2176, 7
      %v2275 = vrot.slane %v2177, 7
      %v2276 = vsel %vm322, %v2274, %v2275
      %v2277 = vrot.slane %v2178, 7
      %v2278 = vrot.slane %v2179, 7
      %v2279 = vsel %vm322, %v2277, %v2278
      %v2280 = vrot.slane %v2180, 7
      %v2281 = vrot.slane %v2181, 7
      %v2282 = vsel %vm322, %v2280, %v2281
      %v2283 = vrot.slane %v2182, 7
      %v2284 = vrot.slane %v2183, 7
      %v2285 = vsel %vm322, %v2283, %v2284
      %v2286 = vrot.slane %v2184, 7
      %v2287 = vrot.slane %v2185, 7
      %v2288 = vsel %vm322, %v2286, %v2287
      %v2289 = vrot.slane %v2186, 7
      %v2290 = vrot.slane %v2187, 7
      %v2291 = vsel %vm322, %v2289, %v2290
      %v2292 = vrot.slane %v2188, 7
      %v2293 = vrot.slane %v2189, 7
      %v2294 = vsel %vm322, %v2292, %v2293
      %v2295 = vrot.slane %v2190, 7
      %v2296 = vrot.slane %v2191, 7
      %v2297 = vsel %vm322, %v2295, %v2296
      %v2298 = vrot.slane %v2192, 7
      %v2299 = vrot.slane %v2193, 7
      %v2300 = vsel %vm322, %v2298, %v2299
      %v2301 = vrot.slane %v2194, 7
      %v2302 = vrot.slane %v2195, 7
      %v2303 = vsel %vm322, %v2301, %v2302
      %v2304 = vrot.slane %v2196, 7
      %v2305 = vrot.slane %v2197, 7
      %v2306 = vsel %vm322, %v2304, %v2305
      %v2307 = vrot.slane %v2198, 7
      %v2308 = vrot.slane %v2199, 7
      %v2309 = vsel %vm322, %v2307, %v2308
      %v2310 = vrot.slane %v2200, 7
      %v2311 = vrot.slane %v2201, 7
      %v2312 = vsel %vm322, %v2310, %v2311
      %v2313 = vrot.slane %v2202, 7
      %v2314 = vrot.slane %v2203, 7
      %v2315 = vsel %vm322, %v2313, %v2314
      %v2363 = vrot.slane %v2175, 5
      %v2364 = vrot.slane %v2173, 5
      %v2365 = vrot.slane %v2177, 5
      %v2366 = vrot.slane %v2179, 5
      %v2367 = vrot.slane %v2181, 5
      %v2368 = vrot.slane %v2183, 5
      %v2369 = vrot.slane %v2185, 5
      %v2370 = vrot.slane %v2187, 5
      %v2371 = vrot.slane %v2189, 5
      %v2372 = vrot.slane %v2191, 5
      %v2373 = vrot.slane %v2193, 5
      %v2374 = vrot.slane %v2195, 5
      %v2375 = vrot.slane %v2197, 5
      %v2376 = vrot.slane %v2199, 5
      %v2377 = vrot.slane %v2201, 5
      %v2378 = vrot.slane %v2203, 5
      %v2395 = vsel %vm322, %v2220, %v2268
      %v2396 = vsel %vm322, %v2221, %v2271
      %v2397 = vsel %vm322, %v2222, %v2274
      %v2398 = vsel %vm322, %v2223, %v2277
      %v2399 = vsel %vm322, %v2224, %v2280
      %v2400 = vsel %vm322, %v2225, %v2283
      %v2401 = vsel %vm322, %v2226, %v2286
      %v2402 = vsel %vm322, %v2227, %v2289
      %v2403 = vsel %vm322, %v2228, %v2292
      %v2404 = vsel %vm322, %v2229, %v2295
      %v2405 = vsel %vm322, %v2230, %v2298
      %v2406 = vsel %vm322, %v2231, %v2301
      %v2407 = vsel %vm322, %v2232, %v2304
      %v2408 = vsel %vm322, %v2233, %v2307
      %v2409 = vsel %vm322, %v2234, %v2310
      %v2410 = vsel %vm322, %v2235, %v2313
      %v2411 = vsel %vm322, %v2269, %v2363
      %v2412 = vsel %vm322, %v2272, %v2364
      %v2413 = vsel %vm322, %v2275, %v2365
      %v2414 = vsel %vm322, %v2278, %v2366
      %v2415 = vsel %vm322, %v2281, %v2367
      %v2416 = vsel %vm322, %v2284, %v2368
      %v2417 = vsel %vm322, %v2287, %v2369
      %v2418 = vsel %vm322, %v2290, %v2370
      %v2419 = vsel %vm322, %v2293, %v2371
      %v2420 = vsel %vm322, %v2296, %v2372
      %v2421 = vsel %vm322, %v2299, %v2373
      %v2422 = vsel %vm322, %v2302, %v2374
      %v2423 = vsel %vm322, %v2305, %v2375
      %v2424 = vsel %vm322, %v2308, %v2376
      %v2425 = vsel %vm322, %v2311, %v2377
      %v2426 = vsel %vm322, %v2314, %v2378
      %v2457 = vrot.slane %v2395, 1
      %v2458 = vrot.slane %v2270, 1
      %v2459 = vsel %vm512, %v2457, %v2458
      %v2460 = vrot.slane %v2411, 1
      %v2461 = vsel %vm512, %v2458, %v2460
      %v2462 = vrot.slane %v2396, 1
      %v2463 = vrot.slane %v2273, 1
      %v2464 = vsel %vm512, %v2462, %v2463
      %v2465 = vrot.slane %v2412, 1
      %v2466 = vsel %vm512, %v2463, %v2465
      %v2467 = vrot.slane %v2397, 1
      %v2468 = vrot.slane %v2276, 1
      %v2469 = vsel %vm512, %v2467, %v2468
      %v2470 = vrot.slane %v2413, 1
      %v2471 = vsel %vm512, %v2468, %v2470
      %v2472 = vrot.slane %v2398, 1
      %v2473 = vrot.slane %v2279, 1
      %v2474 = vsel %vm512, %v2472, %v2473
      %v2475 = vrot.slane %v2414, 1
      %v2476 = vsel %vm512, %v2473, %v2475
      %v2477 = vrot.slane %v2399, 1
      %v2478 = vrot.slane %v2282, 1
      %v2479 = vsel %vm512, %v2477, %v2478
      %v2480 = vrot.slane %v2415, 1
      %v2481 = vsel %vm512, %v2478, %v2480
      %v2482 = vrot.slane %v2400, 1
      %v2483 = vrot.slane %v2285, 1
      %v2484 = vsel %vm512, %v2482, %v2483
      %v2485 = vrot.slane %v2416, 1
      %v2486 = vsel %vm512, %v2483, %v2485
      %v2487 = vrot.slane %v2401, 1
      %v2488 = vrot.slane %v2288, 1
      %v2489 = vsel %vm512, %v2487, %v2488
      %v2490 = vrot.slane %v2417, 1
      %v2491 = vsel %vm512, %v2488, %v2490
      %v2492 = vrot.slane %v2402, 1
      %v2493 = vrot.slane %v2291, 1
      %v2494 = vsel %vm512, %v2492, %v2493
      %v2495 = vrot.slane %v2418, 1
      %v2496 = vsel %vm512, %v2493, %v2495
      %v2497 = vrot.slane %v2403, 1
      %v2498 = vrot.slane %v2294, 1
      %v2499 = vsel %vm512, %v2497, %v2498
      %v2500 = vrot.slane %v2419, 1
      %v2501 = vsel %vm512, %v2498, %v2500
      %v2502 = vrot.slane %v2404, 1
      %v2503 = vrot.slane %v2297, 1
      %v2504 = vsel %vm512, %v2502, %v2503
      %v2505 = vrot.slane %v2420, 1
      %v2506 = vsel %vm512, %v2503, %v2505
      %v2507 = vrot.slane %v2405, 1
      %v2508 = vrot.slane %v2300, 1
      %v2509 = vsel %vm512, %v2507, %v2508
      %v2510 = vrot.slane %v2421, 1
      %v2511 = vsel %vm512, %v2508, %v2510
      %v2512 = vrot.slane %v2406, 1
      %v2513 = vrot.slane %v2303, 1
      %v2514 = vsel %vm512, %v2512, %v2513
      %v2515 = vrot.slane %v2422, 1
      %v2516 = vsel %vm512, %v2513, %v2515
      %v2517 = vrot.slane %v2407, 1
      %v2518 = vrot.slane %v2306, 1
      %v2519 = vsel %vm512, %v2517, %v2518
      %v2520 = vrot.slane %v2423, 1
      %v2521 = vsel %vm512, %v2518, %v2520
      %v2522 = vrot.slane %v2408, 1
      %v2523 = vrot.slane %v2309, 1
      %v2524 = vsel %vm512, %v2522, %v2523
      %v2525 = vrot.slane %v2424, 1
      %v2526 = vsel %vm512, %v2523, %v2525
      %v2527 = vrot.slane %v2409, 1
      %v2528 = vrot.slane %v2312, 1
      %v2529 = vsel %vm512, %v2527, %v2528
      %v2530 = vrot.slane %v2425, 1
      %v2531 = vsel %vm512, %v2528, %v2530
      %v2532 = vrot.slane %v2395, 2
      %v2533 = vrot.slane %v2270, 2
      %v2534 = vsel %vm588, %v2532, %v2533
      %v2535 = vrot.slane %v2411, 2
      %v2536 = vsel %vm588, %v2533, %v2535
      %v2537 = vrot.slane %v2396, 2
      %v2538 = vrot.slane %v2273, 2
      %v2539 = vsel %vm588, %v2537, %v2538
      %v2540 = vrot.slane %v2412, 2
      %v2541 = vsel %vm588, %v2538, %v2540
      %v2542 = vrot.slane %v2397, 2
      %v2543 = vrot.slane %v2276, 2
      %v2544 = vsel %vm588, %v2542, %v2543
      %v2545 = vrot.slane %v2413, 2
      %v2546 = vsel %vm588, %v2543, %v2545
      %v2547 = vrot.slane %v2398, 2
      %v2548 = vrot.slane %v2279, 2
      %v2549 = vsel %vm588, %v2547, %v2548
      %v2550 = vrot.slane %v2414, 2
      %v2551 = vsel %vm588, %v2548, %v2550
      %v2552 = vrot.slane %v2399, 2
      %v2553 = vrot.slane %v2282, 2
      %v2554 = vsel %vm588, %v2552, %v2553
      %v2555 = vrot.slane %v2415, 2
      %v2556 = vsel %vm588, %v2553, %v2555
      %v2557 = vrot.slane %v2400, 2
      %v2558 = vrot.slane %v2285, 2
      %v2559 = vsel %vm588, %v2557, %v2558
      %v2560 = vrot.slane %v2416, 2
      %v2561 = vsel %vm588, %v2558, %v2560
      %v2562 = vrot.slane %v2401, 2
      %v2563 = vrot.slane %v2288, 2
      %v2564 = vsel %vm588, %v2562, %v2563
      %v2565 = vrot.slane %v2417, 2
      %v2566 = vsel %vm588, %v2563, %v2565
      %v2567 = vrot.slane %v2402, 2
      %v2568 = vrot.slane %v2291, 2
      %v2569 = vsel %vm588, %v2567, %v2568
      %v2570 = vrot.slane %v2418, 2
      %v2571 = vsel %vm588, %v2568, %v2570
      %v2572 = vrot.slane %v2403, 2
      %v2573 = vrot.slane %v2294, 2
      %v2574 = vsel %vm588, %v2572, %v2573
      %v2575 = vrot.slane %v2419, 2
      %v2576 = vsel %vm588, %v2573, %v2575
      %v2577 = vrot.slane %v2404, 2
      %v2578 = vrot.slane %v2297, 2
      %v2579 = vsel %vm588, %v2577, %v2578
      %v2580 = vrot.slane %v2420, 2
      %v2581 = vsel %vm588, %v2578, %v2580
      %v2582 = vrot.slane %v2405, 2
      %v2583 = vrot.slane %v2300, 2
      %v2584 = vsel %vm588, %v2582, %v2583
      %v2585 = vrot.slane %v2421, 2
      %v2586 = vsel %vm588, %v2583, %v2585
      %v2587 = vrot.slane %v2406, 2
      %v2588 = vrot.slane %v2303, 2
      %v2589 = vsel %vm588, %v2587, %v2588
      %v2590 = vrot.slane %v2422, 2
      %v2591 = vsel %vm588, %v2588, %v2590
      %v2592 = vrot.slane %v2407, 2
      %v2593 = vrot.slane %v2306, 2
      %v2594 = vsel %vm588, %v2592, %v2593
      %v2595 = vrot.slane %v2423, 2
      %v2596 = vsel %vm588, %v2593, %v2595
      %v2597 = vrot.slane %v2408, 2
      %v2598 = vrot.slane %v2309, 2
      %v2599 = vsel %vm588, %v2597, %v2598
      %v2600 = vrot.slane %v2424, 2
      %v2601 = vsel %vm588, %v2598, %v2600
      %v2602 = vrot.slane %v2409, 2
      %v2603 = vrot.slane %v2312, 2
      %v2604 = vsel %vm588, %v2602, %v2603
      %v2605 = vrot.slane %v2425, 2
      %v2606 = vsel %vm588, %v2603, %v2605
      %v2609 = vrot.slane %v2410, 1
      %v2610 = vrot.slane %v2315, 1
      %v2611 = vsel %vm512, %v2609, %v2610
      %v2612 = vrot.slane %v2426, 1
      %v2613 = vsel %vm512, %v2610, %v2612
      %v2614 = vrot.slane %v2410, 2
      %v2615 = vrot.slane %v2315, 2
      %v2616 = vsel %vm588, %v2614, %v2615
      %v2617 = vrot.slane %v2426, 2
      %v2618 = vsel %vm588, %v2615, %v2617
      %2619 = vrot.lane.b32.xlu0 %v2459, 4
      %v2620 = vpop.permute.xlu0 %2619
      %2621 = vrot.lane.b32.xlu0 %v2461, 4
      %v2622 = vpop.permute.xlu0 %2621
      %2623 = vrot.lane.b32.xlu0 %v2464, 4
      %v2624 = vpop.permute.xlu0 %2623
      %2625 = vrot.lane.b32.xlu0 %v2466, 4
      %v2626 = vpop.permute.xlu0 %2625
      %2627 = vrot.lane.b32.xlu0 %v2469, 4
      %v2628 = vpop.permute.xlu0 %2627
      %2629 = vrot.lane.b32.xlu0 %v2471, 4
      %v2630 = vpop.permute.xlu0 %2629
      %2631 = vrot.lane.b32.xlu0 %v2474, 4
      %v2632 = vpop.permute.xlu0 %2631
      %2633 = vrot.lane.b32.xlu0 %v2476, 4
      %v2634 = vpop.permute.xlu0 %2633
      %2635 = vrot.lane.b32.xlu0 %v2479, 4
      %v2636 = vpop.permute.xlu0 %2635
      %2637 = vrot.lane.b32.xlu0 %v2481, 4
      %v2638 = vpop.permute.xlu0 %2637
      %2639 = vrot.lane.b32.xlu0 %v2484, 4
      %v2640 = vpop.permute.xlu0 %2639
      %2641 = vrot.lane.b32.xlu0 %v2486, 4
      %v2642 = vpop.permute.xlu0 %2641
      %2643 = vrot.lane.b32.xlu0 %v2489, 4
      %v2644 = vpop.permute.xlu0 %2643
      %2645 = vrot.lane.b32.xlu0 %v2491, 4
      %v2646 = vpop.permute.xlu0 %2645
      %2647 = vrot.lane.b32.xlu0 %v2494, 4
      %v2648 = vpop.permute.xlu0 %2647
      %2649 = vrot.lane.b32.xlu0 %v2496, 4
      %v2650 = vpop.permute.xlu0 %2649
      %2651 = vrot.lane.b32.xlu0 %v2499, 4
      %v2652 = vpop.permute.xlu0 %2651
      %2653 = vrot.lane.b32.xlu0 %v2501, 4
      %v2654 = vpop.permute.xlu0 %2653
      %2655 = vrot.lane.b32.xlu0 %v2504, 4
      %v2656 = vpop.permute.xlu0 %2655
      %2657 = vrot.lane.b32.xlu0 %v2506, 4
      %v2658 = vpop.permute.xlu0 %2657
      %2659 = vrot.lane.b32.xlu0 %v2509, 4
      %v2660 = vpop.permute.xlu0 %2659
      %2661 = vrot.lane.b32.xlu0 %v2511, 4
      %v2662 = vpop.permute.xlu0 %2661
      %2663 = vrot.lane.b32.xlu0 %v2514, 4
      %v2664 = vpop.permute.xlu0 %2663
      %2665 = vrot.lane.b32.xlu0 %v2516, 4
      %v2666 = vpop.permute.xlu0 %2665
      %2667 = vrot.lane.b32.xlu0 %v2519, 4
      %v2668 = vpop.permute.xlu0 %2667
      %2669 = vrot.lane.b32.xlu0 %v2521, 4
      %v2670 = vpop.permute.xlu0 %2669
      %2671 = vrot.lane.b32.xlu0 %v2524, 4
      %v2672 = vpop.permute.xlu0 %2671
      %2673 = vrot.lane.b32.xlu0 %v2526, 4
      %v2674 = vpop.permute.xlu0 %2673
      %2675 = vrot.lane.b32.xlu0 %v2529, 4
      %v2676 = vpop.permute.xlu0 %2675
      %2677 = vrot.lane.b32.xlu0 %v2531, 4
      %v2678 = vpop.permute.xlu0 %2677
      %2709 = vrot.lane.b32.xlu0 %v2534, 8
      %v2710 = vpop.permute.xlu0 %2709
      %2711 = vrot.lane.b32.xlu0 %v2536, 8
      %v2712 = vpop.permute.xlu0 %2711
      %2713 = vrot.lane.b32.xlu0 %v2539, 8
      %v2714 = vpop.permute.xlu0 %2713
      %2715 = vrot.lane.b32.xlu0 %v2541, 8
      %v2716 = vpop.permute.xlu0 %2715
      %2717 = vrot.lane.b32.xlu0 %v2544, 8
      %v2718 = vpop.permute.xlu0 %2717
      %2719 = vrot.lane.b32.xlu0 %v2546, 8
      %v2720 = vpop.permute.xlu0 %2719
      %2721 = vrot.lane.b32.xlu0 %v2549, 8
      %v2722 = vpop.permute.xlu0 %2721
      %2723 = vrot.lane.b32.xlu0 %v2551, 8
      %v2724 = vpop.permute.xlu0 %2723
      %2725 = vrot.lane.b32.xlu0 %v2554, 8
      %v2726 = vpop.permute.xlu0 %2725
      %2727 = vrot.lane.b32.xlu0 %v2556, 8
      %v2728 = vpop.permute.xlu0 %2727
      %2729 = vrot.lane.b32.xlu0 %v2559, 8
      %v2730 = vpop.permute.xlu0 %2729
      %2731 = vrot.lane.b32.xlu0 %v2561, 8
      %v2732 = vpop.permute.xlu0 %2731
      %2733 = vrot.lane.b32.xlu0 %v2564, 8
      %v2734 = vpop.permute.xlu0 %2733
      %2735 = vrot.lane.b32.xlu0 %v2566, 8
      %v2736 = vpop.permute.xlu0 %2735
      %2737 = vrot.lane.b32.xlu0 %v2569, 8
      %v2738 = vpop.permute.xlu0 %2737
      %2739 = vrot.lane.b32.xlu0 %v2571, 8
      %v2740 = vpop.permute.xlu0 %2739
      %2741 = vrot.lane.b32.xlu0 %v2574, 8
      %v2742 = vpop.permute.xlu0 %2741
      %2743 = vrot.lane.b32.xlu0 %v2576, 8
      %v2744 = vpop.permute.xlu0 %2743
      %2745 = vrot.lane.b32.xlu0 %v2579, 8
      %v2746 = vpop.permute.xlu0 %2745
      %2747 = vrot.lane.b32.xlu0 %v2581, 8
      %v2748 = vpop.permute.xlu0 %2747
      %2749 = vrot.lane.b32.xlu0 %v2584, 8
      %v2750 = vpop.permute.xlu0 %2749
      %2751 = vrot.lane.b32.xlu0 %v2586, 8
      %v2752 = vpop.permute.xlu0 %2751
      %2753 = vrot.lane.b32.xlu0 %v2589, 8
      %v2754 = vpop.permute.xlu0 %2753
      %2755 = vrot.lane.b32.xlu0 %v2591, 8
      %v2756 = vpop.permute.xlu0 %2755
      %2757 = vrot.lane.b32.xlu0 %v2594, 8
      %v2758 = vpop.permute.xlu0 %2757
      %2759 = vrot.lane.b32.xlu0 %v2596, 8
      %v2760 = vpop.permute.xlu0 %2759
      %2761 = vrot.lane.b32.xlu0 %v2599, 8
      %v2762 = vpop.permute.xlu0 %2761
      %2763 = vrot.lane.b32.xlu0 %v2601, 8
      %v2764 = vpop.permute.xlu0 %2763
      %2765 = vrot.lane.b32.xlu0 %v2604, 8
      %v2766 = vpop.permute.xlu0 %2765
      %2767 = vrot.lane.b32.xlu0 %v2606, 8
      %v2768 = vpop.permute.xlu0 %2767
      %2799 = vrot.lane.b32.xlu0 %v2396, 12
      %v2800 = vpop.permute.xlu0 %2799
      %2801 = vrot.lane.b32.xlu0 %v2273, 12
      %v2802 = vpop.permute.xlu0 %2801
      %2803 = vrot.lane.b32.xlu0 %v2395, 12
      %v2804 = vpop.permute.xlu0 %2803
      %2805 = vrot.lane.b32.xlu0 %v2270, 12
      %v2806 = vpop.permute.xlu0 %2805
      %2807 = vrot.lane.b32.xlu0 %v2397, 12
      %v2808 = vpop.permute.xlu0 %2807
      %2809 = vrot.lane.b32.xlu0 %v2276, 12
      %v2810 = vpop.permute.xlu0 %2809
      %2811 = vrot.lane.b32.xlu0 %v2398, 12
      %v2812 = vpop.permute.xlu0 %2811
      %2813 = vrot.lane.b32.xlu0 %v2279, 12
      %v2814 = vpop.permute.xlu0 %2813
      %2815 = vrot.lane.b32.xlu0 %v2399, 12
      %v2816 = vpop.permute.xlu0 %2815
      %2817 = vrot.lane.b32.xlu0 %v2282, 12
      %v2818 = vpop.permute.xlu0 %2817
      %2819 = vrot.lane.b32.xlu0 %v2400, 12
      %v2820 = vpop.permute.xlu0 %2819
      %2821 = vrot.lane.b32.xlu0 %v2285, 12
      %v2822 = vpop.permute.xlu0 %2821
      %2823 = vrot.lane.b32.xlu0 %v2401, 12
      %v2824 = vpop.permute.xlu0 %2823
      %2825 = vrot.lane.b32.xlu0 %v2288, 12
      %v2826 = vpop.permute.xlu0 %2825
      %2827 = vrot.lane.b32.xlu0 %v2402, 12
      %v2828 = vpop.permute.xlu0 %2827
      %2829 = vrot.lane.b32.xlu0 %v2291, 12
      %v2830 = vpop.permute.xlu0 %2829
      %2831 = vrot.lane.b32.xlu0 %v2403, 12
      %v2832 = vpop.permute.xlu0 %2831
      %2833 = vrot.lane.b32.xlu0 %v2294, 12
      %v2834 = vpop.permute.xlu0 %2833
      %2835 = vrot.lane.b32.xlu0 %v2404, 12
      %v2836 = vpop.permute.xlu0 %2835
      %2837 = vrot.lane.b32.xlu0 %v2297, 12
      %v2838 = vpop.permute.xlu0 %2837
      %2839 = vrot.lane.b32.xlu0 %v2405, 12
      %v2840 = vpop.permute.xlu0 %2839
      %2841 = vrot.lane.b32.xlu0 %v2300, 12
      %v2842 = vpop.permute.xlu0 %2841
      %2843 = vrot.lane.b32.xlu0 %v2406, 12
      %v2844 = vpop.permute.xlu0 %2843
      %2845 = vrot.lane.b32.xlu0 %v2303, 12
      %v2846 = vpop.permute.xlu0 %2845
      %2847 = vrot.lane.b32.xlu0 %v2407, 12
      %v2848 = vpop.permute.xlu0 %2847
      %2849 = vrot.lane.b32.xlu0 %v2306, 12
      %v2850 = vpop.permute.xlu0 %2849
      %2851 = vrot.lane.b32.xlu0 %v2408, 12
      %v2852 = vpop.permute.xlu0 %2851
      %2853 = vrot.lane.b32.xlu0 %v2309, 12
      %v2854 = vpop.permute.xlu0 %2853
      %2855 = vrot.lane.b32.xlu0 %v2409, 12
      %v2856 = vpop.permute.xlu0 %2855
      %2857 = vrot.lane.b32.xlu0 %v2312, 12
      %v2858 = vpop.permute.xlu0 %2857
      %2859 = vrot.lane.b32.xlu0 %v2410, 12
      %v2860 = vpop.permute.xlu0 %2859
      %2861 = vrot.lane.b32.xlu0 %v2315, 12
      %v2862 = vpop.permute.xlu0 %2861
      %2895 = vrot.lane.b32.xlu0 %v2464, 16
      %v2896 = vpop.permute.xlu0 %2895
      %2897 = vrot.lane.b32.xlu0 %v2466, 16
      %v2898 = vpop.permute.xlu0 %2897
      %2899 = vrot.lane.b32.xlu0 %v2459, 16
      %v2900 = vpop.permute.xlu0 %2899
      %2901 = vrot.lane.b32.xlu0 %v2461, 16
      %v2902 = vpop.permute.xlu0 %2901
      %2903 = vrot.lane.b32.xlu0 %v2469, 16
      %v2904 = vpop.permute.xlu0 %2903
      %2905 = vrot.lane.b32.xlu0 %v2471, 16
      %v2906 = vpop.permute.xlu0 %2905
      %2907 = vrot.lane.b32.xlu0 %v2474, 16
      %v2908 = vpop.permute.xlu0 %2907
      %2909 = vrot.lane.b32.xlu0 %v2476, 16
      %v2910 = vpop.permute.xlu0 %2909
      %2911 = vrot.lane.b32.xlu0 %v2479, 16
      %v2912 = vpop.permute.xlu0 %2911
      %2913 = vrot.lane.b32.xlu0 %v2481, 16
      %v2914 = vpop.permute.xlu0 %2913
      %2915 = vrot.lane.b32.xlu0 %v2484, 16
      %v2916 = vpop.permute.xlu0 %2915
      %2917 = vrot.lane.b32.xlu0 %v2486, 16
      %v2918 = vpop.permute.xlu0 %2917
      %2919 = vrot.lane.b32.xlu0 %v2489, 16
      %v2920 = vpop.permute.xlu0 %2919
      %2921 = vrot.lane.b32.xlu0 %v2491, 16
      %v2922 = vpop.permute.xlu0 %2921
      %2923 = vrot.lane.b32.xlu0 %v2494, 16
      %v2924 = vpop.permute.xlu0 %2923
      %2925 = vrot.lane.b32.xlu0 %v2496, 16
      %v2926 = vpop.permute.xlu0 %2925
      %2927 = vrot.lane.b32.xlu0 %v2499, 16
      %v2928 = vpop.permute.xlu0 %2927
      %2929 = vrot.lane.b32.xlu0 %v2501, 16
      %v2930 = vpop.permute.xlu0 %2929
      %2931 = vrot.lane.b32.xlu0 %v2504, 16
      %v2932 = vpop.permute.xlu0 %2931
      %2933 = vrot.lane.b32.xlu0 %v2506, 16
      %v2934 = vpop.permute.xlu0 %2933
      %2935 = vrot.lane.b32.xlu0 %v2509, 16
      %v2936 = vpop.permute.xlu0 %2935
      %2937 = vrot.lane.b32.xlu0 %v2511, 16
      %v2938 = vpop.permute.xlu0 %2937
      %2939 = vrot.lane.b32.xlu0 %v2514, 16
      %v2940 = vpop.permute.xlu0 %2939
      %2941 = vrot.lane.b32.xlu0 %v2516, 16
      %v2942 = vpop.permute.xlu0 %2941
      %2943 = vrot.lane.b32.xlu0 %v2519, 16
      %v2944 = vpop.permute.xlu0 %2943
      %2945 = vrot.lane.b32.xlu0 %v2521, 16
      %v2946 = vpop.permute.xlu0 %2945
      %2947 = vrot.lane.b32.xlu0 %v2524, 16
      %v2948 = vpop.permute.xlu0 %2947
      %2949 = vrot.lane.b32.xlu0 %v2526, 16
      %v2950 = vpop.permute.xlu0 %2949
      %2951 = vrot.lane.b32.xlu0 %v2529, 16
      %v2952 = vpop.permute.xlu0 %2951
      %2953 = vrot.lane.b32.xlu0 %v2531, 16
      %v2954 = vpop.permute.xlu0 %2953
      %2955 = vrot.lane.b32.xlu0 %v2611, 16
      %v2956 = vpop.permute.xlu0 %2955
      %2957 = vrot.lane.b32.xlu0 %v2613, 16
      %v2958 = vpop.permute.xlu0 %2957
      %2991 = vrot.lane.b32.xlu0 %v2539, 20
      %v2992 = vpop.permute.xlu0 %2991
      %2993 = vrot.lane.b32.xlu0 %v2541, 20
      %v2994 = vpop.permute.xlu0 %2993
      %2995 = vrot.lane.b32.xlu0 %v2534, 20
      %v2996 = vpop.permute.xlu0 %2995
      %2997 = vrot.lane.b32.xlu0 %v2536, 20
      %v2998 = vpop.permute.xlu0 %2997
      %2999 = vrot.lane.b32.xlu0 %v2544, 20
      %v3000 = vpop.permute.xlu0 %2999
      %3001 = vrot.lane.b32.xlu0 %v2546, 20
      %v3002 = vpop.permute.xlu0 %3001
      %3003 = vrot.lane.b32.xlu0 %v2549, 20
      %v3004 = vpop.permute.xlu0 %3003
      %3005 = vrot.lane.b32.xlu0 %v2551, 20
      %v3006 = vpop.permute.xlu0 %3005
      %3007 = vrot.lane.b32.xlu0 %v2554, 20
      %v3008 = vpop.permute.xlu0 %3007
      %3009 = vrot.lane.b32.xlu0 %v2556, 20
      %v3010 = vpop.permute.xlu0 %3009
      %3011 = vrot.lane.b32.xlu0 %v2559, 20
      %v3012 = vpop.permute.xlu0 %3011
      %3013 = vrot.lane.b32.xlu0 %v2561, 20
      %v3014 = vpop.permute.xlu0 %3013
      %3015 = vrot.lane.b32.xlu0 %v2564, 20
      %v3016 = vpop.permute.xlu0 %3015
      %3017 = vrot.lane.b32.xlu0 %v2566, 20
      %v3018 = vpop.permute.xlu0 %3017
      %3019 = vrot.lane.b32.xlu0 %v2569, 20
      %v3020 = vpop.permute.xlu0 %3019
      %3021 = vrot.lane.b32.xlu0 %v2571, 20
      %v3022 = vpop.permute.xlu0 %3021
      %3023 = vrot.lane.b32.xlu0 %v2574, 20
      %v3024 = vpop.permute.xlu0 %3023
      %3025 = vrot.lane.b32.xlu0 %v2576, 20
      %v3026 = vpop.permute.xlu0 %3025
      %3027 = vrot.lane.b32.xlu0 %v2579, 20
      %v3028 = vpop.permute.xlu0 %3027
      %3029 = vrot.lane.b32.xlu0 %v2581, 20
      %v3030 = vpop.permute.xlu0 %3029
      %3031 = vrot.lane.b32.xlu0 %v2584, 20
      %v3032 = vpop.permute.xlu0 %3031
      %3033 = vrot.lane.b32.xlu0 %v2586, 20
      %v3034 = vpop.permute.xlu0 %3033
      %3035 = vrot.lane.b32.xlu0 %v2589, 20
      %v3036 = vpop.permute.xlu0 %3035
      %3037 = vrot.lane.b32.xlu0 %v2591, 20
      %v3038 = vpop.permute.xlu0 %3037
      %3039 = vrot.lane.b32.xlu0 %v2594, 20
      %v3040 = vpop.permute.xlu0 %3039
      %3041 = vrot.lane.b32.xlu0 %v2596, 20
      %v3042 = vpop.permute.xlu0 %3041
      %3043 = vrot.lane.b32.xlu0 %v2599, 20
      %v3044 = vpop.permute.xlu0 %3043
      %3045 = vrot.lane.b32.xlu0 %v2601, 20
      %v3046 = vpop.permute.xlu0 %3045
      %3047 = vrot.lane.b32.xlu0 %v2604, 20
      %v3048 = vpop.permute.xlu0 %3047
      %3049 = vrot.lane.b32.xlu0 %v2606, 20
      %v3050 = vpop.permute.xlu0 %3049
      %3051 = vrot.lane.b32.xlu0 %v2616, 20
      %v3052 = vpop.permute.xlu0 %3051
      %3053 = vrot.lane.b32.xlu0 %v2618, 20
      %v3054 = vpop.permute.xlu0 %3053
      %3087 = vrot.lane.b32.xlu0 %v2395, 24
      %v3088 = vpop.permute.xlu0 %3087
      %3089 = vrot.lane.b32.xlu0 %v2270, 24
      %v3090 = vpop.permute.xlu0 %3089
      %3091 = vrot.lane.b32.xlu0 %v2397, 24
      %v3092 = vpop.permute.xlu0 %3091
      %3093 = vrot.lane.b32.xlu0 %v2276, 24
      %v3094 = vpop.permute.xlu0 %3093
      %3095 = vrot.lane.b32.xlu0 %v2398, 24
      %v3096 = vpop.permute.xlu0 %3095
      %3097 = vrot.lane.b32.xlu0 %v2279, 24
      %v3098 = vpop.permute.xlu0 %3097
      %3099 = vrot.lane.b32.xlu0 %v2399, 24
      %v3100 = vpop.permute.xlu0 %3099
      %3101 = vrot.lane.b32.xlu0 %v2282, 24
      %v3102 = vpop.permute.xlu0 %3101
      %3103 = vrot.lane.b32.xlu0 %v2400, 24
      %v3104 = vpop.permute.xlu0 %3103
      %3105 = vrot.lane.b32.xlu0 %v2285, 24
      %v3106 = vpop.permute.xlu0 %3105
      %3107 = vrot.lane.b32.xlu0 %v2401, 24
      %v3108 = vpop.permute.xlu0 %3107
      %3109 = vrot.lane.b32.xlu0 %v2288, 24
      %v3110 = vpop.permute.xlu0 %3109
      %3111 = vrot.lane.b32.xlu0 %v2402, 24
      %v3112 = vpop.permute.xlu0 %3111
      %3113 = vrot.lane.b32.xlu0 %v2291, 24
      %v3114 = vpop.permute.xlu0 %3113
      %3115 = vrot.lane.b32.xlu0 %v2403, 24
      %v3116 = vpop.permute.xlu0 %3115
      %3117 = vrot.lane.b32.xlu0 %v2294, 24
      %v3118 = vpop.permute.xlu0 %3117
      %3119 = vrot.lane.b32.xlu0 %v2404, 24
      %v3120 = vpop.permute.xlu0 %3119
      %3121 = vrot.lane.b32.xlu0 %v2297, 24
      %v3122 = vpop.permute.xlu0 %3121
      %3123 = vrot.lane.b32.xlu0 %v2405, 24
      %v3124 = vpop.permute.xlu0 %3123
      %3125 = vrot.lane.b32.xlu0 %v2300, 24
      %v3126 = vpop.permute.xlu0 %3125
      %3127 = vrot.lane.b32.xlu0 %v2406, 24
      %v3128 = vpop.permute.xlu0 %3127
      %3129 = vrot.lane.b32.xlu0 %v2303, 24
      %v3130 = vpop.permute.xlu0 %3129
      %3131 = vrot.lane.b32.xlu0 %v2407, 24
      %v3132 = vpop.permute.xlu0 %3131
      %3133 = vrot.lane.b32.xlu0 %v2306, 24
      %v3134 = vpop.permute.xlu0 %3133
      %3135 = vrot.lane.b32.xlu0 %v2408, 24
      %v3136 = vpop.permute.xlu0 %3135
      %3137 = vrot.lane.b32.xlu0 %v2309, 24
      %v3138 = vpop.permute.xlu0 %3137
      %3139 = vrot.lane.b32.xlu0 %v2409, 24
      %v3140 = vpop.permute.xlu0 %3139
      %3141 = vrot.lane.b32.xlu0 %v2312, 24
      %v3142 = vpop.permute.xlu0 %3141
      %3143 = vrot.lane.b32.xlu0 %v2410, 24
      %v3144 = vpop.permute.xlu0 %3143
      %3145 = vrot.lane.b32.xlu0 %v2315, 24
      %v3146 = vpop.permute.xlu0 %3145
      %3177 = vrot.lane.b32.xlu0 %v2459, 28
      %v3178 = vpop.permute.xlu0 %3177
      %3179 = vrot.lane.b32.xlu0 %v2461, 28
      %v3180 = vpop.permute.xlu0 %3179
      %3181 = vrot.lane.b32.xlu0 %v2469, 28
      %v3182 = vpop.permute.xlu0 %3181
      %3183 = vrot.lane.b32.xlu0 %v2471, 28
      %v3184 = vpop.permute.xlu0 %3183
      %3185 = vrot.lane.b32.xlu0 %v2474, 28
      %v3186 = vpop.permute.xlu0 %3185
      %3187 = vrot.lane.b32.xlu0 %v2476, 28
      %v3188 = vpop.permute.xlu0 %3187
      %3189 = vrot.lane.b32.xlu0 %v2479, 28
      %v3190 = vpop.permute.xlu0 %3189
      %3191 = vrot.lane.b32.xlu0 %v2481, 28
      %v3192 = vpop.permute.xlu0 %3191
      %3193 = vrot.lane.b32.xlu0 %v2484, 28
      %v3194 = vpop.permute.xlu0 %3193
      %3195 = vrot.lane.b32.xlu0 %v2486, 28
      %v3196 = vpop.permute.xlu0 %3195
      %3197 = vrot.lane.b32.xlu0 %v2489, 28
      %v3198 = vpop.permute.xlu0 %3197
      %3199 = vrot.lane.b32.xlu0 %v2491, 28
      %v3200 = vpop.permute.xlu0 %3199
      %3201 = vrot.lane.b32.xlu0 %v2494, 28
      %v3202 = vpop.permute.xlu0 %3201
      %3203 = vrot.lane.b32.xlu0 %v2496, 28
      %v3204 = vpop.permute.xlu0 %3203
      %3205 = vrot.lane.b32.xlu0 %v2499, 28
      %v3206 = vpop.permute.xlu0 %3205
      %3207 = vrot.lane.b32.xlu0 %v2501, 28
      %v3208 = vpop.permute.xlu0 %3207
      %3209 = vrot.lane.b32.xlu0 %v2504, 28
      %v3210 = vpop.permute.xlu0 %3209
      %3211 = vrot.lane.b32.xlu0 %v2506, 28
      %v3212 = vpop.permute.xlu0 %3211
      %3213 = vrot.lane.b32.xlu0 %v2509, 28
      %v3214 = vpop.permute.xlu0 %3213
      %3215 = vrot.lane.b32.xlu0 %v2511, 28
      %v3216 = vpop.permute.xlu0 %3215
      %3217 = vrot.lane.b32.xlu0 %v2514, 28
      %v3218 = vpop.permute.xlu0 %3217
      %3219 = vrot.lane.b32.xlu0 %v2516, 28
      %v3220 = vpop.permute.xlu0 %3219
      %3221 = vrot.lane.b32.xlu0 %v2519, 28
      %v3222 = vpop.permute.xlu0 %3221
      %3223 = vrot.lane.b32.xlu0 %v2521, 28
      %v3224 = vpop.permute.xlu0 %3223
      %3225 = vrot.lane.b32.xlu0 %v2524, 28
      %v3226 = vpop.permute.xlu0 %3225
      %3227 = vrot.lane.b32.xlu0 %v2526, 28
      %v3228 = vpop.permute.xlu0 %3227
      %3229 = vrot.lane.b32.xlu0 %v2529, 28
      %v3230 = vpop.permute.xlu0 %3229
      %3231 = vrot.lane.b32.xlu0 %v2531, 28
      %v3232 = vpop.permute.xlu0 %3231
      %3233 = vrot.lane.b32.xlu0 %v2611, 28
      %v3234 = vpop.permute.xlu0 %3233
      %3235 = vrot.lane.b32.xlu0 %v2613, 28
      %v3236 = vpop.permute.xlu0 %3235
      %3267 = vrot.lane.b32.xlu0 %v2534, 32
      %v3268 = vpop.permute.xlu0 %3267
      %3269 = vrot.lane.b32.xlu0 %v2536, 32
      %v3270 = vpop.permute.xlu0 %3269
      %3271 = vrot.lane.b32.xlu0 %v2544, 32
      %v3272 = vpop.permute.xlu0 %3271
      %3273 = vrot.lane.b32.xlu0 %v2546, 32
      %v3274 = vpop.permute.xlu0 %3273
      %3275 = vrot.lane.b32.xlu0 %v2549, 32
      %v3276 = vpop.permute.xlu0 %3275
      %3277 = vrot.lane.b32.xlu0 %v2551, 32
      %v3278 = vpop.permute.xlu0 %3277
      %3279 = vrot.lane.b32.xlu0 %v2554, 32
      %v3280 = vpop.permute.xlu0 %3279
      %3281 = vrot.lane.b32.xlu0 %v2556, 32
      %v3282 = vpop.permute.xlu0 %3281
      %3283 = vrot.lane.b32.xlu0 %v2559, 32
      %v3284 = vpop.permute.xlu0 %3283
      %3285 = vrot.lane.b32.xlu0 %v2561, 32
      %v3286 = vpop.permute.xlu0 %3285
      %3287 = vrot.lane.b32.xlu0 %v2564, 32
      %v3288 = vpop.permute.xlu0 %3287
      %3289 = vrot.lane.b32.xlu0 %v2566, 32
      %v3290 = vpop.permute.xlu0 %3289
      %3291 = vrot.lane.b32.xlu0 %v2569, 32
      %v3292 = vpop.permute.xlu0 %3291
      %3293 = vrot.lane.b32.xlu0 %v2571, 32
      %v3294 = vpop.permute.xlu0 %3293
      %3295 = vrot.lane.b32.xlu0 %v2574, 32
      %v3296 = vpop.permute.xlu0 %3295
      %3297 = vrot.lane.b32.xlu0 %v2576, 32
      %v3298 = vpop.permute.xlu0 %3297
      %3299 = vrot.lane.b32.xlu0 %v2579, 32
      %v3300 = vpop.permute.xlu0 %3299
      %3301 = vrot.lane.b32.xlu0 %v2581, 32
      %v3302 = vpop.permute.xlu0 %3301
      %3303 = vrot.lane.b32.xlu0 %v2584, 32
      %v3304 = vpop.permute.xlu0 %3303
      %3305 = vrot.lane.b32.xlu0 %v2586, 32
      %v3306 = vpop.permute.xlu0 %3305
      %3307 = vrot.lane.b32.xlu0 %v2589, 32
      %v3308 = vpop.permute.xlu0 %3307
      %3309 = vrot.lane.b32.xlu0 %v2591, 32
      %v3310 = vpop.permute.xlu0 %3309
      %3311 = vrot.lane.b32.xlu0 %v2594, 32
      %v3312 = vpop.permute.xlu0 %3311
      %3313 = vrot.lane.b32.xlu0 %v2596, 32
      %v3314 = vpop.permute.xlu0 %3313
      %3315 = vrot.lane.b32.xlu0 %v2599, 32
      %v3316 = vpop.permute.xlu0 %3315
      %3317 = vrot.lane.b32.xlu0 %v2601, 32
      %v3318 = vpop.permute.xlu0 %3317
      %3319 = vrot.lane.b32.xlu0 %v2604, 32
      %v3320 = vpop.permute.xlu0 %3319
      %3321 = vrot.lane.b32.xlu0 %v2606, 32
      %v3322 = vpop.permute.xlu0 %3321
      %3323 = vrot.lane.b32.xlu0 %v2616, 32
      %v3324 = vpop.permute.xlu0 %3323
      %3325 = vrot.lane.b32.xlu0 %v2618, 32
      %v3326 = vpop.permute.xlu0 %3325
      %v3357 = vsel %vm1414, %v2395, %v2620
      %v3358 = vsel %vm1414, %v2270, %v2622
      %v3359 = vsel %vm1414, %v2396, %v2624
      %v3360 = vsel %vm1414, %v2273, %v2626
      %v3361 = vsel %vm1414, %v2397, %v2628
      %v3362 = vsel %vm1414, %v2276, %v2630
      %v3363 = vsel %vm1414, %v2398, %v2632
      %v3364 = vsel %vm1414, %v2279, %v2634
      %v3365 = vsel %vm1414, %v2399, %v2636
      %v3366 = vsel %vm1414, %v2282, %v2638
      %v3367 = vsel %vm1414, %v2400, %v2640
      %v3368 = vsel %vm1414, %v2285, %v2642
      %v3369 = vsel %vm1414, %v2401, %v2644
      %v3370 = vsel %vm1414, %v2288, %v2646
      %v3371 = vsel %vm1414, %v2402, %v2648
      %v3372 = vsel %vm1414, %v2291, %v2650
      %v3373 = vsel %vm1414, %v2403, %v2652
      %v3374 = vsel %vm1414, %v2294, %v2654
      %v3375 = vsel %vm1414, %v2404, %v2656
      %v3376 = vsel %vm1414, %v2297, %v2658
      %v3377 = vsel %vm1414, %v2405, %v2660
      %v3378 = vsel %vm1414, %v2300, %v2662
      %v3379 = vsel %vm1414, %v2406, %v2664
      %v3380 = vsel %vm1414, %v2303, %v2666
      %v3381 = vsel %vm1414, %v2407, %v2668
      %v3382 = vsel %vm1414, %v2306, %v2670
      %v3383 = vsel %vm1414, %v2408, %v2672
      %v3384 = vsel %vm1414, %v2309, %v2674
      %v3385 = vsel %vm1414, %v2409, %v2676
      %v3386 = vsel %vm1414, %v2312, %v2678
      %v3387 = vsel %vm1445, %v3357, %v2710
      %v3388 = vsel %vm1445, %v3358, %v2712
      %v3389 = vsel %vm1445, %v3359, %v2714
      %v3390 = vsel %vm1445, %v3360, %v2716
      %v3391 = vsel %vm1445, %v3361, %v2718
      %v3392 = vsel %vm1445, %v3362, %v2720
      %v3393 = vsel %vm1445, %v3363, %v2722
      %v3394 = vsel %vm1445, %v3364, %v2724
      %v3395 = vsel %vm1445, %v3365, %v2726
      %v3396 = vsel %vm1445, %v3366, %v2728
      %v3397 = vsel %vm1445, %v3367, %v2730
      %v3398 = vsel %vm1445, %v3368, %v2732
      %v3399 = vsel %vm1445, %v3369, %v2734
      %v3400 = vsel %vm1445, %v3370, %v2736
      %v3401 = vsel %vm1445, %v3371, %v2738
      %v3402 = vsel %vm1445, %v3372, %v2740
      %v3403 = vsel %vm1445, %v3373, %v2742
      %v3404 = vsel %vm1445, %v3374, %v2744
      %v3405 = vsel %vm1445, %v3375, %v2746
      %v3406 = vsel %vm1445, %v3376, %v2748
      %v3407 = vsel %vm1445, %v3377, %v2750
      %v3408 = vsel %vm1445, %v3378, %v2752
      %v3409 = vsel %vm1445, %v3379, %v2754
      %v3410 = vsel %vm1445, %v3380, %v2756
      %v3411 = vsel %vm1445, %v3381, %v2758
      %v3412 = vsel %vm1445, %v3382, %v2760
      %v3413 = vsel %vm1445, %v3383, %v2762
      %v3414 = vsel %vm1445, %v3384, %v2764
      %v3415 = vsel %vm1445, %v3385, %v2766
      %v3416 = vsel %vm1445, %v3386, %v2768
      %v3417 = vsel %vm1476, %v3387, %v2800
      %v3418 = vsel %vm1476, %v3388, %v2802
      %v3419 = vsel %vm1476, %v3389, %v2804
      %v3420 = vsel %vm1476, %v3390, %v2806
      %v3421 = vsel %vm1476, %v3387, %v2808
      %v3422 = vsel %vm1476, %v3388, %v2810
      %v3423 = vsel %vm1476, %v3391, %v2812
      %v3424 = vsel %vm1476, %v3392, %v2814
      %v3425 = vsel %vm1476, %v3393, %v2816
      %v3426 = vsel %vm1476, %v3394, %v2818
      %v3427 = vsel %vm1476, %v3395, %v2820
      %v3428 = vsel %vm1476, %v3396, %v2822
      %v3429 = vsel %vm1476, %v3397, %v2824
      %v3430 = vsel %vm1476, %v3398, %v2826
      %v3431 = vsel %vm1476, %v3399, %v2828
      %v3432 = vsel %vm1476, %v3400, %v2830
      %v3433 = vsel %vm1476, %v3401, %v2832
      %v3434 = vsel %vm1476, %v3402, %v2834
      %v3435 = vsel %vm1476, %v3403, %v2836
      %v3436 = vsel %vm1476, %v3404, %v2838
      %v3437 = vsel %vm1476, %v3405, %v2840
      %v3438 = vsel %vm1476, %v3406, %v2842
      %v3439 = vsel %vm1476, %v3407, %v2844
      %v3440 = vsel %vm1476, %v3408, %v2846
      %v3441 = vsel %vm1476, %v3409, %v2848
      %v3442 = vsel %vm1476, %v3410, %v2850
      %v3443 = vsel %vm1476, %v3411, %v2852
      %v3444 = vsel %vm1476, %v3412, %v2854
      %v3445 = vsel %vm1476, %v3413, %v2856
      %v3446 = vsel %vm1476, %v3414, %v2858
      %v3447 = vsel %vm1476, %v3415, %v2860
      %v3448 = vsel %vm1476, %v3416, %v2862
      %v3449 = vsel %vm1509, %v3417, %v2896
      %v3450 = vsel %vm1509, %v3418, %v2898
      %v3451 = vsel %vm1509, %v3419, %v2900
      %v3452 = vsel %vm1509, %v3420, %v2902
      %v3453 = vsel %vm1509, %v3421, %v2904
      %v3454 = vsel %vm1509, %v3422, %v2906
      %v3455 = vsel %vm1509, %v3423, %v2908
      %v3456 = vsel %vm1509, %v3424, %v2910
      %v3457 = vsel %vm1509, %v3425, %v2912
      %v3458 = vsel %vm1509, %v3426, %v2914
      %v3459 = vsel %vm1509, %v3427, %v2916
      %v3460 = vsel %vm1509, %v3428, %v2918
      %v3461 = vsel %vm1509, %v3429, %v2920
      %v3462 = vsel %vm1509, %v3430, %v2922
      %v3463 = vsel %vm1509, %v3431, %v2924
      %v3464 = vsel %vm1509, %v3432, %v2926
      %v3465 = vsel %vm1509, %v3433, %v2928
      %v3466 = vsel %vm1509, %v3434, %v2930
      %v3467 = vsel %vm1509, %v3435, %v2932
      %v3468 = vsel %vm1509, %v3436, %v2934
      %v3469 = vsel %vm1509, %v3437, %v2936
      %v3470 = vsel %vm1509, %v3438, %v2938
      %v3471 = vsel %vm1509, %v3439, %v2940
      %v3472 = vsel %vm1509, %v3440, %v2942
      %v3473 = vsel %vm1509, %v3441, %v2944
      %v3474 = vsel %vm1509, %v3442, %v2946
      %v3475 = vsel %vm1509, %v3443, %v2948
      %v3476 = vsel %vm1509, %v3444, %v2950
      %v3477 = vsel %vm1509, %v3445, %v2952
      %v3478 = vsel %vm1509, %v3446, %v2954
      %v3479 = vsel %vm1509, %v3447, %v2956
      %v3480 = vsel %vm1509, %v3448, %v2958
      %v3481 = vsel %vm1542, %v3449, %v2992
      %v3482 = vsel %vm1542, %v3450, %v2994
      %v3483 = vsel %vm1542, %v3451, %v2996
      %v3484 = vsel %vm1542, %v3452, %v2998
      %v3485 = vsel %vm1542, %v3453, %v3000
      %v3486 = vsel %vm1542, %v3454, %v3002
      %v3487 = vsel %vm1542, %v3455, %v3004
      %v3488 = vsel %vm1542, %v3456, %v3006
      %v3489 = vsel %vm1542, %v3457, %v3008
      %v3490 = vsel %vm1542, %v3458, %v3010
      %v3491 = vsel %vm1542, %v3459, %v3012
      %v3492 = vsel %vm1542, %v3460, %v3014
      %v3493 = vsel %vm1542, %v3461, %v3016
      %v3494 = vsel %vm1542, %v3462, %v3018
      %v3495 = vsel %vm1542, %v3463, %v3020
      %v3496 = vsel %vm1542, %v3464, %v3022
      %v3497 = vsel %vm1542, %v3465, %v3024
      %v3498 = vsel %vm1542, %v3466, %v3026
      %v3499 = vsel %vm1542, %v3467, %v3028
      %v3500 = vsel %vm1542, %v3468, %v3030
      %v3501 = vsel %vm1542, %v3469, %v3032
      %v3502 = vsel %vm1542, %v3470, %v3034
      %v3503 = vsel %vm1542, %v3471, %v3036
      %v3504 = vsel %vm1542, %v3472, %v3038
      %v3505 = vsel %vm1542, %v3473, %v3040
      %v3506 = vsel %vm1542, %v3474, %v3042
      %v3507 = vsel %vm1542, %v3475, %v3044
      %v3508 = vsel %vm1542, %v3476, %v3046
      %v3509 = vsel %vm1542, %v3477, %v3048
      %v3510 = vsel %vm1542, %v3478, %v3050
      %v3511 = vsel %vm1542, %v3479, %v3052
      %v3512 = vsel %vm1542, %v3480, %v3054
      %v3513 = vsel %vm1575, %v3481, %v3088
      %v3514 = vsel %vm1575, %v3482, %v3090
      %v3515 = vsel %vm1575, %v3483, %v3092
      %v3516 = vsel %vm1575, %v3484, %v3094
      %v3517 = vsel %vm1575, %v3485, %v3096
      %v3518 = vsel %vm1575, %v3486, %v3098
      %v3519 = vsel %vm1575, %v3487, %v3100
      %v3520 = vsel %vm1575, %v3488, %v3102
      %v3521 = vsel %vm1575, %v3489, %v3104
      %v3522 = vsel %vm1575, %v3490, %v3106
      %v3523 = vsel %vm1575, %v3491, %v3108
      %v3524 = vsel %vm1575, %v3492, %v3110
      %v3525 = vsel %vm1575, %v3493, %v3112
      %v3526 = vsel %vm1575, %v3494, %v3114
      %v3527 = vsel %vm1575, %v3495, %v3116
      %v3528 = vsel %vm1575, %v3496, %v3118
      %v3529 = vsel %vm1575, %v3497, %v3120
      %v3530 = vsel %vm1575, %v3498, %v3122
      %v3531 = vsel %vm1575, %v3499, %v3124
      %v3532 = vsel %vm1575, %v3500, %v3126
      %v3533 = vsel %vm1575, %v3501, %v3128
      %v3534 = vsel %vm1575, %v3502, %v3130
      %v3535 = vsel %vm1575, %v3503, %v3132
      %v3536 = vsel %vm1575, %v3504, %v3134
      %v3537 = vsel %vm1575, %v3505, %v3136
      %v3538 = vsel %vm1575, %v3506, %v3138
      %v3539 = vsel %vm1575, %v3507, %v3140
      %v3540 = vsel %vm1575, %v3508, %v3142
      %v3541 = vsel %vm1575, %v3509, %v3144
      %v3542 = vsel %vm1575, %v3510, %v3146
      %v3543 = vsel %vm1575, %v3511, %v3140
      %v3544 = vsel %vm1575, %v3512, %v3142
      %v3545 = vsel %vm1608, %v3513, %v3178
      %v3546 = vsel %vm1608, %v3514, %v3180
      %v3547 = vsel %vm1608, %v3515, %v3182
      %v3548 = vsel %vm1608, %v3516, %v3184
      %v3549 = vsel %vm1608, %v3517, %v3186
      %v3550 = vsel %vm1608, %v3518, %v3188
      %v3551 = vsel %vm1608, %v3519, %v3190
      %v3552 = vsel %vm1608, %v3520, %v3192
      %v3553 = vsel %vm1608, %v3521, %v3194
      %v3554 = vsel %vm1608, %v3522, %v3196
      %v3555 = vsel %vm1608, %v3523, %v3198
      %v3556 = vsel %vm1608, %v3524, %v3200
      %v3557 = vsel %vm1608, %v3525, %v3202
      %v3558 = vsel %vm1608, %v3526, %v3204
      %v3559 = vsel %vm1608, %v3527, %v3206
      %v3560 = vsel %vm1608, %v3528, %v3208
      %v3561 = vsel %vm1608, %v3529, %v3210
      %v3562 = vsel %vm1608, %v3530, %v3212
      %v3563 = vsel %vm1608, %v3531, %v3214
      %v3564 = vsel %vm1608, %v3532, %v3216
      %v3565 = vsel %vm1608, %v3533, %v3218
      %v3566 = vsel %vm1608, %v3534, %v3220
      %v3567 = vsel %vm1608, %v3535, %v3222
      %v3568 = vsel %vm1608, %v3536, %v3224
      %v3569 = vsel %vm1608, %v3537, %v3226
      %v3570 = vsel %vm1608, %v3538, %v3228
      %v3571 = vsel %vm1608, %v3539, %v3230
      %v3572 = vsel %vm1608, %v3540, %v3232
      %v3573 = vsel %vm1608, %v3541, %v3234
      %v3574 = vsel %vm1608, %v3542, %v3236
      %v3575 = vsel %vm1608, %v3543, %v3230
      %v3576 = vsel %vm1608, %v3544, %v3232
      %v3577 = vsel %vm1641, %v3545, %v3268
      %v3578 = vsel %vm1641, %v3546, %v3270
      %v3579 = vsel %vm1641, %v3547, %v3272
      %v3580 = vsel %vm1641, %v3548, %v3274
      %v3581 = vsel %vm1641, %v3549, %v3276
      %v3582 = vsel %vm1641, %v3550, %v3278
      %v3583 = vsel %vm1641, %v3551, %v3280
      %v3584 = vsel %vm1641, %v3552, %v3282
      %v3585 = vsel %vm1641, %v3553, %v3284
      %v3586 = vsel %vm1641, %v3554, %v3286
      %v3587 = vsel %vm1641, %v3555, %v3288
      %v3588 = vsel %vm1641, %v3556, %v3290
      %v3589 = vsel %vm1641, %v3557, %v3292
      %v3590 = vsel %vm1641, %v3558, %v3294
      %v3591 = vsel %vm1641, %v3559, %v3296
      %v3592 = vsel %vm1641, %v3560, %v3298
      %v3593 = vsel %vm1641, %v3561, %v3300
      %v3594 = vsel %vm1641, %v3562, %v3302
      %v3595 = vsel %vm1641, %v3563, %v3304
      %v3596 = vsel %vm1641, %v3564, %v3306
      %v3597 = vsel %vm1641, %v3565, %v3308
      %v3598 = vsel %vm1641, %v3566, %v3310
      %v3599 = vsel %vm1641, %v3567, %v3312
      %v3600 = vsel %vm1641, %v3568, %v3314
      %v3601 = vsel %vm1641, %v3569, %v3316
      %v3602 = vsel %vm1641, %v3570, %v3318
      %v3603 = vsel %vm1641, %v3571, %v3320
      %v3604 = vsel %vm1641, %v3572, %v3322
      %v3605 = vsel %vm1641, %v3573, %v3324
      %v3606 = vsel %vm1641, %v3574, %v3326
      %v3607 = vsel %vm1641, %v3575, %v3320
      %v3608 = vsel %vm1641, %v3576, %v3322
      %v3609 = vpack.c.bf16 %v3578, %v3577
      %v3610 = vpack.c.bf16 %v3580, %v3579
      %v3611 = vpack.c.bf16 %v3582, %v3581
      %v3612 = vpack.c.bf16 %v3584, %v3583
      %v3613 = vpack.c.bf16 %v3586, %v3585
      %v3614 = vpack.c.bf16 %v3588, %v3587
      %v3615 = vpack.c.bf16 %v3590, %v3589
      %v3616 = vpack.c.bf16 %v3592, %v3591
      %v3617 = vpack.c.bf16 %v3594, %v3593
      %v3618 = vpack.c.bf16 %v3596, %v3595
      %v3619 = vpack.c.bf16 %v3598, %v3597
      %v3620 = vpack.c.bf16 %v3600, %v3599
      %v3621 = vpack.c.bf16 %v3602, %v3601
      %v3622 = vpack.c.bf16 %v3604, %v3603
      %v3623 = vpack.c.bf16 %v3606, %v3605
      %v3624 = vpack.c.bf16 %v3608, %v3607
      %v3625 = vld [vmem:[%s3] sm:$0xf]
      %v3626 = vld [vmem:[%s3 + $0x4] sm:$0xf]
      %v3627 = vld [vmem:[%s3 + $0x8] sm:$0xf]
      %v3628 = vld [vmem:[%s3 + $0xc] sm:$0xf]
      %v3629 = vld [vmem:[%s3 + $0x10] sm:$0x3]
      %v3630 = vld [vmem:[%s4] sm:$0x1]
      %v3632 = vlaneseq
      %v3633 = vshrl.u32 %v3632, 7
      %v3634 = vsub.s32 0, %v3633
      %v3635 = vrot.slane %v3630, %v3634
      %v3642 = vunpack.c.l.b16 %v3625
      %v3643 = vunpack.c.l.b16 %v3626
      %v3644 = vunpack.c.l.b16 %v3627
      %v3645 = vunpack.c.l.b16 %v3628
      %v3646 = vunpack.c.l.b16 %v3629
      %v3647 = vpack.c.b16 %v3643, %v3642
      %v3648 = vpack.c.b16 %v3645, %v3644
      %v3649 = vpack.c.b16 %v3646, %v3646
      %v3653 = vsel %vm1717, %v3609, 0
      %v3656 = vsel %vm1717, %v3610, 0
      %v3659 = vsel %vm1717, %v3611, 0
      %v3662 = vsel %vm1717, %v3612, 0
      %v3665 = vsel %vm1717, %v3613, 0
      %v3668 = vsel %vm1717, %v3614, 0
      %v3671 = vsel %vm1717, %v3615, 0
      %v3674 = vsel %vm1717, %v3616, 0
      %v3677 = vsel %vm1717, %v3617, 0
      %v3680 = vsel %vm1717, %v3618, 0
      %v3683 = vsel %vm1717, %v3619, 0
      %v3686 = vsel %vm1717, %v3620, 0
      %v3689 = vsel %vm1717, %v3621, 0
      %v3692 = vsel %vm1717, %v3622, 0
      %v3695 = vsel %vm1717, %v3623, 0
      %v3698 = vsel %vm1717, %v3624, 0
      %v3701 = vsel %vm1766, %v3649, 0
      %3703 = vmatprep.subr.bf16.mxu0 0
      %3704 = vmatpush1.bf16.msra.mxu0 0
      %3705 = vmatprep.subr.bf16.mxu0 0
      %3706 = vmatpush1.bf16.msra.mxu0 0
      %3707 = vmatprep.subr.bf16.mxu0 0
      %3708 = vmatpush1.bf16.msra.mxu0 0
      %3709 = vmatprep.subr.bf16.mxu0 0
      %3710 = vmatpush1.bf16.msra.mxu0 0
      %3711 = vmatprep.subr.bf16.mxu0 0
      %3712 = vmatpush1.bf16.msra.mxu0 0
      %3713 = vmatprep.subr.bf16.mxu0 0
      %3714 = vmatpush1.bf16.msra.mxu0 %v3701
      %3715 = vmatprep.subr.bf16.mxu0 0
      %3716 = vmatpush1.bf16.msra.mxu0 %v3648
      %3717 = vmatprep.subr.bf16.mxu0 0
      %3718 = vmatpush1.bf16.msra.mxu0 %v3647
      %3719 = vmatprep.subr.bf16.mxu0 0
      %3720 = vmatpush2.bf16.msra.mxu0 0
      %3721 = vmatprep.subr.bf16.mxu0 0
      %3722 = vmatpush2.bf16.msra.mxu0 0
      %3723 = vmatprep.subr.bf16.mxu0 0
      %3724 = vmatpush2.bf16.msra.mxu0 0
      %3725 = vmatprep.subr.bf16.mxu0 0
      %3726 = vmatpush2.bf16.msra.mxu0 0
      %3727 = vmatprep.subr.bf16.mxu0 0
      %3728 = vmatpush2.bf16.msra.mxu0 0
      %3729 = vmatprep.subr.bf16.mxu0 0
      %3730 = vmatpush2.bf16.msra.mxu0 0
      %3731 = vmatprep.subr.bf16.mxu0 0
      %3732 = vmatpush2.bf16.msra.mxu0 0
      %3733 = vmatprep.subr.bf16.mxu0 0
      %3734 = vmatpush2.bf16.msra.mxu0 0
      %3735 = vmatprep.mubr.bf16.mxu0 0
      %3736 = vmatmul.mubr.bf16.gmra.mxu0 %v3653
      %v3737 = vpop.f32.mrf.mxu0
      %v3738 = vadd.f32 %v3635, %v3737
      %v3739 = vpop.f32.mrf.mxu0
      %v3740 = vpop.f32.mrf.mxu0
      %v3741 = vadd.f32 %v3635, %v3740
      %v3742 = vpop.f32.mrf.mxu0
      %3743 = vmatprep.mubr.bf16.mxu0 0
      %3744 = vmatmul.mubr.bf16.gmra.mxu0 %v3656
      %v3745 = vpop.f32.mrf.mxu0
      %v3746 = vadd.f32 %v3635, %v3745
      %v3747 = vpop.f32.mrf.mxu0
      %v3748 = vpop.f32.mrf.mxu0
      %v3749 = vadd.f32 %v3635, %v3748
      %v3750 = vpop.f32.mrf.mxu0
      %3751 = vmatprep.mubr.bf16.mxu0 0
      %3752 = vmatmul.mubr.bf16.gmra.mxu0 %v3659
      %v3753 = vpop.f32.mrf.mxu0
      %v3754 = vadd.f32 %v3635, %v3753
      %v3755 = vpop.f32.mrf.mxu0
      %v3756 = vpop.f32.mrf.mxu0
      %v3757 = vadd.f32 %v3635, %v3756
      %v3758 = vpop.f32.mrf.mxu0
      %3759 = vmatprep.mubr.bf16.mxu0 0
      %3760 = vmatmul.mubr.bf16.gmra.mxu0 %v3662
      %v3761 = vpop.f32.mrf.mxu0
      %v3762 = vadd.f32 %v3635, %v3761
      %v3763 = vpop.f32.mrf.mxu0
      %v3764 = vpop.f32.mrf.mxu0
      %v3765 = vadd.f32 %v3635, %v3764
      %v3766 = vpop.f32.mrf.mxu0
      %3767 = vmatprep.mubr.bf16.mxu0 0
      %3768 = vmatmul.mubr.bf16.gmra.mxu0 %v3665
      %v3769 = vpop.f32.mrf.mxu0
      %v3770 = vadd.f32 %v3635, %v3769
      %v3771 = vpop.f32.mrf.mxu0
      %v3772 = vpop.f32.mrf.mxu0
      %v3773 = vadd.f32 %v3635, %v3772
      %v3774 = vpop.f32.mrf.mxu0
      %3775 = vmatprep.mubr.bf16.mxu0 0
      %3776 = vmatmul.mubr.bf16.gmra.mxu0 %v3668
      %v3777 = vpop.f32.mrf.mxu0
      %v3778 = vadd.f32 %v3635, %v3777
      %v3779 = vpop.f32.mrf.mxu0
      %v3780 = vpop.f32.mrf.mxu0
      %v3781 = vadd.f32 %v3635, %v3780
      %v3782 = vpop.f32.mrf.mxu0
      %3783 = vmatprep.mubr.bf16.mxu0 0
      %3784 = vmatmul.mubr.bf16.gmra.mxu0 %v3671
      %v3785 = vpop.f32.mrf.mxu0
      %v3786 = vadd.f32 %v3635, %v3785
      %v3787 = vpop.f32.mrf.mxu0
      %v3788 = vpop.f32.mrf.mxu0
      %v3789 = vadd.f32 %v3635, %v3788
      %v3790 = vpop.f32.mrf.mxu0
      %3791 = vmatprep.mubr.bf16.mxu0 0
      %3792 = vmatmul.mubr.bf16.gmra.mxu0 %v3674
      %v3793 = vpop.f32.mrf.mxu0
      %v3794 = vadd.f32 %v3635, %v3793
      %v3795 = vpop.f32.mrf.mxu0
      %v3796 = vpop.f32.mrf.mxu0
      %v3797 = vadd.f32 %v3635, %v3796
      %v3798 = vpop.f32.mrf.mxu0
      %3799 = vmatprep.mubr.bf16.mxu0 0
      %3800 = vmatmul.mubr.bf16.gmra.mxu0 %v3677
      %v3801 = vpop.f32.mrf.mxu0
      %v3802 = vadd.f32 %v3635, %v3801
      %v3803 = vpop.f32.mrf.mxu0
      %v3804 = vpop.f32.mrf.mxu0
      %v3805 = vadd.f32 %v3635, %v3804
      %v3806 = vpop.f32.mrf.mxu0
      %3807 = vmatprep.mubr.bf16.mxu0 0
      %3808 = vmatmul.mubr.bf16.gmra.mxu0 %v3680
      %v3809 = vpop.f32.mrf.mxu0
      %v3810 = vadd.f32 %v3635, %v3809
      %v3811 = vpop.f32.mrf.mxu0
      %v3812 = vpop.f32.mrf.mxu0
      %v3813 = vadd.f32 %v3635, %v3812
      %v3814 = vpop.f32.mrf.mxu0
      %3815 = vmatprep.mubr.bf16.mxu0 0
      %3816 = vmatmul.mubr.bf16.gmra.mxu0 %v3683
      %v3817 = vpop.f32.mrf.mxu0
      %v3818 = vadd.f32 %v3635, %v3817
      %v3819 = vpop.f32.mrf.mxu0
      %v3820 = vpop.f32.mrf.mxu0
      %v3821 = vadd.f32 %v3635, %v3820
      %v3822 = vpop.f32.mrf.mxu0
      %3823 = vmatprep.mubr.bf16.mxu0 0
      %3824 = vmatmul.mubr.bf16.gmra.mxu0 %v3686
      %v3825 = vpop.f32.mrf.mxu0
      %v3826 = vadd.f32 %v3635, %v3825
      %v3827 = vpop.f32.mrf.mxu0
      %v3828 = vpop.f32.mrf.mxu0
      %v3829 = vadd.f32 %v3635, %v3828
      %v3830 = vpop.f32.mrf.mxu0
      %3831 = vmatprep.mubr.bf16.mxu0 0
      %3832 = vmatmul.mubr.bf16.gmra.mxu0 %v3689
      %v3833 = vpop.f32.mrf.mxu0
      %v3834 = vadd.f32 %v3635, %v3833
      %v3835 = vpop.f32.mrf.mxu0
      %v3836 = vpop.f32.mrf.mxu0
      %v3837 = vadd.f32 %v3635, %v3836
      %v3838 = vpop.f32.mrf.mxu0
      %3839 = vmatprep.mubr.bf16.mxu0 0
      %3840 = vmatmul.mubr.bf16.gmra.mxu0 %v3692
      %v3841 = vpop.f32.mrf.mxu0
      %v3842 = vadd.f32 %v3635, %v3841
      %v3843 = vpop.f32.mrf.mxu0
      %v3844 = vpop.f32.mrf.mxu0
      %v3845 = vadd.f32 %v3635, %v3844
      %v3846 = vpop.f32.mrf.mxu0
      %3847 = vmatprep.mubr.bf16.mxu0 0
      %3848 = vmatmul.mubr.bf16.gmra.mxu0 %v3695
      %v3849 = vpop.f32.mrf.mxu0
      %v3850 = vadd.f32 %v3635, %v3849
      %v3851 = vpop.f32.mrf.mxu0
      %v3852 = vpop.f32.mrf.mxu0
      %v3853 = vadd.f32 %v3635, %v3852
      %v3854 = vpop.f32.mrf.mxu0
      %3855 = vmatprep.mubr.bf16.mxu0 0
      %3856 = vmatmul.mubr.bf16.gmra.mxu0 %v3698
      %v3857 = vpop.f32.mrf.mxu0
      %v3858 = vadd.f32 %v3635, %v3857
      %v3859 = vpop.f32.mrf.mxu0
      %v3860 = vpop.f32.mrf.mxu0
      %v3861 = vadd.f32 %v3635, %v3860
      %v3862 = vpop.f32.mrf.mxu0
      %3863 = vdwg.mxu0
      %v3864 = vsel %vm1414, %v3738, 0.0
      %v3865 = vsel %vm1414, %v3741, 0.0
      %v3866 = vadd.f32 %v3864, %v3865
      %v3867 = vsel %vm1414, %v3746, 0.0
      %v3868 = vadd.f32 %v3866, %v3867
      %v3869 = vsel %vm1414, %v3749, 0.0
      %v3870 = vadd.f32 %v3868, %v3869
      %v3871 = vsel %vm1414, %v3754, 0.0
      %v3872 = vadd.f32 %v3870, %v3871
      %v3873 = vsel %vm1414, %v3757, 0.0
      %v3874 = vadd.f32 %v3872, %v3873
      %v3875 = vsel %vm1414, %v3762, 0.0
      %v3876 = vadd.f32 %v3874, %v3875
      %v3877 = vsel %vm1414, %v3765, 0.0
      %v3878 = vadd.f32 %v3876, %v3877
      %v3879 = vsel %vm1414, %v3770, 0.0
      %v3880 = vadd.f32 %v3878, %v3879
      %v3881 = vsel %vm1414, %v3773, 0.0
      %v3882 = vadd.f32 %v3880, %v3881
      %v3883 = vsel %vm1414, %v3778, 0.0
      %v3884 = vadd.f32 %v3882, %v3883
      %v3885 = vsel %vm1414, %v3781, 0.0
      %v3886 = vadd.f32 %v3884, %v3885
      %v3887 = vsel %vm1414, %v3786, 0.0
      %v3888 = vadd.f32 %v3886, %v3887
      %v3889 = vsel %vm1414, %v3789, 0.0
      %v3890 = vadd.f32 %v3888, %v3889
      %v3891 = vsel %vm1414, %v3794, 0.0
      %v3892 = vadd.f32 %v3890, %v3891
      %v3893 = vsel %vm1414, %v3797, 0.0
      %v3894 = vadd.f32 %v3892, %v3893
      %v3895 = vsel %vm1414, %v3802, 0.0
      %v3896 = vadd.f32 %v3894, %v3895
      %v3897 = vsel %vm1414, %v3805, 0.0
      %v3898 = vadd.f32 %v3896, %v3897
      %v3899 = vsel %vm1414, %v3810, 0.0
      %v3900 = vadd.f32 %v3898, %v3899
      %v3901 = vsel %vm1414, %v3813, 0.0
      %v3902 = vadd.f32 %v3900, %v3901
      %v3903 = vsel %vm1414, %v3818, 0.0
      %v3904 = vadd.f32 %v3902, %v3903
      %v3905 = vsel %vm1414, %v3821, 0.0
      %v3906 = vadd.f32 %v3904, %v3905
      %v3907 = vsel %vm1414, %v3826, 0.0
      %v3908 = vadd.f32 %v3906, %v3907
      %v3909 = vsel %vm1414, %v3829, 0.0
      %v3910 = vadd.f32 %v3908, %v3909
      %v3911 = vsel %vm1414, %v3834, 0.0
      %v3912 = vadd.f32 %v3910, %v3911
      %v3913 = vsel %vm1414, %v3837, 0.0
      %v3914 = vadd.f32 %v3912, %v3913
      %v3915 = vsel %vm1414, %v3842, 0.0
      %v3916 = vadd.f32 %v3914, %v3915
      %v3917 = vsel %vm1414, %v3845, 0.0
      %v3918 = vadd.f32 %v3916, %v3917
      %v3919 = vsel %vm1414, %v3850, 0.0
      %v3920 = vadd.f32 %v3918, %v3919
      %v3921 = vsel %vm1414, %v3853, 0.0
      %v3922 = vadd.f32 %v3920, %v3921
      %v3923 = vsel %vm1414, %v3858, 0.0
      %v3924 = vadd.f32 %v3922, %v3923
      %v3925 = vsel %vm1414, %v3861, 0.0
      %v3926 = vadd.f32 %v3924, %v3925
      %v3927 = vrot.slane %v3926, 4
      %v3928 = vadd.f32 %v3926, %v3927
      %v3929 = vrot.slane %v3928, 2
      %v3930 = vadd.f32 %v3928, %v3929
      %v3931 = vrot.slane %v3930, 1
      %v3932 = vadd.f32 %v3930, %v3931
      %v3933 = vmul.f32 %v3932, 0.00390625
      %v3934 = vmul.f32 %v3738, %v3738
      %v3935 = vmul.f32 %v3741, %v3741
      %v3936 = vmul.f32 %v3746, %v3746
      %v3937 = vmul.f32 %v3749, %v3749
      %v3938 = vmul.f32 %v3754, %v3754
      %v3939 = vmul.f32 %v3757, %v3757
      %v3940 = vmul.f32 %v3762, %v3762
      %v3941 = vmul.f32 %v3765, %v3765
      %v3942 = vmul.f32 %v3770, %v3770
      %v3943 = vmul.f32 %v3773, %v3773
      %v3944 = vmul.f32 %v3778, %v3778
      %v3945 = vmul.f32 %v3781, %v3781
      %v3946 = vmul.f32 %v3786, %v3786
      %v3947 = vmul.f32 %v3789, %v3789
      %v3948 = vmul.f32 %v3794, %v3794
      %v3949 = vmul.f32 %v3797, %v3797
      %v3950 = vmul.f32 %v3802, %v3802
      %v3951 = vmul.f32 %v3805, %v3805
      %v3952 = vmul.f32 %v3810, %v3810
      %v3953 = vmul.f32 %v3813, %v3813
      %v3954 = vmul.f32 %v3818, %v3818
      %v3955 = vmul.f32 %v3821, %v3821
      %v3956 = vmul.f32 %v3826, %v3826
      %v3957 = vmul.f32 %v3829, %v3829
      %v3958 = vmul.f32 %v3834, %v3834
      %v3959 = vmul.f32 %v3837, %v3837
      %v3960 = vmul.f32 %v3842, %v3842
      %v3961 = vmul.f32 %v3845, %v3845
      %v3962 = vmul.f32 %v3850, %v3850
      %v3963 = vmul.f32 %v3853, %v3853
      %v3964 = vmul.f32 %v3858, %v3858
      %v3965 = vmul.f32 %v3861, %v3861
      %v3966 = vsel %vm1414, %v3934, 0.0
      %v3967 = vsel %vm1414, %v3935, 0.0
      %v3968 = vadd.f32 %v3966, %v3967
      %v3969 = vsel %vm1414, %v3936, 0.0
      %v3970 = vadd.f32 %v3968, %v3969
      %v3971 = vsel %vm1414, %v3937, 0.0
      %v3972 = vadd.f32 %v3970, %v3971
      %v3973 = vsel %vm1414, %v3938, 0.0
      %v3974 = vadd.f32 %v3972, %v3973
      %v3975 = vsel %vm1414, %v3939, 0.0
      %v3976 = vadd.f32 %v3974, %v3975
      %v3977 = vsel %vm1414, %v3940, 0.0
      %v3978 = vadd.f32 %v3976, %v3977
      %v3979 = vsel %vm1414, %v3941, 0.0
      %v3980 = vadd.f32 %v3978, %v3979
      %v3981 = vsel %vm1414, %v3942, 0.0
      %v3982 = vadd.f32 %v3980, %v3981
      %v3983 = vsel %vm1414, %v3943, 0.0
      %v3984 = vadd.f32 %v3982, %v3983
      %v3985 = vsel %vm1414, %v3944, 0.0
      %v3986 = vadd.f32 %v3984, %v3985
      %v3987 = vsel %vm1414, %v3945, 0.0
      %v3988 = vadd.f32 %v3986, %v3987
      %v3989 = vsel %vm1414, %v3946, 0.0
      %v3990 = vadd.f32 %v3988, %v3989
      %v3991 = vsel %vm1414, %v3947, 0.0
      %v3992 = vadd.f32 %v3990, %v3991
      %v3993 = vsel %vm1414, %v3948, 0.0
      %v3994 = vadd.f32 %v3992, %v3993
      %v3995 = vsel %vm1414, %v3949, 0.0
      %v3996 = vadd.f32 %v3994, %v3995
      %v3997 = vsel %vm1414, %v3950, 0.0
      %v3998 = vadd.f32 %v3996, %v3997
      %v3999 = vsel %vm1414, %v3951, 0.0
      %v4000 = vadd.f32 %v3998, %v3999
      %v4001 = vsel %vm1414, %v3952, 0.0
      %v4002 = vadd.f32 %v4000, %v4001
      %v4003 = vsel %vm1414, %v3953, 0.0
      %v4004 = vadd.f32 %v4002, %v4003
      %v4005 = vsel %vm1414, %v3954, 0.0
      %v4006 = vadd.f32 %v4004, %v4005
      %v4007 = vsel %vm1414, %v3955, 0.0
      %v4008 = vadd.f32 %v4006, %v4007
      %v4009 = vsel %vm1414, %v3956, 0.0
      %v4010 = vadd.f32 %v4008, %v4009
      %v4011 = vsel %vm1414, %v3957, 0.0
      %v4012 = vadd.f32 %v4010, %v4011
      %v4013 = vsel %vm1414, %v3958, 0.0
      %v4014 = vadd.f32 %v4012, %v4013
      %v4015 = vsel %vm1414, %v3959, 0.0
      %v4016 = vadd.f32 %v4014, %v4015
      %v4017 = vsel %vm1414, %v3960, 0.0
      %v4018 = vadd.f32 %v4016, %v4017
      %v4019 = vsel %vm1414, %v3961, 0.0
      %v4020 = vadd.f32 %v4018, %v4019
      %v4021 = vsel %vm1414, %v3962, 0.0
      %v4022 = vadd.f32 %v4020, %v4021
      %v4023 = vsel %vm1414, %v3963, 0.0
      %v4024 = vadd.f32 %v4022, %v4023
      %v4025 = vsel %vm1414, %v3964, 0.0
      %v4026 = vadd.f32 %v4024, %v4025
      %v4027 = vsel %vm1414, %v3965, 0.0
      %v4028 = vadd.f32 %v4026, %v4027
      %v4029 = vrot.slane %v4028, 4
      %v4030 = vadd.f32 %v4028, %v4029
      %v4031 = vrot.slane %v4030, 2
      %v4032 = vadd.f32 %v4030, %v4031
      %v4033 = vrot.slane %v4032, 1
      %v4034 = vadd.f32 %v4032, %v4033
      %v4035 = vmul.f32 %v4034, 0.00390625
      %v4036 = vmul.f32 %v3933, %v3933
      %v4037 = vsub.f32 %v4035, %v4036
      %v4038 = vmax.f32 %v4037, 0.0
      %v4039 = vsub.f32 %v3738, %v3933
      %v4040 = vsub.f32 %v3741, %v3933
      %v4041 = vsub.f32 %v3746, %v3933
      %v4042 = vsub.f32 %v3749, %v3933
      %v4043 = vsub.f32 %v3754, %v3933
      %v4044 = vsub.f32 %v3757, %v3933
      %v4045 = vsub.f32 %v3762, %v3933
      %v4046 = vsub.f32 %v3765, %v3933
      %v4047 = vsub.f32 %v3770, %v3933
      %v4048 = vsub.f32 %v3773, %v3933
      %v4049 = vsub.f32 %v3778, %v3933
      %v4050 = vsub.f32 %v3781, %v3933
      %v4051 = vsub.f32 %v3786, %v3933
      %v4052 = vsub.f32 %v3789, %v3933
      %v4053 = vsub.f32 %v3794, %v3933
      %v4054 = vsub.f32 %v3797, %v3933
      %v4055 = vsub.f32 %v3802, %v3933
      %v4056 = vsub.f32 %v3805, %v3933
      %v4057 = vsub.f32 %v3810, %v3933
      %v4058 = vsub.f32 %v3813, %v3933
      %v4059 = vsub.f32 %v3818, %v3933
      %v4060 = vsub.f32 %v3821, %v3933
      %v4061 = vsub.f32 %v3826, %v3933
      %v4062 = vsub.f32 %v3829, %v3933
      %v4063 = vsub.f32 %v3834, %v3933
      %v4064 = vsub.f32 %v3837, %v3933
      %v4065 = vsub.f32 %v3842, %v3933
      %v4066 = vsub.f32 %v3845, %v3933
      %v4067 = vsub.f32 %v3850, %v3933
      %v4068 = vsub.f32 %v3853, %v3933
      %v4069 = vsub.f32 %v3858, %v3933
      %v4070 = vsub.f32 %v3861, %v3933
      %v4071 = vadd.f32 %v4038, 1e-05
      %v4072 = vrsqrt.pop %v4071
      %v4073 = vmul.f32 %v4039, %v4072
      %v4074 = vmul.f32 %v4040, %v4072
      %v4075 = vmul.f32 %v4041, %v4072
      %v4076 = vmul.f32 %v4042, %v4072
      %v4077 = vmul.f32 %v4043, %v4072
      %v4078 = vmul.f32 %v4044, %v4072
      %v4079 = vmul.f32 %v4045, %v4072
      %v4080 = vmul.f32 %v4046, %v4072
      %v4081 = vmul.f32 %v4047, %v4072
      %v4082 = vmul.f32 %v4048, %v4072
      %v4083 = vmul.f32 %v4049, %v4072
      %v4084 = vmul.f32 %v4050, %v4072
      %v4085 = vmul.f32 %v4051, %v4072
      %v4086 = vmul.f32 %v4052, %v4072
      %v4087 = vmul.f32 %v4053, %v4072
      %v4088 = vmul.f32 %v4054, %v4072
      %v4089 = vmul.f32 %v4055, %v4072
      %v4090 = vmul.f32 %v4056, %v4072
      %v4091 = vmul.f32 %v4057, %v4072
      %v4092 = vmul.f32 %v4058, %v4072
      %v4093 = vmul.f32 %v4059, %v4072
      %v4094 = vmul.f32 %v4060, %v4072
      %v4095 = vmul.f32 %v4061, %v4072
      %v4096 = vmul.f32 %v4062, %v4072
      %v4097 = vmul.f32 %v4063, %v4072
      %v4098 = vmul.f32 %v4064, %v4072
      %v4099 = vmul.f32 %v4065, %v4072
      %v4100 = vmul.f32 %v4066, %v4072
      %v4101 = vmul.f32 %v4067, %v4072
      %v4102 = vmul.f32 %v4068, %v4072
      %v4103 = vmul.f32 %v4069, %v4072
      %v4104 = vmul.f32 %v4070, %v4072
      %v4105 = vadd.f32 %v226, %v4073
      %v4106 = vadd.f32 %v227, %v4074
      %v4107 = vadd.f32 %v228, %v4075
      %v4108 = vadd.f32 %v229, %v4076
      %v4109 = vadd.f32 %v230, %v4077
      %v4110 = vadd.f32 %v231, %v4078
      %v4111 = vadd.f32 %v232, %v4079
      %v4112 = vadd.f32 %v233, %v4080
      %v4113 = vadd.f32 %v234, %v4081
      %v4114 = vadd.f32 %v235, %v4082
      %v4115 = vadd.f32 %v236, %v4083
      %v4116 = vadd.f32 %v237, %v4084
      %v4117 = vadd.f32 %v238, %v4085
      %v4118 = vadd.f32 %v239, %v4086
      %v4119 = vadd.f32 %v240, %v4087
      %v4120 = vadd.f32 %v241, %v4088
      %v4121 = vadd.f32 %v242, %v4089
      %v4122 = vadd.f32 %v243, %v4090
      %v4123 = vadd.f32 %v244, %v4091
      %v4124 = vadd.f32 %v245, %v4092
      %v4125 = vadd.f32 %v246, %v4093
      %v4126 = vadd.f32 %v247, %v4094
      %v4127 = vadd.f32 %v248, %v4095
      %v4128 = vadd.f32 %v249, %v4096
      %v4129 = vadd.f32 %v250, %v4097
      %v4130 = vadd.f32 %v251, %v4098
      %v4131 = vadd.f32 %v252, %v4099
      %v4132 = vadd.f32 %v253, %v4100
      %v4133 = vadd.f32 %v254, %v4101
      %v4134 = vadd.f32 %v255, %v4102
      %v4135 = vadd.f32 %v256, %v4103
      %v4136 = vadd.f32 %v257, %v4104
      %4137 = vst.msk [vmem:[%s224] sm:$0xff] %vm1414, %v4105
      %4138 = vst.msk [vmem:[%s224 + $0x8] sm:$0xff] %vm1414, %v4106
      %4139 = vst.msk [vmem:[%s224 + $0x10] sm:$0xff] %vm1414, %v4107
      %4140 = vst.msk [vmem:[%s224 + $0x18] sm:$0xff] %vm1414, %v4108
      %4141 = vst.msk [vmem:[%s224 + $0x20] sm:$0xff] %vm1414, %v4109
      %4142 = vst.msk [vmem:[%s224 + $0x28] sm:$0xff] %vm1414, %v4110
      %4143 = vst.msk [vmem:[%s224 + $0x30] sm:$0xff] %vm1414, %v4111
      %4144 = vst.msk [vmem:[%s224 + $0x38] sm:$0xff] %vm1414, %v4112
      %4145 = vst.msk [vmem:[%s224 + $0x40] sm:$0xff] %vm1414, %v4113
      %4146 = vst.msk [vmem:[%s224 + $0x48] sm:$0xff] %vm1414, %v4114
      %4147 = vst.msk [vmem:[%s224 + $0x50] sm:$0xff] %vm1414, %v4115
      %4148 = vst.msk [vmem:[%s224 + $0x58] sm:$0xff] %vm1414, %v4116
      %4149 = vst.msk [vmem:[%s224 + $0x60] sm:$0xff] %vm1414, %v4117
      %4150 = vst.msk [vmem:[%s224 + $0x68] sm:$0xff] %vm1414, %v4118
      %4151 = vst.msk [vmem:[%s224 + $0x70] sm:$0xff] %vm1414, %v4119
      %4152 = vst.msk [vmem:[%s224 + $0x78] sm:$0xff] %vm1414, %v4120
      %4153 = vst.msk [vmem:[%s224 + $0x80] sm:$0xff] %vm1414, %v4121
      %4154 = vst.msk [vmem:[%s224 + $0x88] sm:$0xff] %vm1414, %v4122
      %4155 = vst.msk [vmem:[%s224 + $0x90] sm:$0xff] %vm1414, %v4123
      %4156 = vst.msk [vmem:[%s224 + $0x98] sm:$0xff] %vm1414, %v4124
      %4157 = vst.msk [vmem:[%s224 + $0xa0] sm:$0xff] %vm1414, %v4125
      %4158 = vst.msk [vmem:[%s224 + $0xa8] sm:$0xff] %vm1414, %v4126
      %4159 = vst.msk [vmem:[%s224 + $0xb0] sm:$0xff] %vm1414, %v4127
      %4160 = vst.msk [vmem:[%s224 + $0xb8] sm:$0xff] %vm1414, %v4128
      %4161 = vst.msk [vmem:[%s224 + $0xc0] sm:$0xff] %vm1414, %v4129
      %4162 = vst.msk [vmem:[%s224 + $0xc8] sm:$0xff] %vm1414, %v4130
      %4163 = vst.msk [vmem:[%s224 + $0xd0] sm:$0xff] %vm1414, %v4131
      %4164 = vst.msk [vmem:[%s224 + $0xd8] sm:$0xff] %vm1414, %v4132
      %4165 = vst.msk [vmem:[%s224 + $0xe0] sm:$0xff] %vm1414, %v4133
      %4166 = vst.msk [vmem:[%s224 + $0xe8] sm:$0xff] %vm1414, %v4134
      %4167 = vst.msk [vmem:[%s224 + $0xf0] sm:$0xff] %vm1414, %v4135
      %4168 = vst.msk [vmem:[%s224 + $0xf8] sm:$0xff] %vm1414, %v4136
      %p4169 = scmp.lt.s32.totalorder %s16, 1
      %s4170 = scalar_select %p4169, %s16, 1
      %s4171 = smul.addr %s4170, 32
      %s4172 = smul.addr %s4171, 8
      %s4173 = scalar_lea.vmem %s5, %s4172
      // Predicated region
      $region41: #{tpu_custom_call.1} parent=39 // pred_check
        %p4174 = pneg %p144
      $region42: #{tpu_custom_call.1} parent=39 // pred_check_branch
        %4176 = sbr.rel (%p4174) target = $region44
      $region43: #{tpu_custom_call.1} parent=39 // pred_region
        _
      $region44: #{tpu_custom_call.1} parent=39 // pred_fallthru
        _
    $region40: #{tpu_custom_call.1} parent=5 // pred_fallthru
      _
    %p4177 = scmp.le.s32.totalorder 2, %s11
    // Predicated region
    $region45: #{tpu_custom_call.1} parent=5 // pred_check
      %p4178 = pneg %p4177
    $region46: #{tpu_custom_call.1} parent=5 // pred_check_branch
      %4180 = sbr.rel (%p4178) target = $region48
    $region47: #{tpu_custom_call.1} parent=5 // pred_region
      %s4181 = ssub.s32 %s11, 2
      // Predicated region
      $region49: #{tpu_custom_call.1} parent=47 // pred_check
        %p4182 = pneg %p150
      $region50: #{tpu_custom_call.1} parent=47 // pred_check_branch
        %4184 = sbr.rel (%p4182) target = $region52
      $region51: #{tpu_custom_call.1} parent=47 // pred_region
        %p4185 = scmp.lt.s32.totalorder %s17, 1
        %s4186 = scalar_select %p4185, %s17, 1
        %s4187 = smul.addr %s4186, 32
        %s4188 = smul.addr %s4187, 8
        %s4189 = scalar_lea.vmem %s5, %s4188
      $region52: #{tpu_custom_call.1} parent=47 // pred_fallthru
        _
    $region48: #{tpu_custom_call.1} parent=5 // pred_fallthru
      _
  $region6: #{tpu_custom_call.1} parent=0 // loop_footer
    %s15 = sadd.s32 1, %s11
  $region7: #{tpu_custom_call.1} parent=0 // loop_footer_branch
    %10 = sbr.rel target = $region3
  $region8: #{tpu_custom_call.1} parent=0 // loop_exit
    _

</llo_original>
